<compile_context>
chip_gen: v5e
topology: v5e:2x2
jax: 0.10.0
libtpu: 0.0.40
codegen_flags: <defaults>
</compile_context>

<pallas_src>
import jax
import jax.numpy as jnp
import numpy as np
from jax.experimental import pallas as pl
from jax.experimental.pallas import tpu as pltpu


def _layernorm(x, gamma, beta, eps=1e-5):
    mu = jnp.mean(x, axis=-1, keepdims=True)
    var = jnp.mean((x - mu) ** 2, axis=-1, keepdims=True)
    return (x - mu) * jax.lax.rsqrt(var + eps) * gamma + beta


def make_encoder_kernel(n_heads, need_weights):
    def kernel(x_ref, k_ref, v_ref,
               wq_ref, bq_ref, wo_ref, bo_ref,
               g1_ref, be1_ref, w1_ref, b1_ref, w2_ref, b2_ref,
               g2_ref, be2_ref, *out_refs):
        dh = k_ref.shape[2]
        x = x_ref[0]                                                 # (TQ, D) f32 (residual path)
        x_bf = x.astype(jnp.bfloat16)

        # ---- Q projection (1/sqrt(dh) pre-folded into wq/bq) + static head split ----
        q = jnp.dot(x_bf, wq_ref[...], preferred_element_type=jnp.float32) + bq_ref[0]
        qh = jnp.stack([q[:, h * dh:(h + 1) * dh] for h in range(n_heads)],
                       axis=0).astype(jnp.bfloat16)                  # (H, TQ, dh)
        # TODO(synk): fuse head split/merge directly into the MXU contractions
        # (wq as (D,H,dh), wo as (H,dh,D)) to drop the remaining lane-slice relayouts.

        # ---- head-batched scaled dot-product attention ----
        # K cache is (H, dh, S): contraction on dh, S (multiple of 128) lane-dense, no transpose.
        s = jnp.einsum('hqd,hdk->hqk', qh, k_ref[0],
                       preferred_element_type=jnp.float32)           # (H, TQ, S)
        # TODO(synk): key_padding_mask / attn_mask additive masking not wired
        # (default Encoder.forward call passes None for both).
        # TODO(synk): for S >~ 1024 switch to a K-blocked online-softmax (flash) inner loop.
        s = s - jnp.max(s, axis=-1, keepdims=True)
        e = jnp.exp(s)
        denom = jnp.sum(e, axis=-1, keepdims=True)
        inv = pl.reciprocal(denom, approx=True)                      # EUP slot
        inv = inv * (2.0 - denom * inv)                              # one Newton step -> exact rows
        p = e * inv                                                  # softmax, (H, TQ, S) f32

        if need_weights:                                             # average_attn_weights=True
            out_refs[1][0] = jnp.mean(p, axis=0)                     # (TQ, S) f32

        attn_h = jnp.einsum('hqk,hkd->hqd', p.astype(jnp.bfloat16), v_ref[0],
                            preferred_element_type=jnp.float32)      # (H, TQ, dh)
        attn = jnp.concatenate([attn_h[h] for h in range(n_heads)], axis=-1)   # (TQ, D)
        attn_out = jnp.dot(attn.astype(jnp.bfloat16), wo_ref[...],
                           preferred_element_type=jnp.float32) + bo_ref[0]

        # ---- residual + LayerNorm 1 (dropout1 identity in eval) ----
        y = _layernorm(x + attn_out, g1_ref[0], be1_ref[0])

        # ---- feed-forward: Linear -> ReLU -> Linear (ff dropout identity in eval) ----
        # TODO(synk): Activation(activation) assumed to be ReLU.
        h1 = jnp.dot(y.astype(jnp.bfloat16), w1_ref[...],
                     preferred_element_type=jnp.float32) + b1_ref[0]
        h1 = jnp.maximum(h1, 0.0)
        ff = jnp.dot(h1.astype(jnp.bfloat16), w2_ref[...],
                     preferred_element_type=jnp.float32) + b2_ref[0]

        # ---- residual + LayerNorm 2 (dropout2 identity in eval) ----
        out_refs[0][0] = _layernorm(y + ff, g2_ref[0], be2_ref[0])

    return kernel


_KERNEL_PARAMS = ['wq', 'bq', 'wo', 'bo', 'g1', 'be1', 'w1', 'b1', 'w2', 'b2', 'g2', 'be2']
_BF16_WEIGHTS = frozenset({'wq', 'wo', 'w1', 'w2'})


def encoder_forward(src, params, n_heads, tq=128, need_weights=True):
    B, S, D = src.shape
    assert D % n_heads == 0
    tq = min(tq, S)
    assert S % tq == 0, "sequence length must be divisible by the q-tile size"
    dh = D // n_heads
    n_qt = S // tq
    scale = 1.0 / float(np.sqrt(dh))

    # ---- host-side (plain XLA) K/V projections: bf16 MXU inputs, f32 accumulation ----
    src_bf = src.astype(jnp.bfloat16)
    k = jnp.einsum('bsd,de->bse', src_bf, params['wk'].astype(jnp.bfloat16),
                   preferred_element_type=jnp.float32) + params['bk'][0]
    v = jnp.einsum('bsd,de->bse', src_bf, params['wv'].astype(jnp.bfloat16),
                   preferred_element_type=jnp.float32) + params['bv'][0]
    k = k.reshape(B, S, n_heads, dh).transpose(0, 2, 3, 1).astype(jnp.bfloat16)   # (B, H, dh, S)
    v = v.reshape(B, S, n_heads, dh).transpose(0, 2, 1, 3).astype(jnp.bfloat16)   # (B, H, S, dh)

    # fold softmax scale into the (in-kernel) Q projection
    kparams = dict(params)
    kparams['wq'] = params['wq'] * scale
    kparams['bq'] = params['bq'] * scale

    single = pl.Buffered(1)   # grid-invariant blocks: no double buffer
    in_specs = [
        pl.BlockSpec((1, tq, D), lambda b, q: (b, q, 0)),                 # src q-tile (residual+Q)
        pl.BlockSpec((1, n_heads, dh, S), lambda b, q: (b, 0, 0, 0)),     # per-head K cache
        pl.BlockSpec((1, n_heads, S, dh), lambda b, q: (b, 0, 0, 0)),     # per-head V cache
    ]
    args = [src, k, v]
    for name in _KERNEL_PARAMS:
        p = kparams[name]
        if name in _BF16_WEIGHTS:
            p = p.astype(jnp.bfloat16)                                    # MXU-native weight storage
        in_specs.append(pl.BlockSpec(p.shape, lambda b, q, n=p.ndim: (0,) * n,
                                     pipeline_mode=single))
        args.append(p)

    out_shape = [jax.ShapeDtypeStruct((B, S, D), jnp.float32)]
    out_specs = [pl.BlockSpec((1, tq, D), lambda b, q: (b, q, 0))]
    if need_weights:
        out_shape.append(jax.ShapeDtypeStruct((B, S, S), jnp.float32))
        out_specs.append(pl.BlockSpec((1, tq, S), lambda b, q: (b, q, 0)))

    return pl.pallas_call(
        make_encoder_kernel(n_heads, need_weights),
        out_shape=tuple(out_shape) if need_weights else out_shape[0],
        grid=(B, n_qt),
        in_specs=in_specs,
        out_specs=tuple(out_specs) if need_weights else out_specs[0],
        compiler_params=pltpu.CompilerParams(
            dimension_semantics=("parallel", "parallel"),
            vmem_limit_bytes=48 << 20),
    )(*args)


# ---------------- deterministic parameter init (xavier-uniform for matrices) ----------------
def xavier(key, fan_in, fan_out):
    limit = np.sqrt(6.0 / (fan_in + fan_out))
    return jax.random.uniform(key, (fan_in, fan_out), jnp.float32, -limit, limit)


def init_params(key, d_model, d_ff):
    ks = jax.random.split(key, 8)
    return {
        'wq': xavier(ks[0], d_model, d_model),
        'wk': xavier(ks[1], d_model, d_model),
        'wv': xavier(ks[2], d_model, d_model),
        'wo': xavier(ks[3], d_model, d_model),
        'w1': xavier(ks[4], d_model, d_ff),
        'w2': xavier(ks[5], d_ff, d_model),
        'bq': jax.random.uniform(ks[6], (1, d_model), jnp.float32, -0.1, 0.1),
        'bk': jnp.zeros((1, d_model), jnp.float32),
        'bv': jax.random.uniform(ks[7], (1, d_model), jnp.float32, -0.1, 0.1),
        'bo': jnp.zeros((1, d_model), jnp.float32),
        'b1': jnp.zeros((1, d_ff), jnp.float32),
        'b2': jnp.zeros((1, d_model), jnp.float32),
        'g1': jnp.ones((1, d_model), jnp.float32),
        'be1': jnp.zeros((1, d_model), jnp.float32),
        'g2': jnp.ones((1, d_model), jnp.float32),
        'be2': jnp.zeros((1, d_model), jnp.float32),
    }


# ---------------- pure-JAX f32 reference for correctness check ----------------
def reference(src, params, n_heads):
    B, S, D = src.shape
    dh = D // n_heads

    def one(x):
        q = x @ params['wq'] + params['bq'][0]
        k = x @ params['wk'] + params['bk'][0]
        v = x @ params['wv'] + params['bv'][0]
        qh = q.reshape(S, n_heads, dh).transpose(1, 0, 2)
        kh = k.reshape(S, n_heads, dh).transpose(1, 0, 2)
        vh = v.reshape(S, n_heads, dh).transpose(1, 0, 2)
        s = jnp.einsum('hqd,hkd->hqk', qh, kh) / np.sqrt(dh)
        p = jax.nn.softmax(s, axis=-1)
        a = jnp.einsum('hqk,hkd->hqd', p, vh).transpose(1, 0, 2).reshape(S, D)
        attn_out = a @ params['wo'] + params['bo'][0]
        y = _layernorm(x + attn_out, params['g1'][0], params['be1'][0])
        h1 = jnp.maximum(y @ params['w1'] + params['b1'][0], 0.0)
        ff = h1 @ params['w2'] + params['b2'][0]
        out = _layernorm(y + ff, params['g2'][0], params['be2'][0])
        return out, p.mean(axis=0)

    return jax.vmap(one)(src)


if __name__ == "__main__":
    # Lane-friendly small shapes: D, dff multiples of 128; S = 2 q-tiles of 128.
    B, S, D, H, DFF = 2, 256, 128, 4, 256
    key = jax.random.PRNGKey(0)
    k_x, k_p = jax.random.split(key)
    src = jax.random.normal(k_x, (B, S, D), jnp.float32)
    params = init_params(k_p, D, DFF)

    out, attw = encoder_forward(src, params, H, tq=128, need_weights=True)
    out = jax.block_until_ready(out)
    attw = jax.block_until_ready(attw)

    ref_out, ref_w = reference(src, params, H)
    # Tolerances relaxed vs f32 reference: kernel uses bf16 MXU inputs (f32 accumulation);
    # the K/V caches and softmax probabilities are also stored/fed in bf16.
    np.testing.assert_allclose(np.asarray(out), np.asarray(ref_out), rtol=5e-2, atol=5e-2)
    np.testing.assert_allclose(np.asarray(attw), np.asarray(ref_w), rtol=3e-2, atol=3e-2)

    # need_weights=False fast path (no (B, S, S) HBM write) must give the same main output.
    out_nw = jax.block_until_ready(encoder_forward(src, params, H, tq=128, need_weights=False))
    np.testing.assert_allclose(np.asarray(out_nw), np.asarray(ref_out), rtol=5e-2, atol=5e-2)

    print("KERNEL_OK")
</pallas_src>

<mosaic_0001>
module attributes {stable_mosaic.version = 11 : i64} {
  func.func @kernel(%arg0: i32, %arg1: i32, %arg2: memref<1x128x128xf32, #tpu.memory_space<vmem>>, %arg3: memref<1x4x32x256xbf16, #tpu.memory_space<vmem>>, %arg4: memref<1x4x256x32xbf16, #tpu.memory_space<vmem>>, %arg5: memref<128x128xbf16, #tpu.memory_space<vmem>>, %arg6: memref<1x128xf32, #tpu.memory_space<vmem>>, %arg7: memref<128x128xbf16, #tpu.memory_space<vmem>>, %arg8: memref<1x128xf32, #tpu.memory_space<vmem>>, %arg9: memref<1x128xf32, #tpu.memory_space<vmem>>, %arg10: memref<1x128xf32, #tpu.memory_space<vmem>>, %arg11: memref<128x256xbf16, #tpu.memory_space<vmem>>, %arg12: memref<1x256xf32, #tpu.memory_space<vmem>>, %arg13: memref<256x128xbf16, #tpu.memory_space<vmem>>, %arg14: memref<1x128xf32, #tpu.memory_space<vmem>>, %arg15: memref<1x128xf32, #tpu.memory_space<vmem>>, %arg16: memref<1x128xf32, #tpu.memory_space<vmem>>, %arg17: memref<1x128x128xf32, #tpu.memory_space<vmem>>, %arg18: memref<1x128x256xf32, #tpu.memory_space<vmem>>) attributes {dimension_semantics = [#tpu.dimension_semantics<parallel>, #tpu.dimension_semantics<parallel>], iteration_bounds = array<i64: 2, 2>, scalar_prefetch = 0 : i64, scratch_operands = 0 : i64, tpu.core_type = #tpu.core_type<tc>, window_params = [{transform_indices = @transform_0, window_bounds = array<i64: 1, 128, 128>}, {transform_indices = @transform_1, window_bounds = array<i64: 1, 4, 32, 256>}, {transform_indices = @transform_2, window_bounds = array<i64: 1, 4, 256, 32>}, {pipeline_mode = #tpu.pipeline_mode<synchronous>, transform_indices = @transform_3, window_bounds = array<i64: 128, 128>}, {pipeline_mode = #tpu.pipeline_mode<synchronous>, transform_indices = @transform_4, window_bounds = array<i64: 1, 128>}, {pipeline_mode = #tpu.pipeline_mode<synchronous>, transform_indices = @transform_5, window_bounds = array<i64: 128, 128>}, {pipeline_mode = #tpu.pipeline_mode<synchronous>, transform_indices = @transform_6, window_bounds = array<i64: 1, 128>}, {pipeline_mode = #tpu.pipeline_mode<synchronous>, transform_indices = @transform_7, window_bounds = array<i64: 1, 128>}, {pipeline_mode = #tpu.pipeline_mode<synchronous>, transform_indices = @transform_8, window_bounds = array<i64: 1, 128>}, {pipeline_mode = #tpu.pipeline_mode<synchronous>, transform_indices = @transform_9, window_bounds = array<i64: 128, 256>}, {pipeline_mode = #tpu.pipeline_mode<synchronous>, transform_indices = @transform_10, window_bounds = array<i64: 1, 256>}, {pipeline_mode = #tpu.pipeline_mode<synchronous>, transform_indices = @transform_11, window_bounds = array<i64: 256, 128>}, {pipeline_mode = #tpu.pipeline_mode<synchronous>, transform_indices = @transform_12, window_bounds = array<i64: 1, 128>}, {pipeline_mode = #tpu.pipeline_mode<synchronous>, transform_indices = @transform_13, window_bounds = array<i64: 1, 128>}, {pipeline_mode = #tpu.pipeline_mode<synchronous>, transform_indices = @transform_14, window_bounds = array<i64: 1, 128>}, {transform_indices = @transform_15, window_bounds = array<i64: 1, 128, 128>}, {transform_indices = @transform_16, window_bounds = array<i64: 1, 128, 256>}]} {
    %c0 = arith.constant 0 : index
    %c0_0 = arith.constant 0 : index
    %c0_1 = arith.constant 0 : index
    %0 = vector.load %arg2[%c0, %c0_0, %c0_1] : memref<1x128x128xf32, #tpu.memory_space<vmem>>, vector<1x128x128xf32>
    %1 = vector.shape_cast %0 : vector<1x128x128xf32> to vector<128x128xf32>
    %2 = arith.truncf %1 : vector<128x128xf32> to vector<128x128xbf16>
    %c0_2 = arith.constant 0 : index
    %c0_3 = arith.constant 0 : index
    %3 = vector.load %arg5[%c0_2, %c0_3] : memref<128x128xbf16, #tpu.memory_space<vmem>>, vector<128x128xbf16>
    %cst = arith.constant dense<0.000000e+00> : vector<128x128xf32>
    %4 = tpu.matmul %2, %3, %cst {dimension_numbers = #tpu.dot_dimension_numbers<[1], [0], [0], [1], [0, 0, 1, 1], [], []>} : vector<128x128xbf16>, vector<128x128xbf16>, vector<128x128xf32> -> vector<128x128xf32>
    %c0_4 = arith.constant 0 : index
    %c0_5 = arith.constant 0 : index
    %5 = vector.load %arg6[%c0_4, %c0_5] : memref<1x128xf32, #tpu.memory_space<vmem>>, vector<1x128xf32>
    %6 = vector.shape_cast %5 : vector<1x128xf32> to vector<128xf32>
    %7 = vector.shape_cast %6 : vector<128xf32> to vector<1x128xf32>
    %8 = vector.broadcast %7 : vector<1x128xf32> to vector<128x128xf32>
    %9 = arith.addf %4, %8 : vector<128x128xf32>
    %10 = vector.extract_strided_slice %9 {offsets = [0, 0], sizes = [128, 32], strides = [1, 1]} : vector<128x128xf32> to vector<128x32xf32>
    %11 = vector.extract_strided_slice %9 {offsets = [0, 32], sizes = [128, 32], strides = [1, 1]} : vector<128x128xf32> to vector<128x32xf32>
    %12 = vector.extract_strided_slice %9 {offsets = [0, 64], sizes = [128, 32], strides = [1, 1]} : vector<128x128xf32> to vector<128x32xf32>
    %13 = vector.extract_strided_slice %9 {offsets = [0, 96], sizes = [128, 32], strides = [1, 1]} : vector<128x128xf32> to vector<128x32xf32>
    %14 = vector.shape_cast %10 : vector<128x32xf32> to vector<1x128x32xf32>
    %15 = vector.shape_cast %11 : vector<128x32xf32> to vector<1x128x32xf32>
    %16 = vector.shape_cast %12 : vector<128x32xf32> to vector<1x128x32xf32>
    %17 = vector.shape_cast %13 : vector<128x32xf32> to vector<1x128x32xf32>
    %18 = tpu.concatenate %14, %15, %16, %17 in 0 : vector<1x128x32xf32>, vector<1x128x32xf32>, vector<1x128x32xf32>, vector<1x128x32xf32> -> vector<4x128x32xf32>
    %19 = arith.truncf %18 : vector<4x128x32xf32> to vector<4x128x32xbf16>
    %c0_6 = arith.constant 0 : index
    %c0_7 = arith.constant 0 : index
    %c0_8 = arith.constant 0 : index
    %c0_9 = arith.constant 0 : index
    %20 = vector.load %arg3[%c0_6, %c0_7, %c0_8, %c0_9] : memref<1x4x32x256xbf16, #tpu.memory_space<vmem>>, vector<1x4x32x256xbf16>
    %21 = vector.shape_cast %20 : vector<1x4x32x256xbf16> to vector<4x32x256xbf16>
    "tpu.trace_start"() <{level = 10 : i32, message = "hqd,hdk->hqk"}> : () -> ()
    %cst_10 = arith.constant dense<0.000000e+00> : vector<4x128x256xf32>
    %22 = tpu.matmul %19, %21, %cst_10 {dimension_numbers = #tpu.dot_dimension_numbers<[2], [1], [1], [2], [0, 0, 0, 1, 1, 2], [0], [0]>} : vector<4x128x32xbf16>, vector<4x32x256xbf16>, vector<4x128x256xf32> -> vector<4x128x256xf32>
    "tpu.trace_stop"() : () -> ()
    %cst_11 = arith.constant dense<0xFF800000> : vector<4x128xf32>
    %23 = vector.multi_reduction <maximumf>, %22, %cst_11 [2] : vector<4x128x256xf32> to vector<4x128xf32>
    %24 = vector.shape_cast %23 : vector<4x128xf32> to vector<4x128x1xf32>
    %25 = vector.broadcast %24 : vector<4x128x1xf32> to vector<4x128x256xf32>
    %26 = arith.subf %22, %25 : vector<4x128x256xf32>
    %27 = math.exp %26 : vector<4x128x256xf32>
    %cst_12 = arith.constant dense<0.000000e+00> : vector<4x128xf32>
    %28 = vector.multi_reduction <add>, %27, %cst_12 [2] : vector<4x128x256xf32> to vector<4x128xf32>
    %29 = vector.shape_cast %28 : vector<4x128xf32> to vector<4x128x1xf32>
    %30 = tpu.reciprocal %29 {approx = true} : vector<4x128x1xf32> -> vector<4x128x1xf32>
    %31 = arith.mulf %29, %30 : vector<4x128x1xf32>
    %cst_13 = arith.constant 2.000000e+00 : f32
    %32 = vector.broadcast %cst_13 : f32 to vector<4x128x1xf32>
    %33 = arith.subf %32, %31 : vector<4x128x1xf32>
    %34 = arith.mulf %30, %33 : vector<4x128x1xf32>
    %35 = vector.broadcast %34 : vector<4x128x1xf32> to vector<4x128x256xf32>
    %36 = arith.mulf %27, %35 : vector<4x128x256xf32>
    %cst_14 = arith.constant dense<0.000000e+00> : vector<128x256xf32>
    %37 = vector.multi_reduction <add>, %36, %cst_14 [0] : vector<4x128x256xf32> to vector<128x256xf32>
    %cst_15 = arith.constant 4.000000e+00 : f32
    %38 = vector.broadcast %cst_15 : f32 to vector<128x256xf32>
    %39 = arith.divf %37, %38 : vector<128x256xf32>
    %c0_16 = arith.constant 0 : index
    %c0_17 = arith.constant 0 : index
    %c0_18 = arith.constant 0 : index
    %40 = vector.load %arg18[%c0_16, %c0_17, %c0_18] : memref<1x128x256xf32, #tpu.memory_space<vmem>>, vector<1x128x256xf32>
    %41 = vector.shape_cast %40 : vector<1x128x256xf32> to vector<128x256xf32>
    %42 = vector.shape_cast %39 : vector<128x256xf32> to vector<1x128x256xf32>
    tpu.vector_store %arg18[%c0_16, %c0_17, %c0_18], %42 {strides = array<i32>} : memref<1x128x256xf32, #tpu.memory_space<vmem>>, vector<1x128x256xf32>,
    %43 = arith.truncf %36 : vector<4x128x256xf32> to vector<4x128x256xbf16>
    %c0_19 = arith.constant 0 : index
    %c0_20 = arith.constant 0 : index
    %c0_21 = arith.constant 0 : index
    %c0_22 = arith.constant 0 : index
    %44 = vector.load %arg4[%c0_19, %c0_20, %c0_21, %c0_22] : memref<1x4x256x32xbf16, #tpu.memory_space<vmem>>, vector<1x4x256x32xbf16>
    %45 = vector.shape_cast %44 : vector<1x4x256x32xbf16> to vector<4x256x32xbf16>
    "tpu.trace_start"() <{level = 10 : i32, message = "hqk,hkd->hqd"}> : () -> ()
    %cst_23 = arith.constant dense<0.000000e+00> : vector<4x128x32xf32>
    %46 = tpu.matmul %43, %45, %cst_23 {dimension_numbers = #tpu.dot_dimension_numbers<[2], [1], [1], [2], [0, 0, 0, 1, 1, 2], [0], [0]>} : vector<4x128x256xbf16>, vector<4x256x32xbf16>, vector<4x128x32xf32> -> vector<4x128x32xf32>
    "tpu.trace_stop"() : () -> ()
    %47 = vector.extract_strided_slice %46 {offsets = [0, 0, 0], sizes = [1, 128, 32], strides = [1, 1, 1]} : vector<4x128x32xf32> to vector<1x128x32xf32>
    %48 = vector.shape_cast %47 : vector<1x128x32xf32> to vector<128x32xf32>
    %49 = vector.extract_strided_slice %46 {offsets = [1, 0, 0], sizes = [1, 128, 32], strides = [1, 1, 1]} : vector<4x128x32xf32> to vector<1x128x32xf32>
    %50 = vector.shape_cast %49 : vector<1x128x32xf32> to vector<128x32xf32>
    %51 = vector.extract_strided_slice %46 {offsets = [2, 0, 0], sizes = [1, 128, 32], strides = [1, 1, 1]} : vector<4x128x32xf32> to vector<1x128x32xf32>
    %52 = vector.shape_cast %51 : vector<1x128x32xf32> to vector<128x32xf32>
    %53 = vector.extract_strided_slice %46 {offsets = [3, 0, 0], sizes = [1, 128, 32], strides = [1, 1, 1]} : vector<4x128x32xf32> to vector<1x128x32xf32>
    %54 = vector.shape_cast %53 : vector<1x128x32xf32> to vector<128x32xf32>
    %55 = tpu.concatenate %48, %50, %52, %54 in 1 : vector<128x32xf32>, vector<128x32xf32>, vector<128x32xf32>, vector<128x32xf32> -> vector<128x128xf32>
    %56 = arith.truncf %55 : vector<128x128xf32> to vector<128x128xbf16>
    %c0_24 = arith.constant 0 : index
    %c0_25 = arith.constant 0 : index
    %57 = vector.load %arg7[%c0_24, %c0_25] : memref<128x128xbf16, #tpu.memory_space<vmem>>, vector<128x128xbf16>
    %cst_26 = arith.constant dense<0.000000e+00> : vector<128x128xf32>
    %58 = tpu.matmul %56, %57, %cst_26 {dimension_numbers = #tpu.dot_dimension_numbers<[1], [0], [0], [1], [0, 0, 1, 1], [], []>} : vector<128x128xbf16>, vector<128x128xbf16>, vector<128x128xf32> -> vector<128x128xf32>
    %c0_27 = arith.constant 0 : index
    %c0_28 = arith.constant 0 : index
    %59 = vector.load %arg8[%c0_27, %c0_28] : memref<1x128xf32, #tpu.memory_space<vmem>>, vector<1x128xf32>
    %60 = vector.shape_cast %59 : vector<1x128xf32> to vector<128xf32>
    %61 = vector.shape_cast %60 : vector<128xf32> to vector<1x128xf32>
    %62 = vector.broadcast %61 : vector<1x128xf32> to vector<128x128xf32>
    %63 = arith.addf %58, %62 : vector<128x128xf32>
    %64 = arith.addf %1, %63 : vector<128x128xf32>
    %c0_29 = arith.constant 0 : index
    %c0_30 = arith.constant 0 : index
    %65 = vector.load %arg9[%c0_29, %c0_30] : memref<1x128xf32, #tpu.memory_space<vmem>>, vector<1x128xf32>
    %66 = vector.shape_cast %65 : vector<1x128xf32> to vector<128xf32>
    %c0_31 = arith.constant 0 : index
    %c0_32 = arith.constant 0 : index
    %67 = vector.load %arg10[%c0_31, %c0_32] : memref<1x128xf32, #tpu.memory_space<vmem>>, vector<1x128xf32>
    %68 = vector.shape_cast %67 : vector<1x128xf32> to vector<128xf32>
    %cst_33 = arith.constant dense<0.000000e+00> : vector<128xf32>
    %69 = vector.multi_reduction <add>, %64, %cst_33 [1] : vector<128x128xf32> to vector<128xf32>
    %70 = vector.shape_cast %69 : vector<128xf32> to vector<128x1xf32>
    %cst_34 = arith.constant 1.280000e+02 : f32
    %71 = vector.broadcast %cst_34 : f32 to vector<128x1xf32>
    %72 = arith.divf %70, %71 : vector<128x1xf32>
    %73 = vector.broadcast %72 : vector<128x1xf32> to vector<128x128xf32>
    %74 = arith.subf %64, %73 : vector<128x128xf32>
    %75 = arith.mulf %74, %74 : vector<128x128xf32>
    %cst_35 = arith.constant dense<0.000000e+00> : vector<128xf32>
    %76 = vector.multi_reduction <add>, %75, %cst_35 [1] : vector<128x128xf32> to vector<128xf32>
    %77 = vector.shape_cast %76 : vector<128xf32> to vector<128x1xf32>
    %cst_36 = arith.constant 1.280000e+02 : f32
    %78 = vector.broadcast %cst_36 : f32 to vector<128x1xf32>
    %79 = arith.divf %77, %78 : vector<128x1xf32>
    %80 = vector.broadcast %72 : vector<128x1xf32> to vector<128x128xf32>
    %81 = arith.subf %64, %80 : vector<128x128xf32>
    %cst_37 = arith.constant 9.99999974E-6 : f32
    %82 = vector.broadcast %cst_37 : f32 to vector<128x1xf32>
    %83 = arith.addf %79, %82 : vector<128x1xf32>
    %84 = math.rsqrt %83 : vector<128x1xf32>
    %85 = vector.broadcast %84 : vector<128x1xf32> to vector<128x128xf32>
    %86 = arith.mulf %81, %85 : vector<128x128xf32>
    %87 = vector.shape_cast %66 : vector<128xf32> to vector<1x128xf32>
    %88 = vector.broadcast %87 : vector<1x128xf32> to vector<128x128xf32>
    %89 = arith.mulf %86, %88 : vector<128x128xf32>
    %90 = vector.shape_cast %68 : vector<128xf32> to vector<1x128xf32>
    %91 = vector.broadcast %90 : vector<1x128xf32> to vector<128x128xf32>
    %92 = arith.addf %89, %91 : vector<128x128xf32>
    %93 = arith.truncf %92 : vector<128x128xf32> to vector<128x128xbf16>
    %c0_38 = arith.constant 0 : index
    %c0_39 = arith.constant 0 : index
    %94 = vector.load %arg11[%c0_38, %c0_39] : memref<128x256xbf16, #tpu.memory_space<vmem>>, vector<128x256xbf16>
    %cst_40 = arith.constant dense<0.000000e+00> : vector<128x256xf32>
    %95 = tpu.matmul %93, %94, %cst_40 {dimension_numbers = #tpu.dot_dimension_numbers<[1], [0], [0], [1], [0, 0, 1, 1], [], []>} : vector<128x128xbf16>, vector<128x256xbf16>, vector<128x256xf32> -> vector<128x256xf32>
    %c0_41 = arith.constant 0 : index
    %c0_42 = arith.constant 0 : index
    %96 = vector.load %arg12[%c0_41, %c0_42] : memref<1x256xf32, #tpu.memory_space<vmem>>, vector<1x256xf32>
    %97 = vector.shape_cast %96 : vector<1x256xf32> to vector<256xf32>
    %98 = vector.shape_cast %97 : vector<256xf32> to vector<1x256xf32>
    %99 = vector.broadcast %98 : vector<1x256xf32> to vector<128x256xf32>
    %100 = arith.addf %95, %99 : vector<128x256xf32>
    %cst_43 = arith.constant 0.000000e+00 : f32
    %101 = vector.broadcast %cst_43 : f32 to vector<128x256xf32>
    %102 = arith.maximumf %100, %101 : vector<128x256xf32>
    %103 = arith.truncf %102 : vector<128x256xf32> to vector<128x256xbf16>
    %c0_44 = arith.constant 0 : index
    %c0_45 = arith.constant 0 : index
    %104 = vector.load %arg13[%c0_44, %c0_45] : memref<256x128xbf16, #tpu.memory_space<vmem>>, vector<256x128xbf16>
    %cst_46 = arith.constant dense<0.000000e+00> : vector<128x128xf32>
    %105 = tpu.matmul %103, %104, %cst_46 {dimension_numbers = #tpu.dot_dimension_numbers<[1], [0], [0], [1], [0, 0, 1, 1], [], []>} : vector<128x256xbf16>, vector<256x128xbf16>, vector<128x128xf32> -> vector<128x128xf32>
    %c0_47 = arith.constant 0 : index
    %c0_48 = arith.constant 0 : index
    %106 = vector.load %arg14[%c0_47, %c0_48] : memref<1x128xf32, #tpu.memory_space<vmem>>, vector<1x128xf32>
    %107 = vector.shape_cast %106 : vector<1x128xf32> to vector<128xf32>
    %108 = vector.shape_cast %107 : vector<128xf32> to vector<1x128xf32>
    %109 = vector.broadcast %108 : vector<1x128xf32> to vector<128x128xf32>
    %110 = arith.addf %105, %109 : vector<128x128xf32>
    %111 = arith.addf %92, %110 : vector<128x128xf32>
    %c0_49 = arith.constant 0 : index
    %c0_50 = arith.constant 0 : index
    %112 = vector.load %arg15[%c0_49, %c0_50] : memref<1x128xf32, #tpu.memory_space<vmem>>, vector<1x128xf32>
    %113 = vector.shape_cast %112 : vector<1x128xf32> to vector<128xf32>
    %c0_51 = arith.constant 0 : index
    %c0_52 = arith.constant 0 : index
    %114 = vector.load %arg16[%c0_51, %c0_52] : memref<1x128xf32, #tpu.memory_space<vmem>>, vector<1x128xf32>
    %115 = vector.shape_cast %114 : vector<1x128xf32> to vector<128xf32>
    %cst_53 = arith.constant dense<0.000000e+00> : vector<128xf32>
    %116 = vector.multi_reduction <add>, %111, %cst_53 [1] : vector<128x128xf32> to vector<128xf32>
    %117 = vector.shape_cast %116 : vector<128xf32> to vector<128x1xf32>
    %cst_54 = arith.constant 1.280000e+02 : f32
    %118 = vector.broadcast %cst_54 : f32 to vector<128x1xf32>
    %119 = arith.divf %117, %118 : vector<128x1xf32>
    %120 = vector.broadcast %119 : vector<128x1xf32> to vector<128x128xf32>
    %121 = arith.subf %111, %120 : vector<128x128xf32>
    %122 = arith.mulf %121, %121 : vector<128x128xf32>
    %cst_55 = arith.constant dense<0.000000e+00> : vector<128xf32>
    %123 = vector.multi_reduction <add>, %122, %cst_55 [1] : vector<128x128xf32> to vector<128xf32>
    %124 = vector.shape_cast %123 : vector<128xf32> to vector<128x1xf32>
    %cst_56 = arith.constant 1.280000e+02 : f32
    %125 = vector.broadcast %cst_56 : f32 to vector<128x1xf32>
    %126 = arith.divf %124, %125 : vector<128x1xf32>
    %127 = vector.broadcast %119 : vector<128x1xf32> to vector<128x128xf32>
    %128 = arith.subf %111, %127 : vector<128x128xf32>
    %cst_57 = arith.constant 9.99999974E-6 : f32
    %129 = vector.broadcast %cst_57 : f32 to vector<128x1xf32>
    %130 = arith.addf %126, %129 : vector<128x1xf32>
    %131 = math.rsqrt %130 : vector<128x1xf32>
    %132 = vector.broadcast %131 : vector<128x1xf32> to vector<128x128xf32>
    %133 = arith.mulf %128, %132 : vector<128x128xf32>
    %134 = vector.shape_cast %113 : vector<128xf32> to vector<1x128xf32>
    %135 = vector.broadcast %134 : vector<1x128xf32> to vector<128x128xf32>
    %136 = arith.mulf %133, %135 : vector<128x128xf32>
    %137 = vector.shape_cast %115 : vector<128xf32> to vector<1x128xf32>
    %138 = vector.broadcast %137 : vector<1x128xf32> to vector<128x128xf32>
    %139 = arith.addf %136, %138 : vector<128x128xf32>
    %c0_58 = arith.constant 0 : index
    %c0_59 = arith.constant 0 : index
    %c0_60 = arith.constant 0 : index
    %140 = vector.load %arg17[%c0_58, %c0_59, %c0_60] : memref<1x128x128xf32, #tpu.memory_space<vmem>>, vector<1x128x128xf32>
    %141 = vector.shape_cast %140 : vector<1x128x128xf32> to vector<128x128xf32>
    %142 = vector.shape_cast %139 : vector<128x128xf32> to vector<1x128x128xf32>
    tpu.vector_store %arg17[%c0_58, %c0_59, %c0_60], %142 {strides = array<i32>} : memref<1x128x128xf32, #tpu.memory_space<vmem>>, vector<1x128x128xf32>,
    return
  }
  func.func @transform_0(%arg0: i32, %arg1: i32) -> (i32, i32, i32) {
    %c0_i32 = arith.constant 0 : i32
    %c0_i32_0 = arith.constant 0 : i32
    return %arg0, %arg1, %c0_i32 : i32, i32, i32
  }
  func.func @transform_1(%arg0: i32, %arg1: i32) -> (i32, i32, i32, i32) {
    %c0_i32 = arith.constant 0 : i32
    %c0_i32_0 = arith.constant 0 : i32
    %c0_i32_1 = arith.constant 0 : i32
    %c0_i32_2 = arith.constant 0 : i32
    return %arg0, %c0_i32, %c0_i32_0, %c0_i32_1 : i32, i32, i32, i32
  }
  func.func @transform_2(%arg0: i32, %arg1: i32) -> (i32, i32, i32, i32) {
    %c0_i32 = arith.constant 0 : i32
    %c0_i32_0 = arith.constant 0 : i32
    %c0_i32_1 = arith.constant 0 : i32
    %c0_i32_2 = arith.constant 0 : i32
    return %arg0, %c0_i32, %c0_i32_0, %c0_i32_1 : i32, i32, i32, i32
  }
  func.func @transform_3(%arg0: i32, %arg1: i32) -> (i32, i32) {
    %c0_i32 = arith.constant 0 : i32
    %c0_i32_0 = arith.constant 0 : i32
    %c0_i32_1 = arith.constant 0 : i32
    return %c0_i32, %c0_i32_0 : i32, i32
  }
  func.func @transform_4(%arg0: i32, %arg1: i32) -> (i32, i32) {
    %c0_i32 = arith.constant 0 : i32
    %c0_i32_0 = arith.constant 0 : i32
    %c0_i32_1 = arith.constant 0 : i32
    return %c0_i32, %c0_i32_0 : i32, i32
  }
  func.func @transform_5(%arg0: i32, %arg1: i32) -> (i32, i32) {
    %c0_i32 = arith.constant 0 : i32
    %c0_i32_0 = arith.constant 0 : i32
    %c0_i32_1 = arith.constant 0 : i32
    return %c0_i32, %c0_i32_0 : i32, i32
  }
  func.func @transform_6(%arg0: i32, %arg1: i32) -> (i32, i32) {
    %c0_i32 = arith.constant 0 : i32
    %c0_i32_0 = arith.constant 0 : i32
    %c0_i32_1 = arith.constant 0 : i32
    return %c0_i32, %c0_i32_0 : i32, i32
  }
  func.func @transform_7(%arg0: i32, %arg1: i32) -> (i32, i32) {
    %c0_i32 = arith.constant 0 : i32
    %c0_i32_0 = arith.constant 0 : i32
    %c0_i32_1 = arith.constant 0 : i32
    return %c0_i32, %c0_i32_0 : i32, i32
  }
  func.func @transform_8(%arg0: i32, %arg1: i32) -> (i32, i32) {
    %c0_i32 = arith.constant 0 : i32
    %c0_i32_0 = arith.constant 0 : i32
    %c0_i32_1 = arith.constant 0 : i32
    return %c0_i32, %c0_i32_0 : i32, i32
  }
  func.func @transform_9(%arg0: i32, %arg1: i32) -> (i32, i32) {
    %c0_i32 = arith.constant 0 : i32
    %c0_i32_0 = arith.constant 0 : i32
    %c0_i32_1 = arith.constant 0 : i32
    return %c0_i32, %c0_i32_0 : i32, i32
  }
  func.func @transform_10(%arg0: i32, %arg1: i32) -> (i32, i32) {
    %c0_i32 = arith.constant 0 : i32
    %c0_i32_0 = arith.constant 0 : i32
    %c0_i32_1 = arith.constant 0 : i32
    return %c0_i32, %c0_i32_0 : i32, i32
  }
  func.func @transform_11(%arg0: i32, %arg1: i32) -> (i32, i32) {
    %c0_i32 = arith.constant 0 : i32
    %c0_i32_0 = arith.constant 0 : i32
    %c0_i32_1 = arith.constant 0 : i32
    return %c0_i32, %c0_i32_0 : i32, i32
  }
  func.func @transform_12(%arg0: i32, %arg1: i32) -> (i32, i32) {
    %c0_i32 = arith.constant 0 : i32
    %c0_i32_0 = arith.constant 0 : i32
    %c0_i32_1 = arith.constant 0 : i32
    return %c0_i32, %c0_i32_0 : i32, i32
  }
  func.func @transform_13(%arg0: i32, %arg1: i32) -> (i32, i32) {
    %c0_i32 = arith.constant 0 : i32
    %c0_i32_0 = arith.constant 0 : i32
    %c0_i32_1 = arith.constant 0 : i32
    return %c0_i32, %c0_i32_0 : i32, i32
  }
  func.func @transform_14(%arg0: i32, %arg1: i32) -> (i32, i32) {
    %c0_i32 = arith.constant 0 : i32
    %c0_i32_0 = arith.constant 0 : i32
    %c0_i32_1 = arith.constant 0 : i32
    return %c0_i32, %c0_i32_0 : i32, i32
  }
  func.func @transform_15(%arg0: i32, %arg1: i32) -> (i32, i32, i32) {
    %c0_i32 = arith.constant 0 : i32
    %c0_i32_0 = arith.constant 0 : i32
    return %arg0, %arg1, %c0_i32 : i32, i32, i32
  }
  func.func @transform_16(%arg0: i32, %arg1: i32) -> (i32, i32, i32) {
    %c0_i32 = arith.constant 0 : i32
    %c0_i32_0 = arith.constant 0 : i32
    return %arg0, %arg1, %c0_i32 : i32, i32, i32
  }
}

</mosaic_0001>

<llo_original>
// kernel: tpu_custom_call.1
$region0: #{tpu_custom_call.1}
  #allocation0 [shape = 'u32[]', space=smem, size = 0x4, offset = 0x4, fixed_abs, tag = 'smem constant byte address 0x4 - core index']
  #allocation1 [shape = 'u32[72,128]{1,0:T(1,128)}', space=vmem, size = 0x9000, scoped, tag = 'internal scratch']
  %s0 = inlined_call_operand.vmem [shape: f32[2,256,128], index: 0, kind: input, shape index: {}]
  %s1 = inlined_call_operand.vmem [shape: bf16[2,4,32,256], index: 1, kind: input, shape index: {}]
  %s2 = inlined_call_operand.vmem [shape: bf16[2,4,256,32], index: 2, kind: input, shape index: {}]
  %s3 = inlined_call_operand.vmem [shape: bf16[128,128], index: 3, kind: input, shape index: {}]
  %s4 = inlined_call_operand.vmem [shape: f32[1,128], index: 4, kind: input, shape index: {}]
  %s5 = inlined_call_operand.vmem [shape: bf16[128,128], index: 5, kind: input, shape index: {}]
  %s6 = inlined_call_operand.vmem [shape: f32[1,128], index: 6, kind: input, shape index: {}]
  %s7 = inlined_call_operand.vmem [shape: f32[1,128], index: 7, kind: input, shape index: {}]
  %s8 = inlined_call_operand.vmem [shape: f32[1,128], index: 8, kind: input, shape index: {}]
  %s9 = inlined_call_operand.vmem [shape: bf16[128,256], index: 9, kind: input, shape index: {}]
  %s10 = inlined_call_operand.vmem [shape: f32[1,256], index: 10, kind: input, shape index: {}]
  %s11 = inlined_call_operand.vmem [shape: bf16[256,128], index: 11, kind: input, shape index: {}]
  %s12 = inlined_call_operand.vmem [shape: f32[1,128], index: 12, kind: input, shape index: {}]
  %s13 = inlined_call_operand.vmem [shape: f32[1,128], index: 13, kind: input, shape index: {}]
  %s14 = inlined_call_operand.vmem [shape: f32[1,128], index: 14, kind: input, shape index: {}]
  %s15 = inlined_call_operand.hbm [shape: f32[2,256,128], index: 15, kind: output, shape index: {0}]
  %s16 = inlined_call_operand.hbm [shape: f32[2,256,256], index: 16, kind: output, shape index: {1}]
  %17 = xla_tuple %s15, %s16
  %s18 = sld [smem:[#allocation0]]
  $region101: #{tpu_custom_call.1} parent=0
    _
  %s20 = ssub.s32 1, %s18
  %s21 = scalar_select 0, %s20, %s18
  $region1: #{tpu_custom_call.1} parent=0
    #allocation2 [shape = 'u8[131072]{0}', space=vmem, size = 0x20000, scoped, tag = 'output window, operand 0']
    #allocation3 [shape = 's32[2]{0}', space=sflag, size = 0x8, scoped, tag = 'scoped memory for tpu_custom_call.1']
    #allocation4 [shape = 'u8[262144]{0}', space=vmem, size = 0x40000, scoped, tag = 'output window, operand 1']
    #allocation5 [shape = 's32[2]{0}', space=sflag, size = 0x8, scoped, tag = 'scoped memory for tpu_custom_call.1']
    %22 = vsyncpa [#allocation3], 0
    %s23 = scalar_lea.sflag [#allocation3], 1
    %24 = vsyncpa %s23, 0
    %25 = vsyncpa [#allocation5], 0
    %s26 = scalar_lea.sflag [#allocation5], 1
    %27 = vsyncpa %s26, 0
    loop: start=0, step=1, limit=6
    $region2: #{tpu_custom_call.1} parent=1 // loop_pre_header
      _
    $region3: #{tpu_custom_call.1} parent=1 // loop_header
      %s29 = sphi 0, %s33
      %p30 = scmp.ge.s32.totalorder %s29, 6
      %s36 = sphi 0, %s48
      %s37 = sphi 0, %s44
      %s38 = sphi 0, %s36
      %s39 = sphi 0, %s37
      %s40 = sphi 0, %s38
      %s41 = sphi 0, %s39
      %s53 = sphi 0, %s55
      %s56 = sphi 0, %s53
      %s57 = sphi 0, %s56
      %s73 = sphi 0, %s57
      %s79 = sphi 0, %s81
      %s82 = sphi 0, %s79
      %s83 = sphi 0, %s82
      %s99 = sphi 0, %s83
      %s105 = sphi 0, %s107
      %s108 = sphi 0, %s105
      %s109 = sphi 0, %s108
      %s125 = sphi 0, %s109
      %s129 = sphi 0, %s129
      %s131 = sphi 0, %s129
      %s132 = sphi 0, %s131
      %s146 = sphi 0, %s132
      %s150 = sphi 0, %s150
      %s152 = sphi 0, %s150
      %s153 = sphi 0, %s152
      %s167 = sphi 0, %s153
      %s171 = sphi 0, %s171
      %s173 = sphi 0, %s171
      %s174 = sphi 0, %s173
      %s188 = sphi 0, %s174
      %s192 = sphi 0, %s192
      %s194 = sphi 0, %s192
      %s195 = sphi 0, %s194
      %s209 = sphi 0, %s195
      %s213 = sphi 0, %s213
      %s215 = sphi 0, %s213
      %s216 = sphi 0, %s215
      %s230 = sphi 0, %s216
      %s234 = sphi 0, %s234
      %s236 = sphi 0, %s234
      %s237 = sphi 0, %s236
      %s251 = sphi 0, %s237
      %s255 = sphi 0, %s255
      %s257 = sphi 0, %s255
      %s258 = sphi 0, %s257
      %s272 = sphi 0, %s258
      %s276 = sphi 0, %s276
      %s278 = sphi 0, %s276
      %s279 = sphi 0, %s278
      %s293 = sphi 0, %s279
      %s297 = sphi 0, %s297
      %s299 = sphi 0, %s297
      %s300 = sphi 0, %s299
      %s314 = sphi 0, %s300
      %s318 = sphi 0, %s318
      %s320 = sphi 0, %s318
      %s321 = sphi 0, %s320
      %s335 = sphi 0, %s321
      %s339 = sphi 0, %s339
      %s341 = sphi 0, %s339
      %s342 = sphi 0, %s341
      %s356 = sphi 0, %s342
      %s360 = sphi 0, %s360
      %s362 = sphi 0, %s360
      %s363 = sphi 0, %s362
      %s377 = sphi 0, %s363
      %s385 = sphi 0, %s387
      %s388 = sphi 0, %s385
      %s389 = sphi 0, %s388
      %s405 = sphi 0, %s389
      %s413 = sphi 0, %s415
      %s416 = sphi 0, %s413
      %s417 = sphi 0, %s416
      %s433 = sphi 0, %s417
    $region4: #{tpu_custom_call.1} parent=1 // loop_header_branch
      %32 = sbr.rel (%p30) target = $region8
    $region5: #{tpu_custom_call.1} parent=1 // loop_body
      %s34 = ssub.s32 %s29, 1
      %s35 = ssub.s32 %s29, 2
      %s42 = sadd.s32 1, %s37
      %p43 = scmp.ge.s32.totalorder %s42, 2
      %s44 = scalar_select %p43, 0, %s42
      %s45 = sadd.s32 1, %s36
      %s46 = scalar_select %p43, %s45, %s36
      %p47 = scmp.ge.s32.totalorder %s46, 2
      %s48 = scalar_select %p47, 0, %s46
      %s49 = ssub.s32 %s36, %s48
      %s50 = ssub.s32 %s37, %s44
      %s51 = sor.u32 %s49, %s50
      %p52 = scmp.eq.s32.totalorder %s51, 0
      %s54 = sadd.s32 %s53, 1
      %s55 = scalar_select %p52, %s53, %s54
      %p58 = pneg %p52
      %p59 = scmp.eq.s32.totalorder %s29, 3
      %p60 = por %p58, %p59
      %p61 = scmp.ne.s32.totalorder %s53, %s56
      %p62 = scmp.eq.s32.totalorder %s29, 0
      %p63 = por %p61, %p62
      %p64 = scmp.ne.s32.totalorder %s53, %s56
      %p65 = scmp.eq.s32.totalorder %s34, 3
      %p66 = por %p64, %p65
      %p67 = scmp.ne.s32.totalorder %s56, %s57
      %p68 = scmp.eq.s32.totalorder %s34, 0
      %p69 = por %p67, %p68
      %p70 = scmp.ne.s32.totalorder %s56, %s57
      %p71 = scmp.eq.s32.totalorder %s35, 3
      %p72 = por %p70, %p71
      %p74 = scmp.ne.s32.totalorder %s57, %s73
      %p75 = scmp.eq.s32.totalorder %s35, 0
      %p76 = por %p74, %p75
      %s77 = ssub.s32 %s36, %s48
      %p78 = scmp.eq.s32.totalorder %s77, 0
      %s80 = sadd.s32 %s79, 1
      %s81 = scalar_select %p78, %s79, %s80
      %p84 = pneg %p78
      %p85 = scmp.eq.s32.totalorder %s29, 3
      %p86 = por %p84, %p85
      %p87 = scmp.ne.s32.totalorder %s79, %s82
      %p88 = scmp.eq.s32.totalorder %s29, 0
      %p89 = por %p87, %p88
      %p90 = scmp.ne.s32.totalorder %s79, %s82
      %p91 = scmp.eq.s32.totalorder %s34, 3
      %p92 = por %p90, %p91
      %p93 = scmp.ne.s32.totalorder %s82, %s83
      %p94 = scmp.eq.s32.totalorder %s34, 0
      %p95 = por %p93, %p94
      %p96 = scmp.ne.s32.totalorder %s82, %s83
      %p97 = scmp.eq.s32.totalorder %s35, 3
      %p98 = por %p96, %p97
      %p100 = scmp.ne.s32.totalorder %s83, %s99
      %p101 = scmp.eq.s32.totalorder %s35, 0
      %p102 = por %p100, %p101
      %s103 = ssub.s32 %s36, %s48
      %p104 = scmp.eq.s32.totalorder %s103, 0
      %s106 = sadd.s32 %s105, 1
      %s107 = scalar_select %p104, %s105, %s106
      %p110 = pneg %p104
      %p111 = scmp.eq.s32.totalorder %s29, 3
      %p112 = por %p110, %p111
      %p113 = scmp.ne.s32.totalorder %s105, %s108
      %p114 = scmp.eq.s32.totalorder %s29, 0
      %p115 = por %p113, %p114
      %p116 = scmp.ne.s32.totalorder %s105, %s108
      %p117 = scmp.eq.s32.totalorder %s34, 3
      %p118 = por %p116, %p117
      %p119 = scmp.ne.s32.totalorder %s108, %s109
      %p120 = scmp.eq.s32.totalorder %s34, 0
      %p121 = por %p119, %p120
      %p122 = scmp.ne.s32.totalorder %s108, %s109
      %p123 = scmp.eq.s32.totalorder %s35, 3
      %p124 = por %p122, %p123
      %p126 = scmp.ne.s32.totalorder %s109, %s125
      %p127 = scmp.eq.s32.totalorder %s35, 0
      %p128 = por %p126, %p127
      %s130 = sadd.s32 %s129, 1
      %p133 = scmp.eq.s32.totalorder %s29, 3
      %p134 = scmp.ne.s32.totalorder %s129, %s131
      %p135 = scmp.eq.s32.totalorder %s29, 0
      %p136 = por %p134, %p135
      %p137 = scmp.ne.s32.totalorder %s129, %s131
      %p138 = scmp.eq.s32.totalorder %s34, 3
      %p139 = por %p137, %p138
      %p140 = scmp.ne.s32.totalorder %s131, %s132
      %p141 = scmp.eq.s32.totalorder %s34, 0
      %p142 = por %p140, %p141
      %p143 = scmp.ne.s32.totalorder %s131, %s132
      %p144 = scmp.eq.s32.totalorder %s35, 3
      %p145 = por %p143, %p144
      %p147 = scmp.ne.s32.totalorder %s132, %s146
      %p148 = scmp.eq.s32.totalorder %s35, 0
      %p149 = por %p147, %p148
      %s151 = sadd.s32 %s150, 1
      %p154 = scmp.eq.s32.totalorder %s29, 3
      %p155 = scmp.ne.s32.totalorder %s150, %s152
      %p156 = scmp.eq.s32.totalorder %s29, 0
      %p157 = por %p155, %p156
      %p158 = scmp.ne.s32.totalorder %s150, %s152
      %p159 = scmp.eq.s32.totalorder %s34, 3
      %p160 = por %p158, %p159
      %p161 = scmp.ne.s32.totalorder %s152, %s153
      %p162 = scmp.eq.s32.totalorder %s34, 0
      %p163 = por %p161, %p162
      %p164 = scmp.ne.s32.totalorder %s152, %s153
      %p165 = scmp.eq.s32.totalorder %s35, 3
      %p166 = por %p164, %p165
      %p168 = scmp.ne.s32.totalorder %s153, %s167
      %p169 = scmp.eq.s32.totalorder %s35, 0
      %p170 = por %p168, %p169
      %s172 = sadd.s32 %s171, 1
      %p175 = scmp.eq.s32.totalorder %s29, 3
      %p176 = scmp.ne.s32.totalorder %s171, %s173
      %p177 = scmp.eq.s32.totalorder %s29, 0
      %p178 = por %p176, %p177
      %p179 = scmp.ne.s32.totalorder %s171, %s173
      %p180 = scmp.eq.s32.totalorder %s34, 3
      %p181 = por %p179, %p180
      %p182 = scmp.ne.s32.totalorder %s173, %s174
      %p183 = scmp.eq.s32.totalorder %s34, 0
      %p184 = por %p182, %p183
      %p185 = scmp.ne.s32.totalorder %s173, %s174
      %p186 = scmp.eq.s32.totalorder %s35, 3
      %p187 = por %p185, %p186
      %p189 = scmp.ne.s32.totalorder %s174, %s188
      %p190 = scmp.eq.s32.totalorder %s35, 0
      %p191 = por %p189, %p190
      %s193 = sadd.s32 %s192, 1
      %p196 = scmp.eq.s32.totalorder %s29, 3
      %p197 = scmp.ne.s32.totalorder %s192, %s194
      %p198 = scmp.eq.s32.totalorder %s29, 0
      %p199 = por %p197, %p198
      %p200 = scmp.ne.s32.totalorder %s192, %s194
      %p201 = scmp.eq.s32.totalorder %s34, 3
      %p202 = por %p200, %p201
      %p203 = scmp.ne.s32.totalorder %s194, %s195
      %p204 = scmp.eq.s32.totalorder %s34, 0
      %p205 = por %p203, %p204
      %p206 = scmp.ne.s32.totalorder %s194, %s195
      %p207 = scmp.eq.s32.totalorder %s35, 3
      %p208 = por %p206, %p207
      %p210 = scmp.ne.s32.totalorder %s195, %s209
      %p211 = scmp.eq.s32.totalorder %s35, 0
      %p212 = por %p210, %p211
      %s214 = sadd.s32 %s213, 1
      %p217 = scmp.eq.s32.totalorder %s29, 3
      %p218 = scmp.ne.s32.totalorder %s213, %s215
      %p219 = scmp.eq.s32.totalorder %s29, 0
      %p220 = por %p218, %p219
      %p221 = scmp.ne.s32.totalorder %s213, %s215
      %p222 = scmp.eq.s32.totalorder %s34, 3
      %p223 = por %p221, %p222
      %p224 = scmp.ne.s32.totalorder %s215, %s216
      %p225 = scmp.eq.s32.totalorder %s34, 0
      %p226 = por %p224, %p225
      %p227 = scmp.ne.s32.totalorder %s215, %s216
      %p228 = scmp.eq.s32.totalorder %s35, 3
      %p229 = por %p227, %p228
      %p231 = scmp.ne.s32.totalorder %s216, %s230
      %p232 = scmp.eq.s32.totalorder %s35, 0
      %p233 = por %p231, %p232
      %s235 = sadd.s32 %s234, 1
      %p238 = scmp.eq.s32.totalorder %s29, 3
      %p239 = scmp.ne.s32.totalorder %s234, %s236
      %p240 = scmp.eq.s32.totalorder %s29, 0
      %p241 = por %p239, %p240
      %p242 = scmp.ne.s32.totalorder %s234, %s236
      %p243 = scmp.eq.s32.totalorder %s34, 3
      %p244 = por %p242, %p243
      %p245 = scmp.ne.s32.totalorder %s236, %s237
      %p246 = scmp.eq.s32.totalorder %s34, 0
      %p247 = por %p245, %p246
      %p248 = scmp.ne.s32.totalorder %s236, %s237
      %p249 = scmp.eq.s32.totalorder %s35, 3
      %p250 = por %p248, %p249
      %p252 = scmp.ne.s32.totalorder %s237, %s251
      %p253 = scmp.eq.s32.totalorder %s35, 0
      %p254 = por %p252, %p253
      %s256 = sadd.s32 %s255, 1
      %p259 = scmp.eq.s32.totalorder %s29, 3
      %p260 = scmp.ne.s32.totalorder %s255, %s257
      %p261 = scmp.eq.s32.totalorder %s29, 0
      %p262 = por %p260, %p261
      %p263 = scmp.ne.s32.totalorder %s255, %s257
      %p264 = scmp.eq.s32.totalorder %s34, 3
      %p265 = por %p263, %p264
      %p266 = scmp.ne.s32.totalorder %s257, %s258
      %p267 = scmp.eq.s32.totalorder %s34, 0
      %p268 = por %p266, %p267
      %p269 = scmp.ne.s32.totalorder %s257, %s258
      %p270 = scmp.eq.s32.totalorder %s35, 3
      %p271 = por %p269, %p270
      %p273 = scmp.ne.s32.totalorder %s258, %s272
      %p274 = scmp.eq.s32.totalorder %s35, 0
      %p275 = por %p273, %p274
      %s277 = sadd.s32 %s276, 1
      %p280 = scmp.eq.s32.totalorder %s29, 3
      %p281 = scmp.ne.s32.totalorder %s276, %s278
      %p282 = scmp.eq.s32.totalorder %s29, 0
      %p283 = por %p281, %p282
      %p284 = scmp.ne.s32.totalorder %s276, %s278
      %p285 = scmp.eq.s32.totalorder %s34, 3
      %p286 = por %p284, %p285
      %p287 = scmp.ne.s32.totalorder %s278, %s279
      %p288 = scmp.eq.s32.totalorder %s34, 0
      %p289 = por %p287, %p288
      %p290 = scmp.ne.s32.totalorder %s278, %s279
      %p291 = scmp.eq.s32.totalorder %s35, 3
      %p292 = por %p290, %p291
      %p294 = scmp.ne.s32.totalorder %s279, %s293
      %p295 = scmp.eq.s32.totalorder %s35, 0
      %p296 = por %p294, %p295
      %s298 = sadd.s32 %s297, 1
      %p301 = scmp.eq.s32.totalorder %s29, 3
      %p302 = scmp.ne.s32.totalorder %s297, %s299
      %p303 = scmp.eq.s32.totalorder %s29, 0
      %p304 = por %p302, %p303
      %p305 = scmp.ne.s32.totalorder %s297, %s299
      %p306 = scmp.eq.s32.totalorder %s34, 3
      %p307 = por %p305, %p306
      %p308 = scmp.ne.s32.totalorder %s299, %s300
      %p309 = scmp.eq.s32.totalorder %s34, 0
      %p310 = por %p308, %p309
      %p311 = scmp.ne.s32.totalorder %s299, %s300
      %p312 = scmp.eq.s32.totalorder %s35, 3
      %p313 = por %p311, %p312
      %p315 = scmp.ne.s32.totalorder %s300, %s314
      %p316 = scmp.eq.s32.totalorder %s35, 0
      %p317 = por %p315, %p316
      %s319 = sadd.s32 %s318, 1
      %p322 = scmp.eq.s32.totalorder %s29, 3
      %p323 = scmp.ne.s32.totalorder %s318, %s320
      %p324 = scmp.eq.s32.totalorder %s29, 0
      %p325 = por %p323, %p324
      %p326 = scmp.ne.s32.totalorder %s318, %s320
      %p327 = scmp.eq.s32.totalorder %s34, 3
      %p328 = por %p326, %p327
      %p329 = scmp.ne.s32.totalorder %s320, %s321
      %p330 = scmp.eq.s32.totalorder %s34, 0
      %p331 = por %p329, %p330
      %p332 = scmp.ne.s32.totalorder %s320, %s321
      %p333 = scmp.eq.s32.totalorder %s35, 3
      %p334 = por %p332, %p333
      %p336 = scmp.ne.s32.totalorder %s321, %s335
      %p337 = scmp.eq.s32.totalorder %s35, 0
      %p338 = por %p336, %p337
      %s340 = sadd.s32 %s339, 1
      %p343 = scmp.eq.s32.totalorder %s29, 3
      %p344 = scmp.ne.s32.totalorder %s339, %s341
      %p345 = scmp.eq.s32.totalorder %s29, 0
      %p346 = por %p344, %p345
      %p347 = scmp.ne.s32.totalorder %s339, %s341
      %p348 = scmp.eq.s32.totalorder %s34, 3
      %p349 = por %p347, %p348
      %p350 = scmp.ne.s32.totalorder %s341, %s342
      %p351 = scmp.eq.s32.totalorder %s34, 0
      %p352 = por %p350, %p351
      %p353 = scmp.ne.s32.totalorder %s341, %s342
      %p354 = scmp.eq.s32.totalorder %s35, 3
      %p355 = por %p353, %p354
      %p357 = scmp.ne.s32.totalorder %s342, %s356
      %p358 = scmp.eq.s32.totalorder %s35, 0
      %p359 = por %p357, %p358
      %s361 = sadd.s32 %s360, 1
      %p364 = scmp.eq.s32.totalorder %s29, 3
      %p365 = scmp.ne.s32.totalorder %s360, %s362
      %p366 = scmp.eq.s32.totalorder %s29, 0
      %p367 = por %p365, %p366
      %p368 = scmp.ne.s32.totalorder %s360, %s362
      %p369 = scmp.eq.s32.totalorder %s34, 3
      %p370 = por %p368, %p369
      %p371 = scmp.ne.s32.totalorder %s362, %s363
      %p372 = scmp.eq.s32.totalorder %s34, 0
      %p373 = por %p371, %p372
      %p374 = scmp.ne.s32.totalorder %s362, %s363
      %p375 = scmp.eq.s32.totalorder %s35, 3
      %p376 = por %p374, %p375
      %p378 = scmp.ne.s32.totalorder %s363, %s377
      %p379 = scmp.eq.s32.totalorder %s35, 0
      %p380 = por %p378, %p379
      %s381 = ssub.s32 %s36, %s48
      %s382 = ssub.s32 %s37, %s44
      %s383 = sor.u32 %s381, %s382
      %p384 = scmp.eq.s32.totalorder %s383, 0
      %s386 = sadd.s32 %s385, 1
      %s387 = scalar_select %p384, %s385, %s386
      %p390 = pneg %p384
      %p391 = scmp.eq.s32.totalorder %s29, 3
      %p392 = por %p390, %p391
      %p393 = scmp.ne.s32.totalorder %s385, %s388
      %p394 = scmp.eq.s32.totalorder %s29, 0
      %p395 = por %p393, %p394
      %p396 = scmp.ne.s32.totalorder %s385, %s388
      %p397 = scmp.eq.s32.totalorder %s34, 3
      %p398 = por %p396, %p397
      %p399 = scmp.ne.s32.totalorder %s388, %s389
      %p400 = scmp.eq.s32.totalorder %s34, 0
      %p401 = por %p399, %p400
      %p402 = scmp.ne.s32.totalorder %s388, %s389
      %p403 = scmp.eq.s32.totalorder %s35, 3
      %p404 = por %p402, %p403
      %p406 = scmp.ne.s32.totalorder %s389, %s405
      %p407 = scmp.eq.s32.totalorder %s35, 0
      %p408 = por %p406, %p407
      %s409 = ssub.s32 %s36, %s48
      %s410 = ssub.s32 %s37, %s44
      %s411 = sor.u32 %s409, %s410
      %p412 = scmp.eq.s32.totalorder %s411, 0
      %s414 = sadd.s32 %s413, 1
      %s415 = scalar_select %p412, %s413, %s414
      %p418 = pneg %p412
      %p419 = scmp.eq.s32.totalorder %s29, 3
      %p420 = por %p418, %p419
      %p421 = scmp.ne.s32.totalorder %s413, %s416
      %p422 = scmp.eq.s32.totalorder %s29, 0
      %p423 = por %p421, %p422
      %p424 = scmp.ne.s32.totalorder %s413, %s416
      %p425 = scmp.eq.s32.totalorder %s34, 3
      %p426 = por %p424, %p425
      %p427 = scmp.ne.s32.totalorder %s416, %s417
      %p428 = scmp.eq.s32.totalorder %s34, 0
      %p429 = por %p427, %p428
      %p430 = scmp.ne.s32.totalorder %s416, %s417
      %p431 = scmp.eq.s32.totalorder %s35, 3
      %p432 = por %p430, %p431
      %p434 = scmp.ne.s32.totalorder %s417, %s433
      %p435 = scmp.eq.s32.totalorder %s35, 0
      %p436 = por %p434, %p435
      %p437 = scmp.le.s32.totalorder 1, %s29
      %p438 = scmp.lt.s32.totalorder %s29, 5
      %p439 = pnand %p437, %p438
      %p440 = pneg %p439
      // Predicated region
      $region9: #{tpu_custom_call.1} parent=5 // pred_check
        _
      $region10: #{tpu_custom_call.1} parent=5 // pred_check_branch
        %442 = sbr.rel (%p439) target = $region12
      $region11: #{tpu_custom_call.1} parent=5 // pred_region
        %s443 = ssub.s32 %s29, 1
        // Predicated region
        $region13: #{tpu_custom_call.1} parent=11 // pred_check
          %p444 = pneg %p142
        $region14: #{tpu_custom_call.1} parent=11 // pred_check_branch
          %446 = sbr.rel (%p444) target = $region16
        $region15: #{tpu_custom_call.1} parent=11 // pred_region
          _
        $region16: #{tpu_custom_call.1} parent=11 // pred_fallthru
          _
        // Predicated region
        $region17: #{tpu_custom_call.1} parent=11 // pred_check
          %p447 = pneg %p163
        $region18: #{tpu_custom_call.1} parent=11 // pred_check_branch
          %449 = sbr.rel (%p447) target = $region20
        $region19: #{tpu_custom_call.1} parent=11 // pred_region
          _
        $region20: #{tpu_custom_call.1} parent=11 // pred_fallthru
          _
        // Predicated region
        $region21: #{tpu_custom_call.1} parent=11 // pred_check
          %p450 = pneg %p184
        $region22: #{tpu_custom_call.1} parent=11 // pred_check_branch
          %452 = sbr.rel (%p450) target = $region24
        $region23: #{tpu_custom_call.1} parent=11 // pred_region
          _
        $region24: #{tpu_custom_call.1} parent=11 // pred_fallthru
          _
        // Predicated region
        $region25: #{tpu_custom_call.1} parent=11 // pred_check
          %p453 = pneg %p205
        $region26: #{tpu_custom_call.1} parent=11 // pred_check_branch
          %455 = sbr.rel (%p453) target = $region28
        $region27: #{tpu_custom_call.1} parent=11 // pred_region
          _
        $region28: #{tpu_custom_call.1} parent=11 // pred_fallthru
          _
        // Predicated region
        $region29: #{tpu_custom_call.1} parent=11 // pred_check
          %p456 = pneg %p226
        $region30: #{tpu_custom_call.1} parent=11 // pred_check_branch
          %458 = sbr.rel (%p456) target = $region32
        $region31: #{tpu_custom_call.1} parent=11 // pred_region
          _
        $region32: #{tpu_custom_call.1} parent=11 // pred_fallthru
          _
        // Predicated region
        $region33: #{tpu_custom_call.1} parent=11 // pred_check
          %p459 = pneg %p247
        $region34: #{tpu_custom_call.1} parent=11 // pred_check_branch
          %461 = sbr.rel (%p459) target = $region36
        $region35: #{tpu_custom_call.1} parent=11 // pred_region
          _
        $region36: #{tpu_custom_call.1} parent=11 // pred_fallthru
          _
        // Predicated region
        $region37: #{tpu_custom_call.1} parent=11 // pred_check
          %p462 = pneg %p268
        $region38: #{tpu_custom_call.1} parent=11 // pred_check_branch
          %464 = sbr.rel (%p462) target = $region40
        $region39: #{tpu_custom_call.1} parent=11 // pred_region
          _
        $region40: #{tpu_custom_call.1} parent=11 // pred_fallthru
          _
        // Predicated region
        $region41: #{tpu_custom_call.1} parent=11 // pred_check
          %p465 = pneg %p289
        $region42: #{tpu_custom_call.1} parent=11 // pred_check_branch
          %467 = sbr.rel (%p465) target = $region44
        $region43: #{tpu_custom_call.1} parent=11 // pred_region
          _
        $region44: #{tpu_custom_call.1} parent=11 // pred_fallthru
          _
        // Predicated region
        $region45: #{tpu_custom_call.1} parent=11 // pred_check
          %p468 = pneg %p310
        $region46: #{tpu_custom_call.1} parent=11 // pred_check_branch
          %470 = sbr.rel (%p468) target = $region48
        $region47: #{tpu_custom_call.1} parent=11 // pred_region
          _
        $region48: #{tpu_custom_call.1} parent=11 // pred_fallthru
          _
        // Predicated region
        $region49: #{tpu_custom_call.1} parent=11 // pred_check
          %p471 = pneg %p331
        $region50: #{tpu_custom_call.1} parent=11 // pred_check_branch
          %473 = sbr.rel (%p471) target = $region52
        $region51: #{tpu_custom_call.1} parent=11 // pred_region
          _
        $region52: #{tpu_custom_call.1} parent=11 // pred_fallthru
          _
        // Predicated region
        $region53: #{tpu_custom_call.1} parent=11 // pred_check
          %p474 = pneg %p352
        $region54: #{tpu_custom_call.1} parent=11 // pred_check_branch
          %476 = sbr.rel (%p474) target = $region56
        $region55: #{tpu_custom_call.1} parent=11 // pred_region
          _
        $region56: #{tpu_custom_call.1} parent=11 // pred_fallthru
          _
        // Predicated region
        $region57: #{tpu_custom_call.1} parent=11 // pred_check
          %p477 = pneg %p373
        $region58: #{tpu_custom_call.1} parent=11 // pred_check_branch
          %479 = sbr.rel (%p477) target = $region60
        $region59: #{tpu_custom_call.1} parent=11 // pred_region
          _
        $region60: #{tpu_custom_call.1} parent=11 // pred_fallthru
          _
      $region12: #{tpu_custom_call.1} parent=5 // pred_fallthru
        _
      %p480 = scmp.lt.s32.totalorder %s29, 4
      // Predicated region
      $region61: #{tpu_custom_call.1} parent=5 // pred_check
        %p481 = pneg %p480
      $region62: #{tpu_custom_call.1} parent=5 // pred_check_branch
        %483 = sbr.rel (%p481) target = $region64
      $region63: #{tpu_custom_call.1} parent=5 // pred_region
        // Predicated region
        $region65: #{tpu_custom_call.1} parent=63 // pred_check
          %p484 = pneg %p63
        $region66: #{tpu_custom_call.1} parent=63 // pred_check_branch
          %486 = sbr.rel (%p484) target = $region68
        $region67: #{tpu_custom_call.1} parent=63 // pred_region
          %s487 = smul.u32 16, %s37
          %p488 = scmp.lt.s32.totalorder %s36, 1
          %s489 = scalar_select %p488, %s36, 1
          %p490 = scmp.lt.s32.totalorder %s487, 31
          %s491 = scalar_select %p490, %s487, 31
          %s492 = smul.addr %s489, 32
          %s493 = sadd.s32 %s491, %s492
          %s494 = smul.addr %s493, 8
          %s495 = scalar_lea.vmem %s0, %s494
          %s496 = smul.u32 16, %s37
        $region68: #{tpu_custom_call.1} parent=63 // pred_fallthru
          _
        // Predicated region
        $region69: #{tpu_custom_call.1} parent=63 // pred_check
          %p497 = pneg %p89
        $region70: #{tpu_custom_call.1} parent=63 // pred_check_branch
          %499 = sbr.rel (%p497) target = $region72
        $region71: #{tpu_custom_call.1} parent=63 // pred_region
          %p500 = scmp.lt.s32.totalorder %s36, 1
          %s501 = scalar_select %p500, %s36, 1
          %s502 = smul.addr %s501, 32
          %s503 = smul.addr %s502, 4
          %s504 = scalar_lea.vmem %s1, %s503
        $region72: #{tpu_custom_call.1} parent=63 // pred_fallthru
          _
        // Predicated region
        $region73: #{tpu_custom_call.1} parent=63 // pred_check
          %p505 = pneg %p115
        $region74: #{tpu_custom_call.1} parent=63 // pred_check_branch
          %507 = sbr.rel (%p505) target = $region76
        $region75: #{tpu_custom_call.1} parent=63 // pred_region
          %p508 = scmp.lt.s32.totalorder %s36, 1
          %s509 = scalar_select %p508, %s36, 1
          %s510 = smul.addr %s509, 128
          %s511 = smul.addr %s510, 4
          %s512 = scalar_lea.vmem %s2, %s511
        $region76: #{tpu_custom_call.1} parent=63 // pred_fallthru
          _
      $region64: #{tpu_custom_call.1} parent=5 // pred_fallthru
        _
      %p513 = scmp.le.s32.totalorder 1, %s29
      %p514 = scmp.lt.s32.totalorder %s29, 5
      %p515 = pnand %p513, %p514
      %p516 = pneg %p515
      // Predicated region
      $region77: #{tpu_custom_call.1} parent=5 // pred_check
        _
      $region78: #{tpu_custom_call.1} parent=5 // pred_check_branch
        %518 = sbr.rel (%p515) target = $region80
      $region79: #{tpu_custom_call.1} parent=5 // pred_region
        %s519 = ssub.s32 %s29, 1
        %s520 = smul.u32 16, %s39
        %p521 = scmp.lt.s32.totalorder %s38, 1
        %s522 = scalar_select %p521, %s38, 1
        %p523 = scmp.lt.s32.totalorder %s520, 31
        %s524 = scalar_select %p523, %s520, 31
        %s525 = smul.addr %s522, 32
        %s526 = sadd.s32 %s524, %s525
        %s527 = smul.addr %s526, 8
        %s528 = scalar_lea.vmem %s0, %s527
        %p529 = pneg %p69
        %p530 = pneg %p66
        %p531 = scmp.lt.s32.totalorder %s38, 1
        %s532 = scalar_select %p531, %s38, 1
        %s533 = smul.addr %s532, 32
        %s534 = smul.addr %s533, 4
        %s535 = scalar_lea.vmem %s1, %s534
        %p536 = pneg %p95
        %p537 = pneg %p92
        %p538 = scmp.lt.s32.totalorder %s38, 1
        %s539 = scalar_select %p538, %s38, 1
        %s540 = smul.addr %s539, 128
        %s541 = smul.addr %s540, 4
        %s542 = scalar_lea.vmem %s2, %s541
        %p543 = pneg %p121
        %p544 = pneg %p118
        %p545 = pneg %p142
        %p546 = pneg %p139
        %p547 = pneg %p163
        %p548 = pneg %p160
        %p549 = pneg %p184
        %p550 = pneg %p181
        %p551 = pneg %p205
        %p552 = pneg %p202
        %p553 = pneg %p226
        %p554 = pneg %p223
        %p555 = pneg %p247
        %p556 = pneg %p244
        %p557 = pneg %p268
        %p558 = pneg %p265
        %p559 = pneg %p289
        %p560 = pneg %p286
        %p561 = pneg %p310
        %p562 = pneg %p307
        %p563 = pneg %p331
        %p564 = pneg %p328
        %p565 = pneg %p352
        %p566 = pneg %p349
        %p567 = pneg %p373
        %p568 = pneg %p370
        %p569 = pneg %p401
        %p570 = pneg %p398
        %s571 = sand.u32 %s388, 1
        %s572 = scalar_lea.sflag [#allocation3], %s571
        %s573 = sand.u32 %s388, 1
        %s574 = smul.addr %s573, 128
        %s575 = scalar_lea.vmem [#allocation2], %s574
        %p576 = pneg %p429
        %p577 = pneg %p426
        %s578 = sand.u32 %s416, 1
        %s579 = scalar_lea.sflag [#allocation5], %s578
        %s580 = sand.u32 %s416, 1
        %s581 = smul.addr %s580, 256
        %s582 = scalar_lea.vmem [#allocation4], %s581
        %s583 = smul.u32 16, %s39
        %p584 = scmp.lt.s32.totalorder %s38, 1
        %s585 = scalar_select %p584, %s38, 1
        %p586 = scmp.lt.s32.totalorder %s583, 31
        %s587 = scalar_select %p586, %s583, 31
        %s588 = smul.addr %s585, 32
        %s589 = sadd.s32 %s587, %s588
        %s590 = smul.addr %s589, 8
        %s591 = scalar_lea.vmem %s0, %s590
        %s592 = smul.u32 16, %s39
        %p593 = scmp.lt.s32.totalorder %s38, 1
        %s594 = scalar_select %p593, %s38, 1
        %s595 = smul.addr %s594, 32
        %s596 = smul.addr %s595, 4
        %s597 = scalar_lea.vmem %s1, %s596
        %p598 = scmp.lt.s32.totalorder %s38, 1
        %s599 = scalar_select %p598, %s38, 1
        %s600 = smul.addr %s599, 128
        %s601 = smul.addr %s600, 4
        %s602 = scalar_lea.vmem %s2, %s601
        %s603 = smul.u32 16, %s39
        %s604 = smul.u32 16, %s39
        %v606 = vld [vmem:[%s591] sm:$0xff]
        %v607 = vld [vmem:[%s591 + $0x8] sm:$0xff]
        %v608 = vld [vmem:[%s591 + $0x10] sm:$0xff]
        %v609 = vld [vmem:[%s591 + $0x18] sm:$0xff]
        %v610 = vld [vmem:[%s591 + $0x20] sm:$0xff]
        %v611 = vld [vmem:[%s591 + $0x28] sm:$0xff]
        %v612 = vld [vmem:[%s591 + $0x30] sm:$0xff]
        %v613 = vld [vmem:[%s591 + $0x38] sm:$0xff]
        %v614 = vld [vmem:[%s591 + $0x40] sm:$0xff]
        %v615 = vld [vmem:[%s591 + $0x48] sm:$0xff]
        %v616 = vld [vmem:[%s591 + $0x50] sm:$0xff]
        %v617 = vld [vmem:[%s591 + $0x58] sm:$0xff]
        %v618 = vld [vmem:[%s591 + $0x60] sm:$0xff]
        %v619 = vld [vmem:[%s591 + $0x68] sm:$0xff]
        %v620 = vld [vmem:[%s591 + $0x70] sm:$0xff]
        %v621 = vld [vmem:[%s591 + $0x78] sm:$0xff]
        %v622 = vpack.c.bf16 %v607, %v606
        %v623 = vpack.c.bf16 %v609, %v608
        %v624 = vpack.c.bf16 %v611, %v610
        %v625 = vpack.c.bf16 %v613, %v612
        %v626 = vpack.c.bf16 %v615, %v614
        %v627 = vpack.c.bf16 %v617, %v616
        %v628 = vpack.c.bf16 %v619, %v618
        %v629 = vpack.c.bf16 %v621, %v620
        %v630 = vld [vmem:[%s3] sm:$0xf]
        %v631 = vld [vmem:[%s3 + $0x4] sm:$0xf]
        %v632 = vld [vmem:[%s3 + $0x8] sm:$0xf]
        %v633 = vld [vmem:[%s3 + $0xc] sm:$0xf]
        %v634 = vld [vmem:[%s3 + $0x10] sm:$0xf]
        %v635 = vld [vmem:[%s3 + $0x14] sm:$0xf]
        %v636 = vld [vmem:[%s3 + $0x18] sm:$0xf]
        %v637 = vld [vmem:[%s3 + $0x1c] sm:$0xf]
        %v638 = vld [vmem:[%s3 + $0x20] sm:$0xf]
        %v639 = vld [vmem:[%s3 + $0x24] sm:$0xf]
        %v640 = vld [vmem:[%s3 + $0x28] sm:$0xf]
        %v641 = vld [vmem:[%s3 + $0x2c] sm:$0xf]
        %v642 = vld [vmem:[%s3 + $0x30] sm:$0xf]
        %v643 = vld [vmem:[%s3 + $0x34] sm:$0xf]
        %v644 = vld [vmem:[%s3 + $0x38] sm:$0xf]
        %v645 = vld [vmem:[%s3 + $0x3c] sm:$0xf]
        %v646 = vld [vmem:[%s4] sm:$0x1]
        %v648 = vperm.slane %v646, 0
        %v666 = vunpack.c.l.b16 %v630
        %v667 = vunpack.c.l.b16 %v631
        %v668 = vunpack.c.l.b16 %v632
        %v669 = vunpack.c.l.b16 %v633
        %v670 = vunpack.c.l.b16 %v634
        %v671 = vunpack.c.l.b16 %v635
        %v672 = vunpack.c.l.b16 %v636
        %v673 = vunpack.c.l.b16 %v637
        %v674 = vunpack.c.l.b16 %v638
        %v675 = vunpack.c.l.b16 %v639
        %v676 = vunpack.c.l.b16 %v640
        %v677 = vunpack.c.l.b16 %v641
        %v678 = vunpack.c.l.b16 %v642
        %v679 = vunpack.c.l.b16 %v643
        %v680 = vunpack.c.l.b16 %v644
        %v681 = vunpack.c.l.b16 %v645
        %v682 = vpack.c.b16 %v667, %v666
        %v683 = vpack.c.b16 %v669, %v668
        %v684 = vpack.c.b16 %v671, %v670
        %v685 = vpack.c.b16 %v673, %v672
        %v686 = vpack.c.b16 %v675, %v674
        %v687 = vpack.c.b16 %v677, %v676
        %v688 = vpack.c.b16 %v679, %v678
        %v689 = vpack.c.b16 %v681, %v680
        %698 = vmatpush.bf16.msra.mxu0 %v689
        %699 = vmatpush.bf16.msra.mxu0 %v688
        %700 = vmatpush.bf16.msra.mxu0 %v687
        %701 = vmatpush.bf16.msra.mxu0 %v686
        %702 = vmatpush.bf16.msra.mxu0 %v685
        %703 = vmatpush.bf16.msra.mxu0 %v684
        %704 = vmatpush.bf16.msra.mxu0 %v683
        %705 = vmatpush.bf16.msra.mxu0 %v682
        %706 = vmatmul.bf16.gmra.mxu0 %v622
        %v707 = vpop.f32.mrf.mxu0
        %v708 = vadd.f32 %v648, %v707
        %v709 = vpop.f32.mrf.mxu0
        %v710 = vadd.f32 %v648, %v709
        %711 = vmatmul.bf16.gmra.mxu0 %v623
        %v712 = vpop.f32.mrf.mxu0
        %v713 = vadd.f32 %v648, %v712
        %v714 = vpop.f32.mrf.mxu0
        %v715 = vadd.f32 %v648, %v714
        %716 = vmatmul.bf16.gmra.mxu0 %v624
        %v717 = vpop.f32.mrf.mxu0
        %v718 = vadd.f32 %v648, %v717
        %v719 = vpop.f32.mrf.mxu0
        %v720 = vadd.f32 %v648, %v719
        %721 = vmatmul.bf16.gmra.mxu0 %v625
        %v722 = vpop.f32.mrf.mxu0
        %v723 = vadd.f32 %v648, %v722
        %v724 = vpop.f32.mrf.mxu0
        %v725 = vadd.f32 %v648, %v724
        %726 = vmatmul.bf16.gmra.mxu0 %v626
        %v727 = vpop.f32.mrf.mxu0
        %v728 = vadd.f32 %v648, %v727
        %v729 = vpop.f32.mrf.mxu0
        %v730 = vadd.f32 %v648, %v729
        %731 = vmatmul.bf16.gmra.mxu0 %v627
        %v732 = vpop.f32.mrf.mxu0
        %v733 = vadd.f32 %v648, %v732
        %v734 = vpop.f32.mrf.mxu0
        %v735 = vadd.f32 %v648, %v734
        %736 = vmatmul.bf16.gmra.mxu0 %v628
        %v737 = vpop.f32.mrf.mxu0
        %v738 = vadd.f32 %v648, %v737
        %v739 = vpop.f32.mrf.mxu0
        %v740 = vadd.f32 %v648, %v739
        %741 = vmatmul.bf16.gmra.mxu0 %v629
        %v742 = vpop.f32.mrf.mxu0
        %v743 = vadd.f32 %v648, %v742
        %v744 = vpop.f32.mrf.mxu0
        %v745 = vadd.f32 %v648, %v744
        %746 = vdwg.mxu0
        %763 = vrot.lane.b32.xlu0 %v708, 96
        %v764 = vpop.permute.xlu0 %763
        %765 = vrot.lane.b32.xlu0 %v710, 96
        %v766 = vpop.permute.xlu0 %765
        %767 = vrot.lane.b32.xlu0 %v713, 96
        %v768 = vpop.permute.xlu0 %767
        %769 = vrot.lane.b32.xlu0 %v715, 96
        %v770 = vpop.permute.xlu0 %769
        %771 = vrot.lane.b32.xlu0 %v718, 96
        %v772 = vpop.permute.xlu0 %771
        %773 = vrot.lane.b32.xlu0 %v720, 96
        %v774 = vpop.permute.xlu0 %773
        %775 = vrot.lane.b32.xlu0 %v723, 96
        %v776 = vpop.permute.xlu0 %775
        %777 = vrot.lane.b32.xlu0 %v725, 96
        %v778 = vpop.permute.xlu0 %777
        %779 = vrot.lane.b32.xlu0 %v728, 96
        %v780 = vpop.permute.xlu0 %779
        %781 = vrot.lane.b32.xlu0 %v730, 96
        %v782 = vpop.permute.xlu0 %781
        %783 = vrot.lane.b32.xlu0 %v733, 96
        %v784 = vpop.permute.xlu0 %783
        %785 = vrot.lane.b32.xlu0 %v735, 96
        %v786 = vpop.permute.xlu0 %785
        %787 = vrot.lane.b32.xlu0 %v738, 96
        %v788 = vpop.permute.xlu0 %787
        %789 = vrot.lane.b32.xlu0 %v740, 96
        %v790 = vpop.permute.xlu0 %789
        %791 = vrot.lane.b32.xlu0 %v743, 96
        %v792 = vpop.permute.xlu0 %791
        %793 = vrot.lane.b32.xlu0 %v745, 96
        %v794 = vpop.permute.xlu0 %793
        %811 = vrot.lane.b32.xlu0 %v708, 64
        %v812 = vpop.permute.xlu0 %811
        %813 = vrot.lane.b32.xlu0 %v710, 64
        %v814 = vpop.permute.xlu0 %813
        %815 = vrot.lane.b32.xlu0 %v713, 64
        %v816 = vpop.permute.xlu0 %815
        %817 = vrot.lane.b32.xlu0 %v715, 64
        %v818 = vpop.permute.xlu0 %817
        %819 = vrot.lane.b32.xlu0 %v718, 64
        %v820 = vpop.permute.xlu0 %819
        %821 = vrot.lane.b32.xlu0 %v720, 64
        %v822 = vpop.permute.xlu0 %821
        %823 = vrot.lane.b32.xlu0 %v723, 64
        %v824 = vpop.permute.xlu0 %823
        %825 = vrot.lane.b32.xlu0 %v725, 64
        %v826 = vpop.permute.xlu0 %825
        %827 = vrot.lane.b32.xlu0 %v728, 64
        %v828 = vpop.permute.xlu0 %827
        %829 = vrot.lane.b32.xlu0 %v730, 64
        %v830 = vpop.permute.xlu0 %829
        %831 = vrot.lane.b32.xlu0 %v733, 64
        %v832 = vpop.permute.xlu0 %831
        %833 = vrot.lane.b32.xlu0 %v735, 64
        %v834 = vpop.permute.xlu0 %833
        %835 = vrot.lane.b32.xlu0 %v738, 64
        %v836 = vpop.permute.xlu0 %835
        %837 = vrot.lane.b32.xlu0 %v740, 64
        %v838 = vpop.permute.xlu0 %837
        %839 = vrot.lane.b32.xlu0 %v743, 64
        %v840 = vpop.permute.xlu0 %839
        %841 = vrot.lane.b32.xlu0 %v745, 64
        %v842 = vpop.permute.xlu0 %841
        %859 = vrot.lane.b32.xlu0 %v708, 32
        %v860 = vpop.permute.xlu0 %859
        %861 = vrot.lane.b32.xlu0 %v710, 32
        %v862 = vpop.permute.xlu0 %861
        %863 = vrot.lane.b32.xlu0 %v713, 32
        %v864 = vpop.permute.xlu0 %863
        %865 = vrot.lane.b32.xlu0 %v715, 32
        %v866 = vpop.permute.xlu0 %865
        %867 = vrot.lane.b32.xlu0 %v718, 32
        %v868 = vpop.permute.xlu0 %867
        %869 = vrot.lane.b32.xlu0 %v720, 32
        %v870 = vpop.permute.xlu0 %869
        %871 = vrot.lane.b32.xlu0 %v723, 32
        %v872 = vpop.permute.xlu0 %871
        %873 = vrot.lane.b32.xlu0 %v725, 32
        %v874 = vpop.permute.xlu0 %873
        %875 = vrot.lane.b32.xlu0 %v728, 32
        %v876 = vpop.permute.xlu0 %875
        %877 = vrot.lane.b32.xlu0 %v730, 32
        %v878 = vpop.permute.xlu0 %877
        %879 = vrot.lane.b32.xlu0 %v733, 32
        %v880 = vpop.permute.xlu0 %879
        %881 = vrot.lane.b32.xlu0 %v735, 32
        %v882 = vpop.permute.xlu0 %881
        %883 = vrot.lane.b32.xlu0 %v738, 32
        %v884 = vpop.permute.xlu0 %883
        %885 = vrot.lane.b32.xlu0 %v740, 32
        %v886 = vpop.permute.xlu0 %885
        %887 = vrot.lane.b32.xlu0 %v743, 32
        %v888 = vpop.permute.xlu0 %887
        %889 = vrot.lane.b32.xlu0 %v745, 32
        %v890 = vpop.permute.xlu0 %889
        %v907 = vpack.c.bf16 %v708, %v708
        %v908 = vpack.c.bf16 %v710, %v710
        %v909 = vpack.c.bf16 %v713, %v713
        %v910 = vpack.c.bf16 %v715, %v715
        %v911 = vpack.c.bf16 %v718, %v718
        %v912 = vpack.c.bf16 %v720, %v720
        %v913 = vpack.c.bf16 %v723, %v723
        %v914 = vpack.c.bf16 %v725, %v725
        %v915 = vpack.c.bf16 %v728, %v728
        %v916 = vpack.c.bf16 %v730, %v730
        %v917 = vpack.c.bf16 %v733, %v733
        %v918 = vpack.c.bf16 %v735, %v735
        %v919 = vpack.c.bf16 %v738, %v738
        %v920 = vpack.c.bf16 %v740, %v740
        %v921 = vpack.c.bf16 %v743, %v743
        %v922 = vpack.c.bf16 %v745, %v745
        %v923 = vpack.c.bf16 %v764, %v764
        %v924 = vpack.c.bf16 %v766, %v766
        %v925 = vpack.c.bf16 %v768, %v768
        %v926 = vpack.c.bf16 %v770, %v770
        %v927 = vpack.c.bf16 %v772, %v772
        %v928 = vpack.c.bf16 %v774, %v774
        %v929 = vpack.c.bf16 %v776, %v776
        %v930 = vpack.c.bf16 %v778, %v778
        %v931 = vpack.c.bf16 %v780, %v780
        %v932 = vpack.c.bf16 %v782, %v782
        %v933 = vpack.c.bf16 %v784, %v784
        %v934 = vpack.c.bf16 %v786, %v786
        %v935 = vpack.c.bf16 %v788, %v788
        %v936 = vpack.c.bf16 %v790, %v790
        %v937 = vpack.c.bf16 %v792, %v792
        %v938 = vpack.c.bf16 %v794, %v794
        %v939 = vpack.c.bf16 %v812, %v812
        %v940 = vpack.c.bf16 %v814, %v814
        %v941 = vpack.c.bf16 %v816, %v816
        %v942 = vpack.c.bf16 %v818, %v818
        %v943 = vpack.c.bf16 %v820, %v820
        %v944 = vpack.c.bf16 %v822, %v822
        %v945 = vpack.c.bf16 %v824, %v824
        %v946 = vpack.c.bf16 %v826, %v826
        %v947 = vpack.c.bf16 %v828, %v828
        %v948 = vpack.c.bf16 %v830, %v830
        %v949 = vpack.c.bf16 %v832, %v832
        %v950 = vpack.c.bf16 %v834, %v834
        %v951 = vpack.c.bf16 %v836, %v836
        %v952 = vpack.c.bf16 %v838, %v838
        %v953 = vpack.c.bf16 %v840, %v840
        %v954 = vpack.c.bf16 %v842, %v842
        %v955 = vpack.c.bf16 %v860, %v860
        %v956 = vpack.c.bf16 %v862, %v862
        %v957 = vpack.c.bf16 %v864, %v864
        %v958 = vpack.c.bf16 %v866, %v866
        %v959 = vpack.c.bf16 %v868, %v868
        %v960 = vpack.c.bf16 %v870, %v870
        %v961 = vpack.c.bf16 %v872, %v872
        %v962 = vpack.c.bf16 %v874, %v874
        %v963 = vpack.c.bf16 %v876, %v876
        %v964 = vpack.c.bf16 %v878, %v878
        %v965 = vpack.c.bf16 %v880, %v880
        %v966 = vpack.c.bf16 %v882, %v882
        %v967 = vpack.c.bf16 %v884, %v884
        %v968 = vpack.c.bf16 %v886, %v886
        %v969 = vpack.c.bf16 %v888, %v888
        %v970 = vpack.c.bf16 %v890, %v890
        %v971 = vld [vmem:[%s597] sm:$0xff]
        %v972 = vld [vmem:[%s597 + $0x8] sm:$0xff]
        %v973 = vld [vmem:[%s597 + $0x10] sm:$0xff]
        %v974 = vld [vmem:[%s597 + $0x18] sm:$0xff]
        %v975 = vld [vmem:[%s597 + $0x20] sm:$0xff]
        %v976 = vld [vmem:[%s597 + $0x28] sm:$0xff]
        %v977 = vld [vmem:[%s597 + $0x30] sm:$0xff]
        %v978 = vld [vmem:[%s597 + $0x38] sm:$0xff]
        %v979 = vld [vmem:[%s597 + $0x40] sm:$0xff]
        %v980 = vld [vmem:[%s597 + $0x48] sm:$0xff]
        %v981 = vld [vmem:[%s597 + $0x50] sm:$0xff]
        %v982 = vld [vmem:[%s597 + $0x58] sm:$0xff]
        %v983 = vld [vmem:[%s597 + $0x60] sm:$0xff]
        %v984 = vld [vmem:[%s597 + $0x68] sm:$0xff]
        %v985 = vld [vmem:[%s597 + $0x70] sm:$0xff]
        %v986 = vld [vmem:[%s597 + $0x78] sm:$0xff]
        %v1003 = vunpack.c.l.b16 %v907
        %v1004 = vunpack.c.l.b16 %v908
        %v1005 = vunpack.c.l.b16 %v909
        %v1006 = vunpack.c.l.b16 %v910
        %v1007 = vunpack.c.l.b16 %v911
        %v1008 = vunpack.c.l.b16 %v912
        %v1009 = vunpack.c.l.b16 %v913
        %v1010 = vunpack.c.l.b16 %v914
        %v1011 = vunpack.c.l.b16 %v915
        %v1012 = vunpack.c.l.b16 %v916
        %v1013 = vunpack.c.l.b16 %v917
        %v1014 = vunpack.c.l.b16 %v918
        %v1015 = vunpack.c.l.b16 %v919
        %v1016 = vunpack.c.l.b16 %v920
        %v1017 = vunpack.c.l.b16 %v921
        %v1018 = vunpack.c.l.b16 %v922
        %v1019 = vpack.c.b16 %v1004, %v1003
        %v1020 = vpack.c.b16 %v1006, %v1005
        %v1021 = vpack.c.b16 %v1008, %v1007
        %v1022 = vpack.c.b16 %v1010, %v1009
        %v1023 = vpack.c.b16 %v1012, %v1011
        %v1024 = vpack.c.b16 %v1014, %v1013
        %v1025 = vpack.c.b16 %v1016, %v1015
        %v1026 = vpack.c.b16 %v1018, %v1017
        %v1031 = vunpack.c.l.b16 %v971
        %v1032 = vunpack.c.h.b16 %v971
        %v1033 = vunpack.c.l.b16 %v972
        %v1034 = vunpack.c.h.b16 %v972
        %v1035 = vunpack.c.l.b16 %v973
        %v1036 = vunpack.c.h.b16 %v973
        %v1037 = vunpack.c.l.b16 %v974
        %v1038 = vunpack.c.h.b16 %v974
        %v1039 = vpack.c.b16 %v1033, %v1031
        %v1040 = vpack.c.b16 %v1034, %v1032
        %v1041 = vpack.c.b16 %v1037, %v1035
        %v1042 = vpack.c.b16 %v1038, %v1036
        %vm1047 = vcmask 261120
        %v1049 = vsel %vm1047, %v1019, 0
        %v1052 = vsel %vm1047, %v1020, 0
        %v1055 = vsel %vm1047, %v1021, 0
        %v1058 = vsel %vm1047, %v1022, 0
        %v1061 = vsel %vm1047, %v1023, 0
        %v1064 = vsel %vm1047, %v1024, 0
        %v1067 = vsel %vm1047, %v1025, 0
        %v1070 = vsel %vm1047, %v1026, 0
        %1072 = vmatpush.bf16.msra.mxu0 0
        %1073 = vmatpush.bf16.msra.mxu0 0
        %1074 = vmatpush.bf16.msra.mxu0 0
        %1075 = vmatpush.bf16.msra.mxu0 0
        %1076 = vmatpush.bf16.msra.mxu0 0
        %1077 = vmatpush.bf16.msra.mxu0 0
        %1078 = vmatpush.bf16.msra.mxu0 %v1041
        %1079 = vmatpush.bf16.msra.mxu0 %v1039
        %1080 = vmatmul.bf16.gmra.mxu0 %v1049
        %v1081 = vpop.f32.mrf.mxu0
        %v1082 = vadd.f32 0.0, %v1081
        %v1083 = vpop.f32.mrf.mxu0
        %v1084 = vadd.f32 0.0, %v1083
        %1085 = vmatmul.bf16.gmra.mxu0 %v1052
        %v1086 = vpop.f32.mrf.mxu0
        %v1087 = vadd.f32 0.0, %v1086
        %v1088 = vpop.f32.mrf.mxu0
        %v1089 = vadd.f32 0.0, %v1088
        %1090 = vmatmul.bf16.gmra.mxu0 %v1055
        %v1091 = vpop.f32.mrf.mxu0
        %v1092 = vadd.f32 0.0, %v1091
        %v1093 = vpop.f32.mrf.mxu0
        %v1094 = vadd.f32 0.0, %v1093
        %1095 = vmatmul.bf16.gmra.mxu0 %v1058
        %v1096 = vpop.f32.mrf.mxu0
        %v1097 = vadd.f32 0.0, %v1096
        %v1098 = vpop.f32.mrf.mxu0
        %v1099 = vadd.f32 0.0, %v1098
        %1100 = vmatmul.bf16.gmra.mxu0 %v1061
        %v1101 = vpop.f32.mrf.mxu0
        %v1102 = vadd.f32 0.0, %v1101
        %v1103 = vpop.f32.mrf.mxu0
        %v1104 = vadd.f32 0.0, %v1103
        %1105 = vmatmul.bf16.gmra.mxu0 %v1064
        %v1106 = vpop.f32.mrf.mxu0
        %v1107 = vadd.f32 0.0, %v1106
        %v1108 = vpop.f32.mrf.mxu0
        %v1109 = vadd.f32 0.0, %v1108
        %1110 = vmatmul.bf16.gmra.mxu0 %v1067
        %v1111 = vpop.f32.mrf.mxu0
        %v1112 = vadd.f32 0.0, %v1111
        %v1113 = vpop.f32.mrf.mxu0
        %v1114 = vadd.f32 0.0, %v1113
        %1115 = vmatmul.bf16.gmra.mxu0 %v1070
        %v1116 = vpop.f32.mrf.mxu0
        %v1117 = vadd.f32 0.0, %v1116
        %v1118 = vpop.f32.mrf.mxu0
        %v1119 = vadd.f32 0.0, %v1118
        %1120 = vdwg.mxu0
        %1121 = vmatpush.bf16.msra.mxu0 0
        %1122 = vmatpush.bf16.msra.mxu0 0
        %1123 = vmatpush.bf16.msra.mxu0 0
        %1124 = vmatpush.bf16.msra.mxu0 0
        %1125 = vmatpush.bf16.msra.mxu0 0
        %1126 = vmatpush.bf16.msra.mxu0 0
        %1127 = vmatpush.bf16.msra.mxu0 %v1042
        %1128 = vmatpush.bf16.msra.mxu0 %v1040
        %1129 = vmatmul.bf16.gmra.mxu0 %v1049
        %v1130 = vpop.f32.mrf.mxu0
        %v1131 = vadd.f32 0.0, %v1130
        %v1132 = vpop.f32.mrf.mxu0
        %v1133 = vadd.f32 0.0, %v1132
        %1134 = vmatmul.bf16.gmra.mxu0 %v1052
        %v1135 = vpop.f32.mrf.mxu0
        %v1136 = vadd.f32 0.0, %v1135
        %v1137 = vpop.f32.mrf.mxu0
        %v1138 = vadd.f32 0.0, %v1137
        %1139 = vmatmul.bf16.gmra.mxu0 %v1055
        %v1140 = vpop.f32.mrf.mxu0
        %v1141 = vadd.f32 0.0, %v1140
        %v1142 = vpop.f32.mrf.mxu0
        %v1143 = vadd.f32 0.0, %v1142
        %1144 = vmatmul.bf16.gmra.mxu0 %v1058
        %v1145 = vpop.f32.mrf.mxu0
        %v1146 = vadd.f32 0.0, %v1145
        %v1147 = vpop.f32.mrf.mxu0
        %v1148 = vadd.f32 0.0, %v1147
        %1149 = vmatmul.bf16.gmra.mxu0 %v1061
        %v1150 = vpop.f32.mrf.mxu0
        %v1151 = vadd.f32 0.0, %v1150
        %v1152 = vpop.f32.mrf.mxu0
        %v1153 = vadd.f32 0.0, %v1152
        %1154 = vmatmul.bf16.gmra.mxu0 %v1064
        %v1155 = vpop.f32.mrf.mxu0
        %v1156 = vadd.f32 0.0, %v1155
        %v1157 = vpop.f32.mrf.mxu0
        %v1158 = vadd.f32 0.0, %v1157
        %1159 = vmatmul.bf16.gmra.mxu0 %v1067
        %v1160 = vpop.f32.mrf.mxu0
        %v1161 = vadd.f32 0.0, %v1160
        %v1162 = vpop.f32.mrf.mxu0
        %v1163 = vadd.f32 0.0, %v1162
        %1164 = vmatmul.bf16.gmra.mxu0 %v1070
        %v1165 = vpop.f32.mrf.mxu0
        %v1166 = vadd.f32 0.0, %v1165
        %v1167 = vpop.f32.mrf.mxu0
        %v1168 = vadd.f32 0.0, %v1167
        %1169 = vdwg.mxu0
        %v1186 = vunpack.c.l.b16 %v923
        %v1187 = vunpack.c.l.b16 %v924
        %v1188 = vunpack.c.l.b16 %v925
        %v1189 = vunpack.c.l.b16 %v926
        %v1190 = vunpack.c.l.b16 %v927
        %v1191 = vunpack.c.l.b16 %v928
        %v1192 = vunpack.c.l.b16 %v929
        %v1193 = vunpack.c.l.b16 %v930
        %v1194 = vunpack.c.l.b16 %v931
        %v1195 = vunpack.c.l.b16 %v932
        %v1196 = vunpack.c.l.b16 %v933
        %v1197 = vunpack.c.l.b16 %v934
        %v1198 = vunpack.c.l.b16 %v935
        %v1199 = vunpack.c.l.b16 %v936
        %v1200 = vunpack.c.l.b16 %v937
        %v1201 = vunpack.c.l.b16 %v938
        %v1202 = vpack.c.b16 %v1187, %v1186
        %v1203 = vpack.c.b16 %v1189, %v1188
        %v1204 = vpack.c.b16 %v1191, %v1190
        %v1205 = vpack.c.b16 %v1193, %v1192
        %v1206 = vpack.c.b16 %v1195, %v1194
        %v1207 = vpack.c.b16 %v1197, %v1196
        %v1208 = vpack.c.b16 %v1199, %v1198
        %v1209 = vpack.c.b16 %v1201, %v1200
        %v1214 = vunpack.c.l.b16 %v975
        %v1215 = vunpack.c.h.b16 %v975
        %v1216 = vunpack.c.l.b16 %v976
        %v1217 = vunpack.c.h.b16 %v976
        %v1218 = vunpack.c.l.b16 %v977
        %v1219 = vunpack.c.h.b16 %v977
        %v1220 = vunpack.c.l.b16 %v978
        %v1221 = vunpack.c.h.b16 %v978
        %v1222 = vpack.c.b16 %v1216, %v1214
        %v1223 = vpack.c.b16 %v1217, %v1215
        %v1224 = vpack.c.b16 %v1220, %v1218
        %v1225 = vpack.c.b16 %v1221, %v1219
        %v1231 = vsel %vm1047, %v1202, 0
        %v1234 = vsel %vm1047, %v1203, 0
        %v1237 = vsel %vm1047, %v1204, 0
        %v1240 = vsel %vm1047, %v1205, 0
        %v1243 = vsel %vm1047, %v1206, 0
        %v1246 = vsel %vm1047, %v1207, 0
        %v1249 = vsel %vm1047, %v1208, 0
        %v1252 = vsel %vm1047, %v1209, 0
        %1254 = vmatpush.bf16.msra.mxu0 0
        %1255 = vmatpush.bf16.msra.mxu0 0
        %1256 = vmatpush.bf16.msra.mxu0 0
        %1257 = vmatpush.bf16.msra.mxu0 0
        %1258 = vmatpush.bf16.msra.mxu0 0
        %1259 = vmatpush.bf16.msra.mxu0 0
        %1260 = vmatpush.bf16.msra.mxu0 %v1224
        %1261 = vmatpush.bf16.msra.mxu0 %v1222
        %1262 = vmatmul.bf16.gmra.mxu0 %v1231
        %v1263 = vpop.f32.mrf.mxu0
        %v1264 = vadd.f32 0.0, %v1263
        %v1265 = vpop.f32.mrf.mxu0
        %v1266 = vadd.f32 0.0, %v1265
        %1267 = vmatmul.bf16.gmra.mxu0 %v1234
        %v1268 = vpop.f32.mrf.mxu0
        %v1269 = vadd.f32 0.0, %v1268
        %v1270 = vpop.f32.mrf.mxu0
        %v1271 = vadd.f32 0.0, %v1270
        %1272 = vmatmul.bf16.gmra.mxu0 %v1237
        %v1273 = vpop.f32.mrf.mxu0
        %v1274 = vadd.f32 0.0, %v1273
        %v1275 = vpop.f32.mrf.mxu0
        %v1276 = vadd.f32 0.0, %v1275
        %1277 = vmatmul.bf16.gmra.mxu0 %v1240
        %v1278 = vpop.f32.mrf.mxu0
        %v1279 = vadd.f32 0.0, %v1278
        %v1280 = vpop.f32.mrf.mxu0
        %v1281 = vadd.f32 0.0, %v1280
        %1282 = vmatmul.bf16.gmra.mxu0 %v1243
        %v1283 = vpop.f32.mrf.mxu0
        %v1284 = vadd.f32 0.0, %v1283
        %v1285 = vpop.f32.mrf.mxu0
        %v1286 = vadd.f32 0.0, %v1285
        %1287 = vmatmul.bf16.gmra.mxu0 %v1246
        %v1288 = vpop.f32.mrf.mxu0
        %v1289 = vadd.f32 0.0, %v1288
        %v1290 = vpop.f32.mrf.mxu0
        %v1291 = vadd.f32 0.0, %v1290
        %1292 = vmatmul.bf16.gmra.mxu0 %v1249
        %v1293 = vpop.f32.mrf.mxu0
        %v1294 = vadd.f32 0.0, %v1293
        %v1295 = vpop.f32.mrf.mxu0
        %v1296 = vadd.f32 0.0, %v1295
        %1297 = vmatmul.bf16.gmra.mxu0 %v1252
        %v1298 = vpop.f32.mrf.mxu0
        %v1299 = vadd.f32 0.0, %v1298
        %v1300 = vpop.f32.mrf.mxu0
        %v1301 = vadd.f32 0.0, %v1300
        %1302 = vdwg.mxu0
        %1303 = vmatpush.bf16.msra.mxu0 0
        %1304 = vmatpush.bf16.msra.mxu0 0
        %1305 = vmatpush.bf16.msra.mxu0 0
        %1306 = vmatpush.bf16.msra.mxu0 0
        %1307 = vmatpush.bf16.msra.mxu0 0
        %1308 = vmatpush.bf16.msra.mxu0 0
        %1309 = vmatpush.bf16.msra.mxu0 %v1225
        %1310 = vmatpush.bf16.msra.mxu0 %v1223
        %1311 = vmatmul.bf16.gmra.mxu0 %v1231
        %v1312 = vpop.f32.mrf.mxu0
        %v1313 = vadd.f32 0.0, %v1312
        %v1314 = vpop.f32.mrf.mxu0
        %v1315 = vadd.f32 0.0, %v1314
        %1316 = vmatmul.bf16.gmra.mxu0 %v1234
        %v1317 = vpop.f32.mrf.mxu0
        %v1318 = vadd.f32 0.0, %v1317
        %v1319 = vpop.f32.mrf.mxu0
        %v1320 = vadd.f32 0.0, %v1319
        %1321 = vmatmul.bf16.gmra.mxu0 %v1237
        %v1322 = vpop.f32.mrf.mxu0
        %v1323 = vadd.f32 0.0, %v1322
        %v1324 = vpop.f32.mrf.mxu0
        %v1325 = vadd.f32 0.0, %v1324
        %1326 = vmatmul.bf16.gmra.mxu0 %v1240
        %v1327 = vpop.f32.mrf.mxu0
        %v1328 = vadd.f32 0.0, %v1327
        %v1329 = vpop.f32.mrf.mxu0
        %v1330 = vadd.f32 0.0, %v1329
        %1331 = vmatmul.bf16.gmra.mxu0 %v1243
        %v1332 = vpop.f32.mrf.mxu0
        %v1333 = vadd.f32 0.0, %v1332
        %v1334 = vpop.f32.mrf.mxu0
        %v1335 = vadd.f32 0.0, %v1334
        %1336 = vmatmul.bf16.gmra.mxu0 %v1246
        %v1337 = vpop.f32.mrf.mxu0
        %v1338 = vadd.f32 0.0, %v1337
        %v1339 = vpop.f32.mrf.mxu0
        %v1340 = vadd.f32 0.0, %v1339
        %1341 = vmatmul.bf16.gmra.mxu0 %v1249
        %v1342 = vpop.f32.mrf.mxu0
        %v1343 = vadd.f32 0.0, %v1342
        %v1344 = vpop.f32.mrf.mxu0
        %v1345 = vadd.f32 0.0, %v1344
        %1346 = vmatmul.bf16.gmra.mxu0 %v1252
        %v1347 = vpop.f32.mrf.mxu0
        %v1348 = vadd.f32 0.0, %v1347
        %v1349 = vpop.f32.mrf.mxu0
        %v1350 = vadd.f32 0.0, %v1349
        %1351 = vdwg.mxu0
        %v1368 = vunpack.c.l.b16 %v939
        %v1369 = vunpack.c.l.b16 %v940
        %v1370 = vunpack.c.l.b16 %v941
        %v1371 = vunpack.c.l.b16 %v942
        %v1372 = vunpack.c.l.b16 %v943
        %v1373 = vunpack.c.l.b16 %v944
        %v1374 = vunpack.c.l.b16 %v945
        %v1375 = vunpack.c.l.b16 %v946
        %v1376 = vunpack.c.l.b16 %v947
        %v1377 = vunpack.c.l.b16 %v948
        %v1378 = vunpack.c.l.b16 %v949
        %v1379 = vunpack.c.l.b16 %v950
        %v1380 = vunpack.c.l.b16 %v951
        %v1381 = vunpack.c.l.b16 %v952
        %v1382 = vunpack.c.l.b16 %v953
        %v1383 = vunpack.c.l.b16 %v954
        %v1384 = vpack.c.b16 %v1369, %v1368
        %v1385 = vpack.c.b16 %v1371, %v1370
        %v1386 = vpack.c.b16 %v1373, %v1372
        %v1387 = vpack.c.b16 %v1375, %v1374
        %v1388 = vpack.c.b16 %v1377, %v1376
        %v1389 = vpack.c.b16 %v1379, %v1378
        %v1390 = vpack.c.b16 %v1381, %v1380
        %v1391 = vpack.c.b16 %v1383, %v1382
        %v1396 = vunpack.c.l.b16 %v979
        %v1397 = vunpack.c.h.b16 %v979
        %v1398 = vunpack.c.l.b16 %v980
        %v1399 = vunpack.c.h.b16 %v980
        %v1400 = vunpack.c.l.b16 %v981
        %v1401 = vunpack.c.h.b16 %v981
        %v1402 = vunpack.c.l.b16 %v982
        %v1403 = vunpack.c.h.b16 %v982
        %v1404 = vpack.c.b16 %v1398, %v1396
        %v1405 = vpack.c.b16 %v1399, %v1397
        %v1406 = vpack.c.b16 %v1402, %v1400
        %v1407 = vpack.c.b16 %v1403, %v1401
        %v1413 = vsel %vm1047, %v1384, 0
        %v1416 = vsel %vm1047, %v1385, 0
        %v1419 = vsel %vm1047, %v1386, 0
        %v1422 = vsel %vm1047, %v1387, 0
        %v1425 = vsel %vm1047, %v1388, 0
        %v1428 = vsel %vm1047, %v1389, 0
        %v1431 = vsel %vm1047, %v1390, 0
        %v1434 = vsel %vm1047, %v1391, 0
        %1436 = vmatpush.bf16.msra.mxu0 0
        %1437 = vmatpush.bf16.msra.mxu0 0
        %1438 = vmatpush.bf16.msra.mxu0 0
        %1439 = vmatpush.bf16.msra.mxu0 0
        %1440 = vmatpush.bf16.msra.mxu0 0
        %1441 = vmatpush.bf16.msra.mxu0 0
        %1442 = vmatpush.bf16.msra.mxu0 %v1406
        %1443 = vmatpush.bf16.msra.mxu0 %v1404
        %1444 = vmatmul.bf16.gmra.mxu0 %v1413
        %v1445 = vpop.f32.mrf.mxu0
        %v1446 = vadd.f32 0.0, %v1445
        %v1447 = vpop.f32.mrf.mxu0
        %v1448 = vadd.f32 0.0, %v1447
        %1449 = vmatmul.bf16.gmra.mxu0 %v1416
        %v1450 = vpop.f32.mrf.mxu0
        %v1451 = vadd.f32 0.0, %v1450
        %v1452 = vpop.f32.mrf.mxu0
        %v1453 = vadd.f32 0.0, %v1452
        %1454 = vmatmul.bf16.gmra.mxu0 %v1419
        %v1455 = vpop.f32.mrf.mxu0
        %v1456 = vadd.f32 0.0, %v1455
        %v1457 = vpop.f32.mrf.mxu0
        %v1458 = vadd.f32 0.0, %v1457
        %1459 = vmatmul.bf16.gmra.mxu0 %v1422
        %v1460 = vpop.f32.mrf.mxu0
        %v1461 = vadd.f32 0.0, %v1460
        %v1462 = vpop.f32.mrf.mxu0
        %v1463 = vadd.f32 0.0, %v1462
        %1464 = vmatmul.bf16.gmra.mxu0 %v1425
        %v1465 = vpop.f32.mrf.mxu0
        %v1466 = vadd.f32 0.0, %v1465
        %v1467 = vpop.f32.mrf.mxu0
        %v1468 = vadd.f32 0.0, %v1467
        %1469 = vmatmul.bf16.gmra.mxu0 %v1428
        %v1470 = vpop.f32.mrf.mxu0
        %v1471 = vadd.f32 0.0, %v1470
        %v1472 = vpop.f32.mrf.mxu0
        %v1473 = vadd.f32 0.0, %v1472
        %1474 = vmatmul.bf16.gmra.mxu0 %v1431
        %v1475 = vpop.f32.mrf.mxu0
        %v1476 = vadd.f32 0.0, %v1475
        %v1477 = vpop.f32.mrf.mxu0
        %v1478 = vadd.f32 0.0, %v1477
        %1479 = vmatmul.bf16.gmra.mxu0 %v1434
        %v1480 = vpop.f32.mrf.mxu0
        %v1481 = vadd.f32 0.0, %v1480
        %v1482 = vpop.f32.mrf.mxu0
        %v1483 = vadd.f32 0.0, %v1482
        %1484 = vdwg.mxu0
        %1485 = vmatpush.bf16.msra.mxu0 0
        %1486 = vmatpush.bf16.msra.mxu0 0
        %1487 = vmatpush.bf16.msra.mxu0 0
        %1488 = vmatpush.bf16.msra.mxu0 0
        %1489 = vmatpush.bf16.msra.mxu0 0
        %1490 = vmatpush.bf16.msra.mxu0 0
        %1491 = vmatpush.bf16.msra.mxu0 %v1407
        %1492 = vmatpush.bf16.msra.mxu0 %v1405
        %1493 = vmatmul.bf16.gmra.mxu0 %v1413
        %v1494 = vpop.f32.mrf.mxu0
        %v1495 = vadd.f32 0.0, %v1494
        %v1496 = vpop.f32.mrf.mxu0
        %v1497 = vadd.f32 0.0, %v1496
        %1498 = vmatmul.bf16.gmra.mxu0 %v1416
        %v1499 = vpop.f32.mrf.mxu0
        %v1500 = vadd.f32 0.0, %v1499
        %v1501 = vpop.f32.mrf.mxu0
        %v1502 = vadd.f32 0.0, %v1501
        %1503 = vmatmul.bf16.gmra.mxu0 %v1419
        %v1504 = vpop.f32.mrf.mxu0
        %v1505 = vadd.f32 0.0, %v1504
        %v1506 = vpop.f32.mrf.mxu0
        %v1507 = vadd.f32 0.0, %v1506
        %1508 = vmatmul.bf16.gmra.mxu0 %v1422
        %v1509 = vpop.f32.mrf.mxu0
        %v1510 = vadd.f32 0.0, %v1509
        %v1511 = vpop.f32.mrf.mxu0
        %v1512 = vadd.f32 0.0, %v1511
        %1513 = vmatmul.bf16.gmra.mxu0 %v1425
        %v1514 = vpop.f32.mrf.mxu0
        %v1515 = vadd.f32 0.0, %v1514
        %v1516 = vpop.f32.mrf.mxu0
        %v1517 = vadd.f32 0.0, %v1516
        %1518 = vmatmul.bf16.gmra.mxu0 %v1428
        %v1519 = vpop.f32.mrf.mxu0
        %v1520 = vadd.f32 0.0, %v1519
        %v1521 = vpop.f32.mrf.mxu0
        %v1522 = vadd.f32 0.0, %v1521
        %1523 = vmatmul.bf16.gmra.mxu0 %v1431
        %v1524 = vpop.f32.mrf.mxu0
        %v1525 = vadd.f32 0.0, %v1524
        %v1526 = vpop.f32.mrf.mxu0
        %v1527 = vadd.f32 0.0, %v1526
        %1528 = vmatmul.bf16.gmra.mxu0 %v1434
        %v1529 = vpop.f32.mrf.mxu0
        %v1530 = vadd.f32 0.0, %v1529
        %v1531 = vpop.f32.mrf.mxu0
        %v1532 = vadd.f32 0.0, %v1531
        %1533 = vdwg.mxu0
        %v1550 = vunpack.c.l.b16 %v955
        %v1551 = vunpack.c.l.b16 %v956
        %v1552 = vunpack.c.l.b16 %v957
        %v1553 = vunpack.c.l.b16 %v958
        %v1554 = vunpack.c.l.b16 %v959
        %v1555 = vunpack.c.l.b16 %v960
        %v1556 = vunpack.c.l.b16 %v961
        %v1557 = vunpack.c.l.b16 %v962
        %v1558 = vunpack.c.l.b16 %v963
        %v1559 = vunpack.c.l.b16 %v964
        %v1560 = vunpack.c.l.b16 %v965
        %v1561 = vunpack.c.l.b16 %v966
        %v1562 = vunpack.c.l.b16 %v967
        %v1563 = vunpack.c.l.b16 %v968
        %v1564 = vunpack.c.l.b16 %v969
        %v1565 = vunpack.c.l.b16 %v970
        %v1566 = vpack.c.b16 %v1551, %v1550
        %v1567 = vpack.c.b16 %v1553, %v1552
        %v1568 = vpack.c.b16 %v1555, %v1554
        %v1569 = vpack.c.b16 %v1557, %v1556
        %v1570 = vpack.c.b16 %v1559, %v1558
        %v1571 = vpack.c.b16 %v1561, %v1560
        %v1572 = vpack.c.b16 %v1563, %v1562
        %v1573 = vpack.c.b16 %v1565, %v1564
        %v1578 = vunpack.c.l.b16 %v983
        %v1579 = vunpack.c.h.b16 %v983
        %v1580 = vunpack.c.l.b16 %v984
        %v1581 = vunpack.c.h.b16 %v984
        %v1582 = vunpack.c.l.b16 %v985
        %v1583 = vunpack.c.h.b16 %v985
        %v1584 = vunpack.c.l.b16 %v986
        %v1585 = vunpack.c.h.b16 %v986
        %v1586 = vpack.c.b16 %v1580, %v1578
        %v1587 = vpack.c.b16 %v1581, %v1579
        %v1588 = vpack.c.b16 %v1584, %v1582
        %v1589 = vpack.c.b16 %v1585, %v1583
        %v1595 = vsel %vm1047, %v1566, 0
        %v1598 = vsel %vm1047, %v1567, 0
        %v1601 = vsel %vm1047, %v1568, 0
        %v1604 = vsel %vm1047, %v1569, 0
        %v1607 = vsel %vm1047, %v1570, 0
        %v1610 = vsel %vm1047, %v1571, 0
        %v1613 = vsel %vm1047, %v1572, 0
        %v1616 = vsel %vm1047, %v1573, 0
        %1618 = vmatpush.bf16.msra.mxu0 0
        %1619 = vmatpush.bf16.msra.mxu0 0
        %1620 = vmatpush.bf16.msra.mxu0 0
        %1621 = vmatpush.bf16.msra.mxu0 0
        %1622 = vmatpush.bf16.msra.mxu0 0
        %1623 = vmatpush.bf16.msra.mxu0 0
        %1624 = vmatpush.bf16.msra.mxu0 %v1588
        %1625 = vmatpush.bf16.msra.mxu0 %v1586
        %1626 = vmatmul.bf16.gmra.mxu0 %v1595
        %v1627 = vpop.f32.mrf.mxu0
        %v1628 = vadd.f32 0.0, %v1627
        %v1629 = vpop.f32.mrf.mxu0
        %v1630 = vadd.f32 0.0, %v1629
        %1631 = vmatmul.bf16.gmra.mxu0 %v1598
        %v1632 = vpop.f32.mrf.mxu0
        %v1633 = vadd.f32 0.0, %v1632
        %v1634 = vpop.f32.mrf.mxu0
        %v1635 = vadd.f32 0.0, %v1634
        %1636 = vmatmul.bf16.gmra.mxu0 %v1601
        %v1637 = vpop.f32.mrf.mxu0
        %v1638 = vadd.f32 0.0, %v1637
        %v1639 = vpop.f32.mrf.mxu0
        %v1640 = vadd.f32 0.0, %v1639
        %1641 = vmatmul.bf16.gmra.mxu0 %v1604
        %v1642 = vpop.f32.mrf.mxu0
        %v1643 = vadd.f32 0.0, %v1642
        %v1644 = vpop.f32.mrf.mxu0
        %v1645 = vadd.f32 0.0, %v1644
        %1646 = vmatmul.bf16.gmra.mxu0 %v1607
        %v1647 = vpop.f32.mrf.mxu0
        %v1648 = vadd.f32 0.0, %v1647
        %v1649 = vpop.f32.mrf.mxu0
        %v1650 = vadd.f32 0.0, %v1649
        %1651 = vmatmul.bf16.gmra.mxu0 %v1610
        %v1652 = vpop.f32.mrf.mxu0
        %v1653 = vadd.f32 0.0, %v1652
        %v1654 = vpop.f32.mrf.mxu0
        %v1655 = vadd.f32 0.0, %v1654
        %1656 = vmatmul.bf16.gmra.mxu0 %v1613
        %v1657 = vpop.f32.mrf.mxu0
        %v1658 = vadd.f32 0.0, %v1657
        %v1659 = vpop.f32.mrf.mxu0
        %v1660 = vadd.f32 0.0, %v1659
        %1661 = vmatmul.bf16.gmra.mxu0 %v1616
        %v1662 = vpop.f32.mrf.mxu0
        %v1663 = vadd.f32 0.0, %v1662
        %v1664 = vpop.f32.mrf.mxu0
        %v1665 = vadd.f32 0.0, %v1664
        %1666 = vdwg.mxu0
        %1667 = vmatpush.bf16.msra.mxu0 0
        %1668 = vmatpush.bf16.msra.mxu0 0
        %1669 = vmatpush.bf16.msra.mxu0 0
        %1670 = vmatpush.bf16.msra.mxu0 0
        %1671 = vmatpush.bf16.msra.mxu0 0
        %1672 = vmatpush.bf16.msra.mxu0 0
        %1673 = vmatpush.bf16.msra.mxu0 %v1589
        %1674 = vmatpush.bf16.msra.mxu0 %v1587
        %1675 = vmatmul.bf16.gmra.mxu0 %v1595
        %v1676 = vpop.f32.mrf.mxu0
        %v1677 = vadd.f32 0.0, %v1676
        %v1678 = vpop.f32.mrf.mxu0
        %v1679 = vadd.f32 0.0, %v1678
        %1680 = vmatmul.bf16.gmra.mxu0 %v1598
        %v1681 = vpop.f32.mrf.mxu0
        %v1682 = vadd.f32 0.0, %v1681
        %v1683 = vpop.f32.mrf.mxu0
        %v1684 = vadd.f32 0.0, %v1683
        %1685 = vmatmul.bf16.gmra.mxu0 %v1601
        %v1686 = vpop.f32.mrf.mxu0
        %v1687 = vadd.f32 0.0, %v1686
        %v1688 = vpop.f32.mrf.mxu0
        %v1689 = vadd.f32 0.0, %v1688
        %1690 = vmatmul.bf16.gmra.mxu0 %v1604
        %v1691 = vpop.f32.mrf.mxu0
        %v1692 = vadd.f32 0.0, %v1691
        %v1693 = vpop.f32.mrf.mxu0
        %v1694 = vadd.f32 0.0, %v1693
        %1695 = vmatmul.bf16.gmra.mxu0 %v1607
        %v1696 = vpop.f32.mrf.mxu0
        %v1697 = vadd.f32 0.0, %v1696
        %v1698 = vpop.f32.mrf.mxu0
        %v1699 = vadd.f32 0.0, %v1698
        %1700 = vmatmul.bf16.gmra.mxu0 %v1610
        %v1701 = vpop.f32.mrf.mxu0
        %v1702 = vadd.f32 0.0, %v1701
        %v1703 = vpop.f32.mrf.mxu0
        %v1704 = vadd.f32 0.0, %v1703
        %1705 = vmatmul.bf16.gmra.mxu0 %v1613
        %v1706 = vpop.f32.mrf.mxu0
        %v1707 = vadd.f32 0.0, %v1706
        %v1708 = vpop.f32.mrf.mxu0
        %v1709 = vadd.f32 0.0, %v1708
        %1710 = vmatmul.bf16.gmra.mxu0 %v1616
        %v1711 = vpop.f32.mrf.mxu0
        %v1712 = vadd.f32 0.0, %v1711
        %v1713 = vpop.f32.mrf.mxu0
        %v1714 = vadd.f32 0.0, %v1713
        %1715 = vdwg.mxu0
        %v1716 = vmax.f32 %v1082, %v1131
        %1717 = vmax.xlane.f32.xlu0 %v1716
        %v1718 = vpop.xlane.xlu0 %1717
        %v1719 = vmax.f32 %v1084, %v1133
        %1720 = vmax.xlane.f32.xlu0 %v1719
        %v1721 = vpop.xlane.xlu0 %1720
        %v1722 = vmax.f32 %v1087, %v1136
        %1723 = vmax.xlane.f32.xlu0 %v1722
        %v1724 = vpop.xlane.xlu0 %1723
        %v1725 = vmax.f32 %v1089, %v1138
        %1726 = vmax.xlane.f32.xlu0 %v1725
        %v1727 = vpop.xlane.xlu0 %1726
        %v1728 = vmax.f32 %v1092, %v1141
        %1729 = vmax.xlane.f32.xlu0 %v1728
        %v1730 = vpop.xlane.xlu0 %1729
        %v1731 = vmax.f32 %v1094, %v1143
        %1732 = vmax.xlane.f32.xlu0 %v1731
        %v1733 = vpop.xlane.xlu0 %1732
        %v1734 = vmax.f32 %v1097, %v1146
        %1735 = vmax.xlane.f32.xlu0 %v1734
        %v1736 = vpop.xlane.xlu0 %1735
        %v1737 = vmax.f32 %v1099, %v1148
        %1738 = vmax.xlane.f32.xlu0 %v1737
        %v1739 = vpop.xlane.xlu0 %1738
        %v1740 = vmax.f32 %v1102, %v1151
        %1741 = vmax.xlane.f32.xlu0 %v1740
        %v1742 = vpop.xlane.xlu0 %1741
        %v1743 = vmax.f32 %v1104, %v1153
        %1744 = vmax.xlane.f32.xlu0 %v1743
        %v1745 = vpop.xlane.xlu0 %1744
        %v1746 = vmax.f32 %v1107, %v1156
        %1747 = vmax.xlane.f32.xlu0 %v1746
        %v1748 = vpop.xlane.xlu0 %1747
        %v1749 = vmax.f32 %v1109, %v1158
        %1750 = vmax.xlane.f32.xlu0 %v1749
        %v1751 = vpop.xlane.xlu0 %1750
        %v1752 = vmax.f32 %v1112, %v1161
        %1753 = vmax.xlane.f32.xlu0 %v1752
        %v1754 = vpop.xlane.xlu0 %1753
        %v1755 = vmax.f32 %v1114, %v1163
        %1756 = vmax.xlane.f32.xlu0 %v1755
        %v1757 = vpop.xlane.xlu0 %1756
        %v1758 = vmax.f32 %v1117, %v1166
        %1759 = vmax.xlane.f32.xlu0 %v1758
        %v1760 = vpop.xlane.xlu0 %1759
        %v1761 = vmax.f32 %v1119, %v1168
        %1762 = vmax.xlane.f32.xlu0 %v1761
        %v1763 = vpop.xlane.xlu0 %1762
        %v1764 = vmax.f32 %v1264, %v1313
        %1765 = vmax.xlane.f32.xlu0 %v1764
        %v1766 = vpop.xlane.xlu0 %1765
        %v1767 = vmax.f32 %v1266, %v1315
        %1768 = vmax.xlane.f32.xlu0 %v1767
        %v1769 = vpop.xlane.xlu0 %1768
        %v1770 = vmax.f32 %v1269, %v1318
        %1771 = vmax.xlane.f32.xlu0 %v1770
        %v1772 = vpop.xlane.xlu0 %1771
        %v1773 = vmax.f32 %v1271, %v1320
        %1774 = vmax.xlane.f32.xlu0 %v1773
        %v1775 = vpop.xlane.xlu0 %1774
        %v1776 = vmax.f32 %v1274, %v1323
        %1777 = vmax.xlane.f32.xlu0 %v1776
        %v1778 = vpop.xlane.xlu0 %1777
        %v1779 = vmax.f32 %v1276, %v1325
        %1780 = vmax.xlane.f32.xlu0 %v1779
        %v1781 = vpop.xlane.xlu0 %1780
        %v1782 = vmax.f32 %v1279, %v1328
        %1783 = vmax.xlane.f32.xlu0 %v1782
        %v1784 = vpop.xlane.xlu0 %1783
        %v1785 = vmax.f32 %v1281, %v1330
        %1786 = vmax.xlane.f32.xlu0 %v1785
        %v1787 = vpop.xlane.xlu0 %1786
        %v1788 = vmax.f32 %v1284, %v1333
        %1789 = vmax.xlane.f32.xlu0 %v1788
        %v1790 = vpop.xlane.xlu0 %1789
        %v1791 = vmax.f32 %v1286, %v1335
        %1792 = vmax.xlane.f32.xlu0 %v1791
        %v1793 = vpop.xlane.xlu0 %1792
        %v1794 = vmax.f32 %v1289, %v1338
        %1795 = vmax.xlane.f32.xlu0 %v1794
        %v1796 = vpop.xlane.xlu0 %1795
        %v1797 = vmax.f32 %v1291, %v1340
        %1798 = vmax.xlane.f32.xlu0 %v1797
        %v1799 = vpop.xlane.xlu0 %1798
        %v1800 = vmax.f32 %v1294, %v1343
        %1801 = vmax.xlane.f32.xlu0 %v1800
        %v1802 = vpop.xlane.xlu0 %1801
        %v1803 = vmax.f32 %v1296, %v1345
        %1804 = vmax.xlane.f32.xlu0 %v1803
        %v1805 = vpop.xlane.xlu0 %1804
        %v1806 = vmax.f32 %v1299, %v1348
        %1807 = vmax.xlane.f32.xlu0 %v1806
        %v1808 = vpop.xlane.xlu0 %1807
        %v1809 = vmax.f32 %v1301, %v1350
        %1810 = vmax.xlane.f32.xlu0 %v1809
        %v1811 = vpop.xlane.xlu0 %1810
        %v1812 = vmax.f32 %v1446, %v1495
        %1813 = vmax.xlane.f32.xlu0 %v1812
        %v1814 = vpop.xlane.xlu0 %1813
        %v1815 = vmax.f32 %v1448, %v1497
        %1816 = vmax.xlane.f32.xlu0 %v1815
        %v1817 = vpop.xlane.xlu0 %1816
        %v1818 = vmax.f32 %v1451, %v1500
        %1819 = vmax.xlane.f32.xlu0 %v1818
        %v1820 = vpop.xlane.xlu0 %1819
        %v1821 = vmax.f32 %v1453, %v1502
        %1822 = vmax.xlane.f32.xlu0 %v1821
        %v1823 = vpop.xlane.xlu0 %1822
        %v1824 = vmax.f32 %v1456, %v1505
        %1825 = vmax.xlane.f32.xlu0 %v1824
        %v1826 = vpop.xlane.xlu0 %1825
        %v1827 = vmax.f32 %v1458, %v1507
        %1828 = vmax.xlane.f32.xlu0 %v1827
        %v1829 = vpop.xlane.xlu0 %1828
        %v1830 = vmax.f32 %v1461, %v1510
        %1831 = vmax.xlane.f32.xlu0 %v1830
        %v1832 = vpop.xlane.xlu0 %1831
        %v1833 = vmax.f32 %v1463, %v1512
        %1834 = vmax.xlane.f32.xlu0 %v1833
        %v1835 = vpop.xlane.xlu0 %1834
        %v1836 = vmax.f32 %v1466, %v1515
        %1837 = vmax.xlane.f32.xlu0 %v1836
        %v1838 = vpop.xlane.xlu0 %1837
        %v1839 = vmax.f32 %v1468, %v1517
        %1840 = vmax.xlane.f32.xlu0 %v1839
        %v1841 = vpop.xlane.xlu0 %1840
        %v1842 = vmax.f32 %v1471, %v1520
        %1843 = vmax.xlane.f32.xlu0 %v1842
        %v1844 = vpop.xlane.xlu0 %1843
        %v1845 = vmax.f32 %v1473, %v1522
        %1846 = vmax.xlane.f32.xlu0 %v1845
        %v1847 = vpop.xlane.xlu0 %1846
        %v1848 = vmax.f32 %v1476, %v1525
        %1849 = vmax.xlane.f32.xlu0 %v1848
        %v1850 = vpop.xlane.xlu0 %1849
        %v1851 = vmax.f32 %v1478, %v1527
        %1852 = vmax.xlane.f32.xlu0 %v1851
        %v1853 = vpop.xlane.xlu0 %1852
        %v1854 = vmax.f32 %v1481, %v1530
        %1855 = vmax.xlane.f32.xlu0 %v1854
        %v1856 = vpop.xlane.xlu0 %1855
        %v1857 = vmax.f32 %v1483, %v1532
        %1858 = vmax.xlane.f32.xlu0 %v1857
        %v1859 = vpop.xlane.xlu0 %1858
        %v1860 = vmax.f32 %v1628, %v1677
        %1861 = vmax.xlane.f32.xlu0 %v1860
        %v1862 = vpop.xlane.xlu0 %1861
        %v1863 = vmax.f32 %v1630, %v1679
        %1864 = vmax.xlane.f32.xlu0 %v1863
        %v1865 = vpop.xlane.xlu0 %1864
        %v1866 = vmax.f32 %v1633, %v1682
        %1867 = vmax.xlane.f32.xlu0 %v1866
        %v1868 = vpop.xlane.xlu0 %1867
        %v1869 = vmax.f32 %v1635, %v1684
        %1870 = vmax.xlane.f32.xlu0 %v1869
        %v1871 = vpop.xlane.xlu0 %1870
        %v1872 = vmax.f32 %v1638, %v1687
        %1873 = vmax.xlane.f32.xlu0 %v1872
        %v1874 = vpop.xlane.xlu0 %1873
        %v1875 = vmax.f32 %v1640, %v1689
        %1876 = vmax.xlane.f32.xlu0 %v1875
        %v1877 = vpop.xlane.xlu0 %1876
        %v1878 = vmax.f32 %v1643, %v1692
        %1879 = vmax.xlane.f32.xlu0 %v1878
        %v1880 = vpop.xlane.xlu0 %1879
        %v1881 = vmax.f32 %v1645, %v1694
        %1882 = vmax.xlane.f32.xlu0 %v1881
        %v1883 = vpop.xlane.xlu0 %1882
        %v1884 = vmax.f32 %v1648, %v1697
        %1885 = vmax.xlane.f32.xlu0 %v1884
        %v1886 = vpop.xlane.xlu0 %1885
        %v1887 = vmax.f32 %v1650, %v1699
        %1888 = vmax.xlane.f32.xlu0 %v1887
        %v1889 = vpop.xlane.xlu0 %1888
        %v1890 = vmax.f32 %v1653, %v1702
        %1891 = vmax.xlane.f32.xlu0 %v1890
        %v1892 = vpop.xlane.xlu0 %1891
        %v1893 = vmax.f32 %v1655, %v1704
        %1894 = vmax.xlane.f32.xlu0 %v1893
        %v1895 = vpop.xlane.xlu0 %1894
        %v1896 = vmax.f32 %v1658, %v1707
        %1897 = vmax.xlane.f32.xlu0 %v1896
        %v1898 = vpop.xlane.xlu0 %1897
        %v1899 = vmax.f32 %v1660, %v1709
        %1900 = vmax.xlane.f32.xlu0 %v1899
        %v1901 = vpop.xlane.xlu0 %1900
        %v1902 = vmax.f32 %v1663, %v1712
        %1903 = vmax.xlane.f32.xlu0 %v1902
        %v1904 = vpop.xlane.xlu0 %1903
        %v1905 = vmax.f32 %v1665, %v1714
        %1906 = vmax.xlane.f32.xlu0 %v1905
        %v1907 = vpop.xlane.xlu0 %1906
        %v1908 = vsub.f32 %v1082, %v1718
        %v1909 = vsub.f32 %v1131, %v1718
        %v1910 = vsub.f32 %v1084, %v1721
        %v1911 = vsub.f32 %v1133, %v1721
        %v1912 = vsub.f32 %v1087, %v1724
        %v1913 = vsub.f32 %v1136, %v1724
        %v1914 = vsub.f32 %v1089, %v1727
        %v1915 = vsub.f32 %v1138, %v1727
        %v1916 = vsub.f32 %v1092, %v1730
        %v1917 = vsub.f32 %v1141, %v1730
        %v1918 = vsub.f32 %v1094, %v1733
        %v1919 = vsub.f32 %v1143, %v1733
        %v1920 = vsub.f32 %v1097, %v1736
        %v1921 = vsub.f32 %v1146, %v1736
        %v1922 = vsub.f32 %v1099, %v1739
        %v1923 = vsub.f32 %v1148, %v1739
        %v1924 = vsub.f32 %v1102, %v1742
        %v1925 = vsub.f32 %v1151, %v1742
        %v1926 = vsub.f32 %v1104, %v1745
        %v1927 = vsub.f32 %v1153, %v1745
        %v1928 = vsub.f32 %v1107, %v1748
        %v1929 = vsub.f32 %v1156, %v1748
        %v1930 = vsub.f32 %v1109, %v1751
        %v1931 = vsub.f32 %v1158, %v1751
        %v1932 = vsub.f32 %v1112, %v1754
        %v1933 = vsub.f32 %v1161, %v1754
        %v1934 = vsub.f32 %v1114, %v1757
        %v1935 = vsub.f32 %v1163, %v1757
        %v1936 = vsub.f32 %v1117, %v1760
        %v1937 = vsub.f32 %v1166, %v1760
        %v1938 = vsub.f32 %v1119, %v1763
        %v1939 = vsub.f32 %v1168, %v1763
        %v1940 = vsub.f32 %v1264, %v1766
        %v1941 = vsub.f32 %v1313, %v1766
        %v1942 = vsub.f32 %v1266, %v1769
        %v1943 = vsub.f32 %v1315, %v1769
        %v1944 = vsub.f32 %v1269, %v1772
        %v1945 = vsub.f32 %v1318, %v1772
        %v1946 = vsub.f32 %v1271, %v1775
        %v1947 = vsub.f32 %v1320, %v1775
        %v1948 = vsub.f32 %v1274, %v1778
        %v1949 = vsub.f32 %v1323, %v1778
        %v1950 = vsub.f32 %v1276, %v1781
        %v1951 = vsub.f32 %v1325, %v1781
        %v1952 = vsub.f32 %v1279, %v1784
        %v1953 = vsub.f32 %v1328, %v1784
        %v1954 = vsub.f32 %v1281, %v1787
        %v1955 = vsub.f32 %v1330, %v1787
        %v1956 = vsub.f32 %v1284, %v1790
        %v1957 = vsub.f32 %v1333, %v1790
        %v1958 = vsub.f32 %v1286, %v1793
        %v1959 = vsub.f32 %v1335, %v1793
        %v1960 = vsub.f32 %v1289, %v1796
        %v1961 = vsub.f32 %v1338, %v1796
        %v1962 = vsub.f32 %v1291, %v1799
        %v1963 = vsub.f32 %v1340, %v1799
        %v1964 = vsub.f32 %v1294, %v1802
        %v1965 = vsub.f32 %v1343, %v1802
        %v1966 = vsub.f32 %v1296, %v1805
        %v1967 = vsub.f32 %v1345, %v1805
        %v1968 = vsub.f32 %v1299, %v1808
        %v1969 = vsub.f32 %v1348, %v1808
        %v1970 = vsub.f32 %v1301, %v1811
        %v1971 = vsub.f32 %v1350, %v1811
        %v1972 = vsub.f32 %v1446, %v1814
        %v1973 = vsub.f32 %v1495, %v1814
        %v1974 = vsub.f32 %v1448, %v1817
        %v1975 = vsub.f32 %v1497, %v1817
        %v1976 = vsub.f32 %v1451, %v1820
        %v1977 = vsub.f32 %v1500, %v1820
        %v1978 = vsub.f32 %v1453, %v1823
        %v1979 = vsub.f32 %v1502, %v1823
        %v1980 = vsub.f32 %v1456, %v1826
        %v1981 = vsub.f32 %v1505, %v1826
        %v1982 = vsub.f32 %v1458, %v1829
        %v1983 = vsub.f32 %v1507, %v1829
        %v1984 = vsub.f32 %v1461, %v1832
        %v1985 = vsub.f32 %v1510, %v1832
        %v1986 = vsub.f32 %v1463, %v1835
        %v1987 = vsub.f32 %v1512, %v1835
        %v1988 = vsub.f32 %v1466, %v1838
        %v1989 = vsub.f32 %v1515, %v1838
        %v1990 = vsub.f32 %v1468, %v1841
        %v1991 = vsub.f32 %v1517, %v1841
        %v1992 = vsub.f32 %v1471, %v1844
        %v1993 = vsub.f32 %v1520, %v1844
        %v1994 = vsub.f32 %v1473, %v1847
        %v1995 = vsub.f32 %v1522, %v1847
        %v1996 = vsub.f32 %v1476, %v1850
        %v1997 = vsub.f32 %v1525, %v1850
        %v1998 = vsub.f32 %v1478, %v1853
        %v1999 = vsub.f32 %v1527, %v1853
        %v2000 = vsub.f32 %v1481, %v1856
        %v2001 = vsub.f32 %v1530, %v1856
        %v2002 = vsub.f32 %v1483, %v1859
        %v2003 = vsub.f32 %v1532, %v1859
        %v2004 = vsub.f32 %v1628, %v1862
        %v2005 = vsub.f32 %v1677, %v1862
        %v2006 = vsub.f32 %v1630, %v1865
        %v2007 = vsub.f32 %v1679, %v1865
        %v2008 = vsub.f32 %v1633, %v1868
        %v2009 = vsub.f32 %v1682, %v1868
        %v2010 = vsub.f32 %v1635, %v1871
        %v2011 = vsub.f32 %v1684, %v1871
        %v2012 = vsub.f32 %v1638, %v1874
        %v2013 = vsub.f32 %v1687, %v1874
        %v2014 = vsub.f32 %v1640, %v1877
        %v2015 = vsub.f32 %v1689, %v1877
        %v2016 = vsub.f32 %v1643, %v1880
        %v2017 = vsub.f32 %v1692, %v1880
        %v2018 = vsub.f32 %v1645, %v1883
        %v2019 = vsub.f32 %v1694, %v1883
        %v2020 = vsub.f32 %v1648, %v1886
        %v2021 = vsub.f32 %v1697, %v1886
        %v2022 = vsub.f32 %v1650, %v1889
        %v2023 = vsub.f32 %v1699, %v1889
        %v2024 = vsub.f32 %v1653, %v1892
        %v2025 = vsub.f32 %v1702, %v1892
        %v2026 = vsub.f32 %v1655, %v1895
        %v2027 = vsub.f32 %v1704, %v1895
        %v2028 = vsub.f32 %v1658, %v1898
        %v2029 = vsub.f32 %v1707, %v1898
        %v2030 = vsub.f32 %v1660, %v1901
        %v2031 = vsub.f32 %v1709, %v1901
        %v2032 = vsub.f32 %v1663, %v1904
        %v2033 = vsub.f32 %v1712, %v1904
        %v2034 = vsub.f32 %v1665, %v1907
        %v2035 = vsub.f32 %v1714, %v1907
        %v2036 = vmul.f32 %v1908, 1.442695
        %v2037 = vpow.pop %v2036
        %v2038 = vmul.f32 %v1909, 1.442695
        %v2039 = vpow.pop %v2038
        %v2040 = vmul.f32 %v1910, 1.442695
        %v2041 = vpow.pop %v2040
        %v2042 = vmul.f32 %v1911, 1.442695
        %v2043 = vpow.pop %v2042
        %v2044 = vmul.f32 %v1912, 1.442695
        %v2045 = vpow.pop %v2044
        %v2046 = vmul.f32 %v1913, 1.442695
        %v2047 = vpow.pop %v2046
        %v2048 = vmul.f32 %v1914, 1.442695
        %v2049 = vpow.pop %v2048
        %v2050 = vmul.f32 %v1915, 1.442695
        %v2051 = vpow.pop %v2050
        %v2052 = vmul.f32 %v1916, 1.442695
        %v2053 = vpow.pop %v2052
        %v2054 = vmul.f32 %v1917, 1.442695
        %v2055 = vpow.pop %v2054
        %v2056 = vmul.f32 %v1918, 1.442695
        %v2057 = vpow.pop %v2056
        %v2058 = vmul.f32 %v1919, 1.442695
        %v2059 = vpow.pop %v2058
        %v2060 = vmul.f32 %v1920, 1.442695
        %v2061 = vpow.pop %v2060
        %v2062 = vmul.f32 %v1921, 1.442695
        %v2063 = vpow.pop %v2062
        %v2064 = vmul.f32 %v1922, 1.442695
        %v2065 = vpow.pop %v2064
        %v2066 = vmul.f32 %v1923, 1.442695
        %v2067 = vpow.pop %v2066
        %v2068 = vmul.f32 %v1924, 1.442695
        %v2069 = vpow.pop %v2068
        %v2070 = vmul.f32 %v1925, 1.442695
        %v2071 = vpow.pop %v2070
        %v2072 = vmul.f32 %v1926, 1.442695
        %v2073 = vpow.pop %v2072
        %v2074 = vmul.f32 %v1927, 1.442695
        %v2075 = vpow.pop %v2074
        %v2076 = vmul.f32 %v1928, 1.442695
        %v2077 = vpow.pop %v2076
        %v2078 = vmul.f32 %v1929, 1.442695
        %v2079 = vpow.pop %v2078
        %v2080 = vmul.f32 %v1930, 1.442695
        %v2081 = vpow.pop %v2080
        %v2082 = vmul.f32 %v1931, 1.442695
        %v2083 = vpow.pop %v2082
        %v2084 = vmul.f32 %v1932, 1.442695
        %v2085 = vpow.pop %v2084
        %v2086 = vmul.f32 %v1933, 1.442695
        %v2087 = vpow.pop %v2086
        %v2088 = vmul.f32 %v1934, 1.442695
        %v2089 = vpow.pop %v2088
        %v2090 = vmul.f32 %v1935, 1.442695
        %v2091 = vpow.pop %v2090
        %v2092 = vmul.f32 %v1936, 1.442695
        %v2093 = vpow.pop %v2092
        %v2094 = vmul.f32 %v1937, 1.442695
        %v2095 = vpow.pop %v2094
        %v2096 = vmul.f32 %v1938, 1.442695
        %v2097 = vpow.pop %v2096
        %v2098 = vmul.f32 %v1939, 1.442695
        %v2099 = vpow.pop %v2098
        %v2100 = vmul.f32 %v1940, 1.442695
        %v2101 = vpow.pop %v2100
        %v2102 = vmul.f32 %v1941, 1.442695
        %v2103 = vpow.pop %v2102
        %v2104 = vmul.f32 %v1942, 1.442695
        %v2105 = vpow.pop %v2104
        %v2106 = vmul.f32 %v1943, 1.442695
        %v2107 = vpow.pop %v2106
        %v2108 = vmul.f32 %v1944, 1.442695
        %v2109 = vpow.pop %v2108
        %v2110 = vmul.f32 %v1945, 1.442695
        %v2111 = vpow.pop %v2110
        %v2112 = vmul.f32 %v1946, 1.442695
        %v2113 = vpow.pop %v2112
        %v2114 = vmul.f32 %v1947, 1.442695
        %v2115 = vpow.pop %v2114
        %v2116 = vmul.f32 %v1948, 1.442695
        %v2117 = vpow.pop %v2116
        %v2118 = vmul.f32 %v1949, 1.442695
        %v2119 = vpow.pop %v2118
        %v2120 = vmul.f32 %v1950, 1.442695
        %v2121 = vpow.pop %v2120
        %v2122 = vmul.f32 %v1951, 1.442695
        %v2123 = vpow.pop %v2122
        %v2124 = vmul.f32 %v1952, 1.442695
        %v2125 = vpow.pop %v2124
        %v2126 = vmul.f32 %v1953, 1.442695
        %v2127 = vpow.pop %v2126
        %v2128 = vmul.f32 %v1954, 1.442695
        %v2129 = vpow.pop %v2128
        %v2130 = vmul.f32 %v1955, 1.442695
        %v2131 = vpow.pop %v2130
        %v2132 = vmul.f32 %v1956, 1.442695
        %v2133 = vpow.pop %v2132
        %v2134 = vmul.f32 %v1957, 1.442695
        %v2135 = vpow.pop %v2134
        %v2136 = vmul.f32 %v1958, 1.442695
        %v2137 = vpow.pop %v2136
        %v2138 = vmul.f32 %v1959, 1.442695
        %v2139 = vpow.pop %v2138
        %v2140 = vmul.f32 %v1960, 1.442695
        %v2141 = vpow.pop %v2140
        %v2142 = vmul.f32 %v1961, 1.442695
        %v2143 = vpow.pop %v2142
        %v2144 = vmul.f32 %v1962, 1.442695
        %v2145 = vpow.pop %v2144
        %v2146 = vmul.f32 %v1963, 1.442695
        %v2147 = vpow.pop %v2146
        %v2148 = vmul.f32 %v1964, 1.442695
        %v2149 = vpow.pop %v2148
        %v2150 = vmul.f32 %v1965, 1.442695
        %v2151 = vpow.pop %v2150
        %v2152 = vmul.f32 %v1966, 1.442695
        %v2153 = vpow.pop %v2152
        %v2154 = vmul.f32 %v1967, 1.442695
        %v2155 = vpow.pop %v2154
        %v2156 = vmul.f32 %v1968, 1.442695
        %v2157 = vpow.pop %v2156
        %v2158 = vmul.f32 %v1969, 1.442695
        %v2159 = vpow.pop %v2158
        %v2160 = vmul.f32 %v1970, 1.442695
        %v2161 = vpow.pop %v2160
        %v2162 = vmul.f32 %v1971, 1.442695
        %v2163 = vpow.pop %v2162
        %v2164 = vmul.f32 %v1972, 1.442695
        %v2165 = vpow.pop %v2164
        %v2166 = vmul.f32 %v1973, 1.442695
        %v2167 = vpow.pop %v2166
        %v2168 = vmul.f32 %v1974, 1.442695
        %v2169 = vpow.pop %v2168
        %v2170 = vmul.f32 %v1975, 1.442695
        %v2171 = vpow.pop %v2170
        %v2172 = vmul.f32 %v1976, 1.442695
        %v2173 = vpow.pop %v2172
        %v2174 = vmul.f32 %v1977, 1.442695
        %v2175 = vpow.pop %v2174
        %v2176 = vmul.f32 %v1978, 1.442695
        %v2177 = vpow.pop %v2176
        %v2178 = vmul.f32 %v1979, 1.442695
        %v2179 = vpow.pop %v2178
        %v2180 = vmul.f32 %v1980, 1.442695
        %v2181 = vpow.pop %v2180
        %v2182 = vmul.f32 %v1981, 1.442695
        %v2183 = vpow.pop %v2182
        %v2184 = vmul.f32 %v1982, 1.442695
        %v2185 = vpow.pop %v2184
        %v2186 = vmul.f32 %v1983, 1.442695
        %v2187 = vpow.pop %v2186
        %v2188 = vmul.f32 %v1984, 1.442695
        %v2189 = vpow.pop %v2188
        %v2190 = vmul.f32 %v1985, 1.442695
        %v2191 = vpow.pop %v2190
        %v2192 = vmul.f32 %v1986, 1.442695
        %v2193 = vpow.pop %v2192
        %v2194 = vmul.f32 %v1987, 1.442695
        %v2195 = vpow.pop %v2194
        %v2196 = vmul.f32 %v1988, 1.442695
        %v2197 = vpow.pop %v2196
        %v2198 = vmul.f32 %v1989, 1.442695
        %v2199 = vpow.pop %v2198
        %v2200 = vmul.f32 %v1990, 1.442695
        %v2201 = vpow.pop %v2200
        %v2202 = vmul.f32 %v1991, 1.442695
        %v2203 = vpow.pop %v2202
        %v2204 = vmul.f32 %v1992, 1.442695
        %v2205 = vpow.pop %v2204
        %v2206 = vmul.f32 %v1993, 1.442695
        %v2207 = vpow.pop %v2206
        %v2208 = vmul.f32 %v1994, 1.442695
        %v2209 = vpow.pop %v2208
        %v2210 = vmul.f32 %v1995, 1.442695
        %v2211 = vpow.pop %v2210
        %v2212 = vmul.f32 %v1996, 1.442695
        %v2213 = vpow.pop %v2212
        %v2214 = vmul.f32 %v1997, 1.442695
        %v2215 = vpow.pop %v2214
        %v2216 = vmul.f32 %v1998, 1.442695
        %v2217 = vpow.pop %v2216
        %v2218 = vmul.f32 %v1999, 1.442695
        %v2219 = vpow.pop %v2218
        %v2220 = vmul.f32 %v2000, 1.442695
        %v2221 = vpow.pop %v2220
        %v2222 = vmul.f32 %v2001, 1.442695
        %v2223 = vpow.pop %v2222
        %v2224 = vmul.f32 %v2002, 1.442695
        %v2225 = vpow.pop %v2224
        %v2226 = vmul.f32 %v2003, 1.442695
        %v2227 = vpow.pop %v2226
        %v2228 = vmul.f32 %v2004, 1.442695
        %v2229 = vpow.pop %v2228
        %v2230 = vmul.f32 %v2005, 1.442695
        %v2231 = vpow.pop %v2230
        %v2232 = vmul.f32 %v2006, 1.442695
        %v2233 = vpow.pop %v2232
        %v2234 = vmul.f32 %v2007, 1.442695
        %v2235 = vpow.pop %v2234
        %v2236 = vmul.f32 %v2008, 1.442695
        %v2237 = vpow.pop %v2236
        %v2238 = vmul.f32 %v2009, 1.442695
        %v2239 = vpow.pop %v2238
        %v2240 = vmul.f32 %v2010, 1.442695
        %v2241 = vpow.pop %v2240
        %v2242 = vmul.f32 %v2011, 1.442695
        %v2243 = vpow.pop %v2242
        %v2244 = vmul.f32 %v2012, 1.442695
        %v2245 = vpow.pop %v2244
        %v2246 = vmul.f32 %v2013, 1.442695
        %v2247 = vpow.pop %v2246
        %v2248 = vmul.f32 %v2014, 1.442695
        %v2249 = vpow.pop %v2248
        %v2250 = vmul.f32 %v2015, 1.442695
        %v2251 = vpow.pop %v2250
        %v2252 = vmul.f32 %v2016, 1.442695
        %v2253 = vpow.pop %v2252
        %v2254 = vmul.f32 %v2017, 1.442695
        %v2255 = vpow.pop %v2254
        %v2256 = vmul.f32 %v2018, 1.442695
        %v2257 = vpow.pop %v2256
        %v2258 = vmul.f32 %v2019, 1.442695
        %v2259 = vpow.pop %v2258
        %v2260 = vmul.f32 %v2020, 1.442695
        %v2261 = vpow.pop %v2260
        %v2262 = vmul.f32 %v2021, 1.442695
        %v2263 = vpow.pop %v2262
        %v2264 = vmul.f32 %v2022, 1.442695
        %v2265 = vpow.pop %v2264
        %v2266 = vmul.f32 %v2023, 1.442695
        %v2267 = vpow.pop %v2266
        %v2268 = vmul.f32 %v2024, 1.442695
        %v2269 = vpow.pop %v2268
        %v2270 = vmul.f32 %v2025, 1.442695
        %v2271 = vpow.pop %v2270
        %v2272 = vmul.f32 %v2026, 1.442695
        %v2273 = vpow.pop %v2272
        %v2274 = vmul.f32 %v2027, 1.442695
        %v2275 = vpow.pop %v2274
        %v2276 = vmul.f32 %v2028, 1.442695
        %v2277 = vpow.pop %v2276
        %v2278 = vmul.f32 %v2029, 1.442695
        %v2279 = vpow.pop %v2278
        %v2280 = vmul.f32 %v2030, 1.442695
        %v2281 = vpow.pop %v2280
        %v2282 = vmul.f32 %v2031, 1.442695
        %v2283 = vpow.pop %v2282
        %v2284 = vmul.f32 %v2032, 1.442695
        %v2285 = vpow.pop %v2284
        %v2286 = vmul.f32 %v2033, 1.442695
        %v2287 = vpow.pop %v2286
        %v2288 = vmul.f32 %v2034, 1.442695
        %v2289 = vpow.pop %v2288
        %v2290 = vmul.f32 %v2035, 1.442695
        %v2291 = vpow.pop %v2290
        %v2292 = vadd.f32 %v2037, %v2039
        %2293 = vadd.xlane.f32.xlu0 %v2292
        %v2294 = vpop.xlane.xlu0 %2293
        %v2295 = vadd.f32 %v2041, %v2043
        %2296 = vadd.xlane.f32.xlu0 %v2295
        %v2297 = vpop.xlane.xlu0 %2296
        %v2298 = vadd.f32 %v2045, %v2047
        %2299 = vadd.xlane.f32.xlu0 %v2298
        %v2300 = vpop.xlane.xlu0 %2299
        %v2301 = vadd.f32 %v2049, %v2051
        %2302 = vadd.xlane.f32.xlu0 %v2301
        %v2303 = vpop.xlane.xlu0 %2302
        %v2304 = vadd.f32 %v2053, %v2055
        %2305 = vadd.xlane.f32.xlu0 %v2304
        %v2306 = vpop.xlane.xlu0 %2305
        %v2307 = vadd.f32 %v2057, %v2059
        %2308 = vadd.xlane.f32.xlu0 %v2307
        %v2309 = vpop.xlane.xlu0 %2308
        %v2310 = vadd.f32 %v2061, %v2063
        %2311 = vadd.xlane.f32.xlu0 %v2310
        %v2312 = vpop.xlane.xlu0 %2311
        %v2313 = vadd.f32 %v2065, %v2067
        %2314 = vadd.xlane.f32.xlu0 %v2313
        %v2315 = vpop.xlane.xlu0 %2314
        %v2316 = vadd.f32 %v2069, %v2071
        %2317 = vadd.xlane.f32.xlu0 %v2316
        %v2318 = vpop.xlane.xlu0 %2317
        %v2319 = vadd.f32 %v2073, %v2075
        %2320 = vadd.xlane.f32.xlu0 %v2319
        %v2321 = vpop.xlane.xlu0 %2320
        %v2322 = vadd.f32 %v2077, %v2079
        %2323 = vadd.xlane.f32.xlu0 %v2322
        %v2324 = vpop.xlane.xlu0 %2323
        %v2325 = vadd.f32 %v2081, %v2083
        %2326 = vadd.xlane.f32.xlu0 %v2325
        %v2327 = vpop.xlane.xlu0 %2326
        %v2328 = vadd.f32 %v2085, %v2087
        %2329 = vadd.xlane.f32.xlu0 %v2328
        %v2330 = vpop.xlane.xlu0 %2329
        %v2331 = vadd.f32 %v2089, %v2091
        %2332 = vadd.xlane.f32.xlu0 %v2331
        %v2333 = vpop.xlane.xlu0 %2332
        %v2334 = vadd.f32 %v2093, %v2095
        %2335 = vadd.xlane.f32.xlu0 %v2334
        %v2336 = vpop.xlane.xlu0 %2335
        %v2337 = vadd.f32 %v2097, %v2099
        %2338 = vadd.xlane.f32.xlu0 %v2337
        %v2339 = vpop.xlane.xlu0 %2338
        %v2340 = vadd.f32 %v2101, %v2103
        %2341 = vadd.xlane.f32.xlu0 %v2340
        %v2342 = vpop.xlane.xlu0 %2341
        %v2343 = vadd.f32 %v2105, %v2107
        %2344 = vadd.xlane.f32.xlu0 %v2343
        %v2345 = vpop.xlane.xlu0 %2344
        %v2346 = vadd.f32 %v2109, %v2111
        %2347 = vadd.xlane.f32.xlu0 %v2346
        %v2348 = vpop.xlane.xlu0 %2347
        %v2349 = vadd.f32 %v2113, %v2115
        %2350 = vadd.xlane.f32.xlu0 %v2349
        %v2351 = vpop.xlane.xlu0 %2350
        %v2352 = vadd.f32 %v2117, %v2119
        %2353 = vadd.xlane.f32.xlu0 %v2352
        %v2354 = vpop.xlane.xlu0 %2353
        %v2355 = vadd.f32 %v2121, %v2123
        %2356 = vadd.xlane.f32.xlu0 %v2355
        %v2357 = vpop.xlane.xlu0 %2356
        %v2358 = vadd.f32 %v2125, %v2127
        %2359 = vadd.xlane.f32.xlu0 %v2358
        %v2360 = vpop.xlane.xlu0 %2359
        %v2361 = vadd.f32 %v2129, %v2131
        %2362 = vadd.xlane.f32.xlu0 %v2361
        %v2363 = vpop.xlane.xlu0 %2362
        %v2364 = vadd.f32 %v2133, %v2135
        %2365 = vadd.xlane.f32.xlu0 %v2364
        %v2366 = vpop.xlane.xlu0 %2365
        %v2367 = vadd.f32 %v2137, %v2139
        %2368 = vadd.xlane.f32.xlu0 %v2367
        %v2369 = vpop.xlane.xlu0 %2368
        %v2370 = vadd.f32 %v2141, %v2143
        %2371 = vadd.xlane.f32.xlu0 %v2370
        %v2372 = vpop.xlane.xlu0 %2371
        %v2373 = vadd.f32 %v2145, %v2147
        %2374 = vadd.xlane.f32.xlu0 %v2373
        %v2375 = vpop.xlane.xlu0 %2374
        %v2376 = vadd.f32 %v2149, %v2151
        %2377 = vadd.xlane.f32.xlu0 %v2376
        %v2378 = vpop.xlane.xlu0 %2377
        %v2379 = vadd.f32 %v2153, %v2155
        %2380 = vadd.xlane.f32.xlu0 %v2379
        %v2381 = vpop.xlane.xlu0 %2380
        %v2382 = vadd.f32 %v2157, %v2159
        %2383 = vadd.xlane.f32.xlu0 %v2382
        %v2384 = vpop.xlane.xlu0 %2383
        %v2385 = vadd.f32 %v2161, %v2163
        %2386 = vadd.xlane.f32.xlu0 %v2385
        %v2387 = vpop.xlane.xlu0 %2386
        %v2388 = vadd.f32 %v2165, %v2167
        %2389 = vadd.xlane.f32.xlu0 %v2388
        %v2390 = vpop.xlane.xlu0 %2389
        %v2391 = vadd.f32 %v2169, %v2171
        %2392 = vadd.xlane.f32.xlu0 %v2391
        %v2393 = vpop.xlane.xlu0 %2392
        %v2394 = vadd.f32 %v2173, %v2175
        %2395 = vadd.xlane.f32.xlu0 %v2394
        %v2396 = vpop.xlane.xlu0 %2395
        %v2397 = vadd.f32 %v2177, %v2179
        %2398 = vadd.xlane.f32.xlu0 %v2397
        %v2399 = vpop.xlane.xlu0 %2398
        %v2400 = vadd.f32 %v2181, %v2183
        %2401 = vadd.xlane.f32.xlu0 %v2400
        %v2402 = vpop.xlane.xlu0 %2401
        %v2403 = vadd.f32 %v2185, %v2187
        %2404 = vadd.xlane.f32.xlu0 %v2403
        %v2405 = vpop.xlane.xlu0 %2404
        %v2406 = vadd.f32 %v2189, %v2191
        %2407 = vadd.xlane.f32.xlu0 %v2406
        %v2408 = vpop.xlane.xlu0 %2407
        %v2409 = vadd.f32 %v2193, %v2195
        %2410 = vadd.xlane.f32.xlu0 %v2409
        %v2411 = vpop.xlane.xlu0 %2410
        %v2412 = vadd.f32 %v2197, %v2199
        %2413 = vadd.xlane.f32.xlu0 %v2412
        %v2414 = vpop.xlane.xlu0 %2413
        %v2415 = vadd.f32 %v2201, %v2203
        %2416 = vadd.xlane.f32.xlu0 %v2415
        %v2417 = vpop.xlane.xlu0 %2416
        %v2418 = vadd.f32 %v2205, %v2207
        %2419 = vadd.xlane.f32.xlu0 %v2418
        %v2420 = vpop.xlane.xlu0 %2419
        %v2421 = vadd.f32 %v2209, %v2211
        %2422 = vadd.xlane.f32.xlu0 %v2421
        %v2423 = vpop.xlane.xlu0 %2422
        %v2424 = vadd.f32 %v2213, %v2215
        %2425 = vadd.xlane.f32.xlu0 %v2424
        %v2426 = vpop.xlane.xlu0 %2425
        %v2427 = vadd.f32 %v2217, %v2219
        %2428 = vadd.xlane.f32.xlu0 %v2427
        %v2429 = vpop.xlane.xlu0 %2428
        %v2430 = vadd.f32 %v2221, %v2223
        %2431 = vadd.xlane.f32.xlu0 %v2430
        %v2432 = vpop.xlane.xlu0 %2431
        %v2433 = vadd.f32 %v2225, %v2227
        %2434 = vadd.xlane.f32.xlu0 %v2433
        %v2435 = vpop.xlane.xlu0 %2434
        %v2436 = vadd.f32 %v2229, %v2231
        %2437 = vadd.xlane.f32.xlu0 %v2436
        %v2438 = vpop.xlane.xlu0 %2437
        %v2439 = vadd.f32 %v2233, %v2235
        %2440 = vadd.xlane.f32.xlu0 %v2439
        %v2441 = vpop.xlane.xlu0 %2440
        %v2442 = vadd.f32 %v2237, %v2239
        %2443 = vadd.xlane.f32.xlu0 %v2442
        %v2444 = vpop.xlane.xlu0 %2443
        %v2445 = vadd.f32 %v2241, %v2243
        %2446 = vadd.xlane.f32.xlu0 %v2445
        %v2447 = vpop.xlane.xlu0 %2446
        %v2448 = vadd.f32 %v2245, %v2247
        %2449 = vadd.xlane.f32.xlu0 %v2448
        %v2450 = vpop.xlane.xlu0 %2449
        %v2451 = vadd.f32 %v2249, %v2251
        %2452 = vadd.xlane.f32.xlu0 %v2451
        %v2453 = vpop.xlane.xlu0 %2452
        %v2454 = vadd.f32 %v2253, %v2255
        %2455 = vadd.xlane.f32.xlu0 %v2454
        %v2456 = vpop.xlane.xlu0 %2455
        %v2457 = vadd.f32 %v2257, %v2259
        %2458 = vadd.xlane.f32.xlu0 %v2457
        %v2459 = vpop.xlane.xlu0 %2458
        %v2460 = vadd.f32 %v2261, %v2263
        %2461 = vadd.xlane.f32.xlu0 %v2460
        %v2462 = vpop.xlane.xlu0 %2461
        %v2463 = vadd.f32 %v2265, %v2267
        %2464 = vadd.xlane.f32.xlu0 %v2463
        %v2465 = vpop.xlane.xlu0 %2464
        %v2466 = vadd.f32 %v2269, %v2271
        %2467 = vadd.xlane.f32.xlu0 %v2466
        %v2468 = vpop.xlane.xlu0 %2467
        %v2469 = vadd.f32 %v2273, %v2275
        %2470 = vadd.xlane.f32.xlu0 %v2469
        %v2471 = vpop.xlane.xlu0 %2470
        %v2472 = vadd.f32 %v2277, %v2279
        %2473 = vadd.xlane.f32.xlu0 %v2472
        %v2474 = vpop.xlane.xlu0 %2473
        %v2475 = vadd.f32 %v2281, %v2283
        %2476 = vadd.xlane.f32.xlu0 %v2475
        %v2477 = vpop.xlane.xlu0 %2476
        %v2478 = vadd.f32 %v2285, %v2287
        %2479 = vadd.xlane.f32.xlu0 %v2478
        %v2480 = vpop.xlane.xlu0 %2479
        %v2481 = vadd.f32 %v2289, %v2291
        %2482 = vadd.xlane.f32.xlu0 %v2481
        %v2483 = vpop.xlane.xlu0 %2482
        %v2484 = vrcp.pop %v2294
        %v2485 = vrcp.pop %v2297
        %v2486 = vrcp.pop %v2300
        %v2487 = vrcp.pop %v2303
        %v2488 = vrcp.pop %v2306
        %v2489 = vrcp.pop %v2309
        %v2490 = vrcp.pop %v2312
        %v2491 = vrcp.pop %v2315
        %v2492 = vrcp.pop %v2318
        %v2493 = vrcp.pop %v2321
        %v2494 = vrcp.pop %v2324
        %v2495 = vrcp.pop %v2327
        %v2496 = vrcp.pop %v2330
        %v2497 = vrcp.pop %v2333
        %v2498 = vrcp.pop %v2336
        %v2499 = vrcp.pop %v2339
        %v2500 = vrcp.pop %v2342
        %v2501 = vrcp.pop %v2345
        %v2502 = vrcp.pop %v2348
        %v2503 = vrcp.pop %v2351
        %v2504 = vrcp.pop %v2354
        %v2505 = vrcp.pop %v2357
        %v2506 = vrcp.pop %v2360
        %v2507 = vrcp.pop %v2363
        %v2508 = vrcp.pop %v2366
        %v2509 = vrcp.pop %v2369
        %v2510 = vrcp.pop %v2372
        %v2511 = vrcp.pop %v2375
        %v2512 = vrcp.pop %v2378
        %v2513 = vrcp.pop %v2381
        %v2514 = vrcp.pop %v2384
        %v2515 = vrcp.pop %v2387
        %v2516 = vrcp.pop %v2390
        %v2517 = vrcp.pop %v2393
        %v2518 = vrcp.pop %v2396
        %v2519 = vrcp.pop %v2399
        %v2520 = vrcp.pop %v2402
        %v2521 = vrcp.pop %v2405
        %v2522 = vrcp.pop %v2408
        %v2523 = vrcp.pop %v2411
        %v2524 = vrcp.pop %v2414
        %v2525 = vrcp.pop %v2417
        %v2526 = vrcp.pop %v2420
        %v2527 = vrcp.pop %v2423
        %v2528 = vrcp.pop %v2426
        %v2529 = vrcp.pop %v2429
        %v2530 = vrcp.pop %v2432
        %v2531 = vrcp.pop %v2435
        %v2532 = vrcp.pop %v2438
        %v2533 = vrcp.pop %v2441
        %v2534 = vrcp.pop %v2444
        %v2535 = vrcp.pop %v2447
        %v2536 = vrcp.pop %v2450
        %v2537 = vrcp.pop %v2453
        %v2538 = vrcp.pop %v2456
        %v2539 = vrcp.pop %v2459
        %v2540 = vrcp.pop %v2462
        %v2541 = vrcp.pop %v2465
        %v2542 = vrcp.pop %v2468
        %v2543 = vrcp.pop %v2471
        %v2544 = vrcp.pop %v2474
        %v2545 = vrcp.pop %v2477
        %v2546 = vrcp.pop %v2480
        %v2547 = vrcp.pop %v2483
        %v2548 = vmul.f32 %v2294, %v2484
        %v2549 = vmul.f32 %v2297, %v2485
        %v2550 = vmul.f32 %v2300, %v2486
        %v2551 = vmul.f32 %v2303, %v2487
        %v2552 = vmul.f32 %v2306, %v2488
        %v2553 = vmul.f32 %v2309, %v2489
        %v2554 = vmul.f32 %v2312, %v2490
        %v2555 = vmul.f32 %v2315, %v2491
        %v2556 = vmul.f32 %v2318, %v2492
        %v2557 = vmul.f32 %v2321, %v2493
        %v2558 = vmul.f32 %v2324, %v2494
        %v2559 = vmul.f32 %v2327, %v2495
        %v2560 = vmul.f32 %v2330, %v2496
        %v2561 = vmul.f32 %v2333, %v2497
        %v2562 = vmul.f32 %v2336, %v2498
        %v2563 = vmul.f32 %v2339, %v2499
        %v2564 = vmul.f32 %v2342, %v2500
        %v2565 = vmul.f32 %v2345, %v2501
        %v2566 = vmul.f32 %v2348, %v2502
        %v2567 = vmul.f32 %v2351, %v2503
        %v2568 = vmul.f32 %v2354, %v2504
        %v2569 = vmul.f32 %v2357, %v2505
        %v2570 = vmul.f32 %v2360, %v2506
        %v2571 = vmul.f32 %v2363, %v2507
        %v2572 = vmul.f32 %v2366, %v2508
        %v2573 = vmul.f32 %v2369, %v2509
        %v2574 = vmul.f32 %v2372, %v2510
        %v2575 = vmul.f32 %v2375, %v2511
        %v2576 = vmul.f32 %v2378, %v2512
        %v2577 = vmul.f32 %v2381, %v2513
        %v2578 = vmul.f32 %v2384, %v2514
        %v2579 = vmul.f32 %v2387, %v2515
        %v2580 = vmul.f32 %v2390, %v2516
        %v2581 = vmul.f32 %v2393, %v2517
        %v2582 = vmul.f32 %v2396, %v2518
        %v2583 = vmul.f32 %v2399, %v2519
        %v2584 = vmul.f32 %v2402, %v2520
        %v2585 = vmul.f32 %v2405, %v2521
        %v2586 = vmul.f32 %v2408, %v2522
        %v2587 = vmul.f32 %v2411, %v2523
        %v2588 = vmul.f32 %v2414, %v2524
        %v2589 = vmul.f32 %v2417, %v2525
        %v2590 = vmul.f32 %v2420, %v2526
        %v2591 = vmul.f32 %v2423, %v2527
        %v2592 = vmul.f32 %v2426, %v2528
        %v2593 = vmul.f32 %v2429, %v2529
        %v2594 = vmul.f32 %v2432, %v2530
        %v2595 = vmul.f32 %v2435, %v2531
        %v2596 = vmul.f32 %v2438, %v2532
        %v2597 = vmul.f32 %v2441, %v2533
        %v2598 = vmul.f32 %v2444, %v2534
        %v2599 = vmul.f32 %v2447, %v2535
        %v2600 = vmul.f32 %v2450, %v2536
        %v2601 = vmul.f32 %v2453, %v2537
        %v2602 = vmul.f32 %v2456, %v2538
        %v2603 = vmul.f32 %v2459, %v2539
        %v2604 = vmul.f32 %v2462, %v2540
        %v2605 = vmul.f32 %v2465, %v2541
        %v2606 = vmul.f32 %v2468, %v2542
        %v2607 = vmul.f32 %v2471, %v2543
        %v2608 = vmul.f32 %v2474, %v2544
        %v2609 = vmul.f32 %v2477, %v2545
        %v2610 = vmul.f32 %v2480, %v2546
        %v2611 = vmul.f32 %v2483, %v2547
        %v2612 = vsub.f32 2.0, %v2548
        %v2613 = vsub.f32 2.0, %v2549
        %v2614 = vsub.f32 2.0, %v2550
        %v2615 = vsub.f32 2.0, %v2551
        %v2616 = vsub.f32 2.0, %v2552
        %v2617 = vsub.f32 2.0, %v2553
        %v2618 = vsub.f32 2.0, %v2554
        %v2619 = vsub.f32 2.0, %v2555
        %v2620 = vsub.f32 2.0, %v2556
        %v2621 = vsub.f32 2.0, %v2557
        %v2622 = vsub.f32 2.0, %v2558
        %v2623 = vsub.f32 2.0, %v2559
        %v2624 = vsub.f32 2.0, %v2560
        %v2625 = vsub.f32 2.0, %v2561
        %v2626 = vsub.f32 2.0, %v2562
        %v2627 = vsub.f32 2.0, %v2563
        %v2628 = vsub.f32 2.0, %v2564
        %v2629 = vsub.f32 2.0, %v2565
        %v2630 = vsub.f32 2.0, %v2566
        %v2631 = vsub.f32 2.0, %v2567
        %v2632 = vsub.f32 2.0, %v2568
        %v2633 = vsub.f32 2.0, %v2569
        %v2634 = vsub.f32 2.0, %v2570
        %v2635 = vsub.f32 2.0, %v2571
        %v2636 = vsub.f32 2.0, %v2572
        %v2637 = vsub.f32 2.0, %v2573
        %v2638 = vsub.f32 2.0, %v2574
        %v2639 = vsub.f32 2.0, %v2575
        %v2640 = vsub.f32 2.0, %v2576
        %v2641 = vsub.f32 2.0, %v2577
        %v2642 = vsub.f32 2.0, %v2578
        %v2643 = vsub.f32 2.0, %v2579
        %v2644 = vsub.f32 2.0, %v2580
        %v2645 = vsub.f32 2.0, %v2581
        %v2646 = vsub.f32 2.0, %v2582
        %v2647 = vsub.f32 2.0, %v2583
        %v2648 = vsub.f32 2.0, %v2584
        %v2649 = vsub.f32 2.0, %v2585
        %v2650 = vsub.f32 2.0, %v2586
        %v2651 = vsub.f32 2.0, %v2587
        %v2652 = vsub.f32 2.0, %v2588
        %v2653 = vsub.f32 2.0, %v2589
        %v2654 = vsub.f32 2.0, %v2590
        %v2655 = vsub.f32 2.0, %v2591
        %v2656 = vsub.f32 2.0, %v2592
        %v2657 = vsub.f32 2.0, %v2593
        %v2658 = vsub.f32 2.0, %v2594
        %v2659 = vsub.f32 2.0, %v2595
        %v2660 = vsub.f32 2.0, %v2596
        %v2661 = vsub.f32 2.0, %v2597
        %v2662 = vsub.f32 2.0, %v2598
        %v2663 = vsub.f32 2.0, %v2599
        %v2664 = vsub.f32 2.0, %v2600
        %v2665 = vsub.f32 2.0, %v2601
        %v2666 = vsub.f32 2.0, %v2602
        %v2667 = vsub.f32 2.0, %v2603
        %v2668 = vsub.f32 2.0, %v2604
        %v2669 = vsub.f32 2.0, %v2605
        %v2670 = vsub.f32 2.0, %v2606
        %v2671 = vsub.f32 2.0, %v2607
        %v2672 = vsub.f32 2.0, %v2608
        %v2673 = vsub.f32 2.0, %v2609
        %v2674 = vsub.f32 2.0, %v2610
        %v2675 = vsub.f32 2.0, %v2611
        %v2676 = vmul.f32 %v2484, %v2612
        %v2677 = vmul.f32 %v2485, %v2613
        %v2678 = vmul.f32 %v2486, %v2614
        %v2679 = vmul.f32 %v2487, %v2615
        %v2680 = vmul.f32 %v2488, %v2616
        %v2681 = vmul.f32 %v2489, %v2617
        %v2682 = vmul.f32 %v2490, %v2618
        %v2683 = vmul.f32 %v2491, %v2619
        %v2684 = vmul.f32 %v2492, %v2620
        %v2685 = vmul.f32 %v2493, %v2621
        %v2686 = vmul.f32 %v2494, %v2622
        %v2687 = vmul.f32 %v2495, %v2623
        %v2688 = vmul.f32 %v2496, %v2624
        %v2689 = vmul.f32 %v2497, %v2625
        %v2690 = vmul.f32 %v2498, %v2626
        %v2691 = vmul.f32 %v2499, %v2627
        %v2692 = vmul.f32 %v2500, %v2628
        %v2693 = vmul.f32 %v2501, %v2629
        %v2694 = vmul.f32 %v2502, %v2630
        %v2695 = vmul.f32 %v2503, %v2631
        %v2696 = vmul.f32 %v2504, %v2632
        %v2697 = vmul.f32 %v2505, %v2633
        %v2698 = vmul.f32 %v2506, %v2634
        %v2699 = vmul.f32 %v2507, %v2635
        %v2700 = vmul.f32 %v2508, %v2636
        %v2701 = vmul.f32 %v2509, %v2637
        %v2702 = vmul.f32 %v2510, %v2638
        %v2703 = vmul.f32 %v2511, %v2639
        %v2704 = vmul.f32 %v2512, %v2640
        %v2705 = vmul.f32 %v2513, %v2641
        %v2706 = vmul.f32 %v2514, %v2642
        %v2707 = vmul.f32 %v2515, %v2643
        %v2708 = vmul.f32 %v2516, %v2644
        %v2709 = vmul.f32 %v2517, %v2645
        %v2710 = vmul.f32 %v2518, %v2646
        %v2711 = vmul.f32 %v2519, %v2647
        %v2712 = vmul.f32 %v2520, %v2648
        %v2713 = vmul.f32 %v2521, %v2649
        %v2714 = vmul.f32 %v2522, %v2650
        %v2715 = vmul.f32 %v2523, %v2651
        %v2716 = vmul.f32 %v2524, %v2652
        %v2717 = vmul.f32 %v2525, %v2653
        %v2718 = vmul.f32 %v2526, %v2654
        %v2719 = vmul.f32 %v2527, %v2655
        %v2720 = vmul.f32 %v2528, %v2656
        %v2721 = vmul.f32 %v2529, %v2657
        %v2722 = vmul.f32 %v2530, %v2658
        %v2723 = vmul.f32 %v2531, %v2659
        %v2724 = vmul.f32 %v2532, %v2660
        %v2725 = vmul.f32 %v2533, %v2661
        %v2726 = vmul.f32 %v2534, %v2662
        %v2727 = vmul.f32 %v2535, %v2663
        %v2728 = vmul.f32 %v2536, %v2664
        %v2729 = vmul.f32 %v2537, %v2665
        %v2730 = vmul.f32 %v2538, %v2666
        %v2731 = vmul.f32 %v2539, %v2667
        %v2732 = vmul.f32 %v2540, %v2668
        %v2733 = vmul.f32 %v2541, %v2669
        %v2734 = vmul.f32 %v2542, %v2670
        %v2735 = vmul.f32 %v2543, %v2671
        %v2736 = vmul.f32 %v2544, %v2672
        %v2737 = vmul.f32 %v2545, %v2673
        %v2738 = vmul.f32 %v2546, %v2674
        %v2739 = vmul.f32 %v2547, %v2675
        %v2740 = vmul.f32 %v2037, %v2676
        %v2741 = vmul.f32 %v2039, %v2676
        %v2742 = vmul.f32 %v2041, %v2677
        %v2743 = vmul.f32 %v2043, %v2677
        %v2744 = vmul.f32 %v2045, %v2678
        %v2745 = vmul.f32 %v2047, %v2678
        %v2746 = vmul.f32 %v2049, %v2679
        %v2747 = vmul.f32 %v2051, %v2679
        %v2748 = vmul.f32 %v2053, %v2680
        %v2749 = vmul.f32 %v2055, %v2680
        %v2750 = vmul.f32 %v2057, %v2681
        %v2751 = vmul.f32 %v2059, %v2681
        %v2752 = vmul.f32 %v2061, %v2682
        %v2753 = vmul.f32 %v2063, %v2682
        %v2754 = vmul.f32 %v2065, %v2683
        %v2755 = vmul.f32 %v2067, %v2683
        %v2756 = vmul.f32 %v2069, %v2684
        %v2757 = vmul.f32 %v2071, %v2684
        %v2758 = vmul.f32 %v2073, %v2685
        %v2759 = vmul.f32 %v2075, %v2685
        %v2760 = vmul.f32 %v2077, %v2686
        %v2761 = vmul.f32 %v2079, %v2686
        %v2762 = vmul.f32 %v2081, %v2687
        %v2763 = vmul.f32 %v2083, %v2687
        %v2764 = vmul.f32 %v2085, %v2688
        %v2765 = vmul.f32 %v2087, %v2688
        %v2766 = vmul.f32 %v2089, %v2689
        %v2767 = vmul.f32 %v2091, %v2689
        %v2768 = vmul.f32 %v2093, %v2690
        %v2769 = vmul.f32 %v2095, %v2690
        %v2770 = vmul.f32 %v2097, %v2691
        %v2771 = vmul.f32 %v2099, %v2691
        %v2772 = vmul.f32 %v2101, %v2692
        %v2773 = vmul.f32 %v2103, %v2692
        %v2774 = vmul.f32 %v2105, %v2693
        %v2775 = vmul.f32 %v2107, %v2693
        %v2776 = vmul.f32 %v2109, %v2694
        %v2777 = vmul.f32 %v2111, %v2694
        %v2778 = vmul.f32 %v2113, %v2695
        %v2779 = vmul.f32 %v2115, %v2695
        %v2780 = vmul.f32 %v2117, %v2696
        %v2781 = vmul.f32 %v2119, %v2696
        %v2782 = vmul.f32 %v2121, %v2697
        %v2783 = vmul.f32 %v2123, %v2697
        %v2784 = vmul.f32 %v2125, %v2698
        %v2785 = vmul.f32 %v2127, %v2698
        %v2786 = vmul.f32 %v2129, %v2699
        %v2787 = vmul.f32 %v2131, %v2699
        %v2788 = vmul.f32 %v2133, %v2700
        %v2789 = vmul.f32 %v2135, %v2700
        %v2790 = vmul.f32 %v2137, %v2701
        %v2791 = vmul.f32 %v2139, %v2701
        %v2792 = vmul.f32 %v2141, %v2702
        %v2793 = vmul.f32 %v2143, %v2702
        %v2794 = vmul.f32 %v2145, %v2703
        %v2795 = vmul.f32 %v2147, %v2703
        %v2796 = vmul.f32 %v2149, %v2704
        %v2797 = vmul.f32 %v2151, %v2704
        %v2798 = vmul.f32 %v2153, %v2705
        %v2799 = vmul.f32 %v2155, %v2705
        %v2800 = vmul.f32 %v2157, %v2706
        %v2801 = vmul.f32 %v2159, %v2706
        %v2802 = vmul.f32 %v2161, %v2707
        %v2803 = vmul.f32 %v2163, %v2707
        %v2804 = vmul.f32 %v2165, %v2708
        %v2805 = vmul.f32 %v2167, %v2708
        %v2806 = vmul.f32 %v2169, %v2709
        %v2807 = vmul.f32 %v2171, %v2709
        %v2808 = vmul.f32 %v2173, %v2710
        %v2809 = vmul.f32 %v2175, %v2710
        %v2810 = vmul.f32 %v2177, %v2711
        %v2811 = vmul.f32 %v2179, %v2711
        %v2812 = vmul.f32 %v2181, %v2712
        %v2813 = vmul.f32 %v2183, %v2712
        %v2814 = vmul.f32 %v2185, %v2713
        %v2815 = vmul.f32 %v2187, %v2713
        %v2816 = vmul.f32 %v2189, %v2714
        %v2817 = vmul.f32 %v2191, %v2714
        %v2818 = vmul.f32 %v2193, %v2715
        %v2819 = vmul.f32 %v2195, %v2715
        %v2820 = vmul.f32 %v2197, %v2716
        %v2821 = vmul.f32 %v2199, %v2716
        %v2822 = vmul.f32 %v2201, %v2717
        %v2823 = vmul.f32 %v2203, %v2717
        %v2824 = vmul.f32 %v2205, %v2718
        %v2825 = vmul.f32 %v2207, %v2718
        %v2826 = vmul.f32 %v2209, %v2719
        %v2827 = vmul.f32 %v2211, %v2719
        %v2828 = vmul.f32 %v2213, %v2720
        %v2829 = vmul.f32 %v2215, %v2720
        %v2830 = vmul.f32 %v2217, %v2721
        %v2831 = vmul.f32 %v2219, %v2721
        %v2832 = vmul.f32 %v2221, %v2722
        %v2833 = vmul.f32 %v2223, %v2722
        %v2834 = vmul.f32 %v2225, %v2723
        %v2835 = vmul.f32 %v2227, %v2723
        %v2836 = vmul.f32 %v2229, %v2724
        %v2837 = vmul.f32 %v2231, %v2724
        %v2838 = vmul.f32 %v2233, %v2725
        %v2839 = vmul.f32 %v2235, %v2725
        %v2840 = vmul.f32 %v2237, %v2726
        %v2841 = vmul.f32 %v2239, %v2726
        %v2842 = vmul.f32 %v2241, %v2727
        %v2843 = vmul.f32 %v2243, %v2727
        %v2844 = vmul.f32 %v2245, %v2728
        %v2845 = vmul.f32 %v2247, %v2728
        %v2846 = vmul.f32 %v2249, %v2729
        %v2847 = vmul.f32 %v2251, %v2729
        %v2848 = vmul.f32 %v2253, %v2730
        %v2849 = vmul.f32 %v2255, %v2730
        %v2850 = vmul.f32 %v2257, %v2731
        %v2851 = vmul.f32 %v2259, %v2731
        %v2852 = vmul.f32 %v2261, %v2732
        %v2853 = vmul.f32 %v2263, %v2732
        %v2854 = vmul.f32 %v2265, %v2733
        %v2855 = vmul.f32 %v2267, %v2733
        %v2856 = vmul.f32 %v2269, %v2734
        %v2857 = vmul.f32 %v2271, %v2734
        %v2858 = vmul.f32 %v2273, %v2735
        %v2859 = vmul.f32 %v2275, %v2735
        %v2860 = vmul.f32 %v2277, %v2736
        %v2861 = vmul.f32 %v2279, %v2736
        %v2862 = vmul.f32 %v2281, %v2737
        %v2863 = vmul.f32 %v2283, %v2737
        %v2864 = vmul.f32 %v2285, %v2738
        %v2865 = vmul.f32 %v2287, %v2738
        %v2866 = vmul.f32 %v2289, %v2739
        %v2867 = vmul.f32 %v2291, %v2739
        %v2868 = vadd.f32 %v2740, %v2772
        %v2869 = vadd.f32 %v2868, %v2804
        %v2870 = vadd.f32 %v2869, %v2836
        %v2871 = vadd.f32 %v2741, %v2773
        %v2872 = vadd.f32 %v2871, %v2805
        %v2873 = vadd.f32 %v2872, %v2837
        %v2874 = vadd.f32 %v2742, %v2774
        %v2875 = vadd.f32 %v2874, %v2806
        %v2876 = vadd.f32 %v2875, %v2838
        %v2877 = vadd.f32 %v2743, %v2775
        %v2878 = vadd.f32 %v2877, %v2807
        %v2879 = vadd.f32 %v2878, %v2839
        %v2880 = vadd.f32 %v2744, %v2776
        %v2881 = vadd.f32 %v2880, %v2808
        %v2882 = vadd.f32 %v2881, %v2840
        %v2883 = vadd.f32 %v2745, %v2777
        %v2884 = vadd.f32 %v2883, %v2809
        %v2885 = vadd.f32 %v2884, %v2841
        %v2886 = vadd.f32 %v2746, %v2778
        %v2887 = vadd.f32 %v2886, %v2810
        %v2888 = vadd.f32 %v2887, %v2842
        %v2889 = vadd.f32 %v2747, %v2779
        %v2890 = vadd.f32 %v2889, %v2811
        %v2891 = vadd.f32 %v2890, %v2843
        %v2892 = vadd.f32 %v2748, %v2780
        %v2893 = vadd.f32 %v2892, %v2812
        %v2894 = vadd.f32 %v2893, %v2844
        %v2895 = vadd.f32 %v2749, %v2781
        %v2896 = vadd.f32 %v2895, %v2813
        %v2897 = vadd.f32 %v2896, %v2845
        %v2898 = vadd.f32 %v2750, %v2782
        %v2899 = vadd.f32 %v2898, %v2814
        %v2900 = vadd.f32 %v2899, %v2846
        %v2901 = vadd.f32 %v2751, %v2783
        %v2902 = vadd.f32 %v2901, %v2815
        %v2903 = vadd.f32 %v2902, %v2847
        %v2904 = vadd.f32 %v2752, %v2784
        %v2905 = vadd.f32 %v2904, %v2816
        %v2906 = vadd.f32 %v2905, %v2848
        %v2907 = vadd.f32 %v2753, %v2785
        %v2908 = vadd.f32 %v2907, %v2817
        %v2909 = vadd.f32 %v2908, %v2849
        %v2910 = vadd.f32 %v2754, %v2786
        %v2911 = vadd.f32 %v2910, %v2818
        %v2912 = vadd.f32 %v2911, %v2850
        %v2913 = vadd.f32 %v2755, %v2787
        %v2914 = vadd.f32 %v2913, %v2819
        %v2915 = vadd.f32 %v2914, %v2851
        %v2916 = vadd.f32 %v2756, %v2788
        %v2917 = vadd.f32 %v2916, %v2820
        %v2918 = vadd.f32 %v2917, %v2852
        %v2919 = vadd.f32 %v2757, %v2789
        %v2920 = vadd.f32 %v2919, %v2821
        %v2921 = vadd.f32 %v2920, %v2853
        %v2922 = vadd.f32 %v2758, %v2790
        %v2923 = vadd.f32 %v2922, %v2822
        %v2924 = vadd.f32 %v2923, %v2854
        %v2925 = vadd.f32 %v2759, %v2791
        %v2926 = vadd.f32 %v2925, %v2823
        %v2927 = vadd.f32 %v2926, %v2855
        %v2928 = vadd.f32 %v2760, %v2792
        %v2929 = vadd.f32 %v2928, %v2824
        %v2930 = vadd.f32 %v2929, %v2856
        %v2931 = vadd.f32 %v2761, %v2793
        %v2932 = vadd.f32 %v2931, %v2825
        %v2933 = vadd.f32 %v2932, %v2857
        %v2934 = vadd.f32 %v2762, %v2794
        %v2935 = vadd.f32 %v2934, %v2826
        %v2936 = vadd.f32 %v2935, %v2858
        %v2937 = vadd.f32 %v2763, %v2795
        %v2938 = vadd.f32 %v2937, %v2827
        %v2939 = vadd.f32 %v2938, %v2859
        %v2940 = vadd.f32 %v2764, %v2796
        %v2941 = vadd.f32 %v2940, %v2828
        %v2942 = vadd.f32 %v2941, %v2860
        %v2943 = vadd.f32 %v2765, %v2797
        %v2944 = vadd.f32 %v2943, %v2829
        %v2945 = vadd.f32 %v2944, %v2861
        %v2946 = vadd.f32 %v2766, %v2798
        %v2947 = vadd.f32 %v2946, %v2830
        %v2948 = vadd.f32 %v2947, %v2862
        %v2949 = vadd.f32 %v2767, %v2799
        %v2950 = vadd.f32 %v2949, %v2831
        %v2951 = vadd.f32 %v2950, %v2863
        %v2952 = vadd.f32 %v2768, %v2800
        %v2953 = vadd.f32 %v2952, %v2832
        %v2954 = vadd.f32 %v2953, %v2864
        %v2955 = vadd.f32 %v2769, %v2801
        %v2956 = vadd.f32 %v2955, %v2833
        %v2957 = vadd.f32 %v2956, %v2865
        %v2958 = vadd.f32 %v2770, %v2802
        %v2959 = vadd.f32 %v2958, %v2834
        %v2960 = vadd.f32 %v2959, %v2866
        %v2961 = vadd.f32 %v2771, %v2803
        %v2962 = vadd.f32 %v2961, %v2835
        %v2963 = vadd.f32 %v2962, %v2867
        %v2964 = vrcp.pop 4.0
        %v2965 = vmul.f32 4.0, %v2964
        %v2966 = vsub.f32 1.0, %v2965
        %v2967 = vmul.f32 %v2964, %v2966
        %v2968 = vadd.f32 %v2964, %v2967
        %vm2969 = vweird.f32 %v2964
        %v2970 = vsel %vm2969, %v2964, %v2968
        %v2971 = vmul.f32 %v2870, %v2970
        %v2972 = vmul.f32 %v2873, %v2970
        %v2973 = vmul.f32 %v2876, %v2970
        %v2974 = vmul.f32 %v2879, %v2970
        %v2975 = vmul.f32 %v2882, %v2970
        %v2976 = vmul.f32 %v2885, %v2970
        %v2977 = vmul.f32 %v2888, %v2970
        %v2978 = vmul.f32 %v2891, %v2970
        %v2979 = vmul.f32 %v2894, %v2970
        %v2980 = vmul.f32 %v2897, %v2970
        %v2981 = vmul.f32 %v2900, %v2970
        %v2982 = vmul.f32 %v2903, %v2970
        %v2983 = vmul.f32 %v2906, %v2970
        %v2984 = vmul.f32 %v2909, %v2970
        %v2985 = vmul.f32 %v2912, %v2970
        %v2986 = vmul.f32 %v2915, %v2970
        %v2987 = vmul.f32 %v2918, %v2970
        %v2988 = vmul.f32 %v2921, %v2970
        %v2989 = vmul.f32 %v2924, %v2970
        %v2990 = vmul.f32 %v2927, %v2970
        %v2991 = vmul.f32 %v2930, %v2970
        %v2992 = vmul.f32 %v2933, %v2970
        %v2993 = vmul.f32 %v2936, %v2970
        %v2994 = vmul.f32 %v2939, %v2970
        %v2995 = vmul.f32 %v2942, %v2970
        %v2996 = vmul.f32 %v2945, %v2970
        %v2997 = vmul.f32 %v2948, %v2970
        %v2998 = vmul.f32 %v2951, %v2970
        %v2999 = vmul.f32 %v2954, %v2970
        %v3000 = vmul.f32 %v2957, %v2970
        %v3001 = vmul.f32 %v2960, %v2970
        %v3002 = vmul.f32 %v2963, %v2970
        %3003 = vst [vmem:[%s582] sm:$0xff] %v2971
        %3004 = vst [vmem:[%s582 + $0x8] sm:$0xff] %v2972
        %3005 = vst [vmem:[%s582 + $0x10] sm:$0xff] %v2973
        %3006 = vst [vmem:[%s582 + $0x18] sm:$0xff] %v2974
        %3007 = vst [vmem:[%s582 + $0x20] sm:$0xff] %v2975
        %3008 = vst [vmem:[%s582 + $0x28] sm:$0xff] %v2976
        %3009 = vst [vmem:[%s582 + $0x30] sm:$0xff] %v2977
        %3010 = vst [vmem:[%s582 + $0x38] sm:$0xff] %v2978
        %3011 = vst [vmem:[%s582 + $0x40] sm:$0xff] %v2979
        %3012 = vst [vmem:[%s582 + $0x48] sm:$0xff] %v2980
        %3013 = vst [vmem:[%s582 + $0x50] sm:$0xff] %v2981
        %3014 = vst [vmem:[%s582 + $0x58] sm:$0xff] %v2982
        %3015 = vst [vmem:[%s582 + $0x60] sm:$0xff] %v2983
        %3016 = vst [vmem:[%s582 + $0x68] sm:$0xff] %v2984
        %3017 = vst [vmem:[%s582 + $0x70] sm:$0xff] %v2985
        %3018 = vst [vmem:[%s582 + $0x78] sm:$0xff] %v2986
        %3019 = vst [vmem:[%s582 + $0x80] sm:$0xff] %v2987
        %3020 = vst [vmem:[%s582 + $0x88] sm:$0xff] %v2988
        %3021 = vst [vmem:[%s582 + $0x90] sm:$0xff] %v2989
        %3022 = vst [vmem:[%s582 + $0x98] sm:$0xff] %v2990
        %3023 = vst [vmem:[%s582 + $0xa0] sm:$0xff] %v2991
        %3024 = vst [vmem:[%s582 + $0xa8] sm:$0xff] %v2992
        %3025 = vst [vmem:[%s582 + $0xb0] sm:$0xff] %v2993
        %3026 = vst [vmem:[%s582 + $0xb8] sm:$0xff] %v2994
        %3027 = vst [vmem:[%s582 + $0xc0] sm:$0xff] %v2995
        %3028 = vst [vmem:[%s582 + $0xc8] sm:$0xff] %v2996
        %3029 = vst [vmem:[%s582 + $0xd0] sm:$0xff] %v2997
        %3030 = vst [vmem:[%s582 + $0xd8] sm:$0xff] %v2998
        %3031 = vst [vmem:[%s582 + $0xe0] sm:$0xff] %v2999
        %3032 = vst [vmem:[%s582 + $0xe8] sm:$0xff] %v3000
        %3033 = vst [vmem:[%s582 + $0xf0] sm:$0xff] %v3001
        %3034 = vst [vmem:[%s582 + $0xf8] sm:$0xff] %v3002
        %v3035 = vpack.c.bf16 %v2741, %v2740
        %v3036 = vpack.c.bf16 %v2743, %v2742
        %v3037 = vpack.c.bf16 %v2745, %v2744
        %v3038 = vpack.c.bf16 %v2747, %v2746
        %v3039 = vpack.c.bf16 %v2749, %v2748
        %v3040 = vpack.c.bf16 %v2751, %v2750
        %v3041 = vpack.c.bf16 %v2753, %v2752
        %v3042 = vpack.c.bf16 %v2755, %v2754
        %v3043 = vpack.c.bf16 %v2757, %v2756
        %v3044 = vpack.c.bf16 %v2759, %v2758
        %v3045 = vpack.c.bf16 %v2761, %v2760
        %v3046 = vpack.c.bf16 %v2763, %v2762
        %v3047 = vpack.c.bf16 %v2765, %v2764
        %v3048 = vpack.c.bf16 %v2767, %v2766
        %v3049 = vpack.c.bf16 %v2769, %v2768
        %v3050 = vpack.c.bf16 %v2771, %v2770
        %v3051 = vpack.c.bf16 %v2773, %v2772
        %v3052 = vpack.c.bf16 %v2775, %v2774
        %v3053 = vpack.c.bf16 %v2777, %v2776
        %v3054 = vpack.c.bf16 %v2779, %v2778
        %v3055 = vpack.c.bf16 %v2781, %v2780
        %v3056 = vpack.c.bf16 %v2783, %v2782
        %v3057 = vpack.c.bf16 %v2785, %v2784
        %v3058 = vpack.c.bf16 %v2787, %v2786
        %v3059 = vpack.c.bf16 %v2789, %v2788
        %v3060 = vpack.c.bf16 %v2791, %v2790
        %v3061 = vpack.c.bf16 %v2793, %v2792
        %v3062 = vpack.c.bf16 %v2795, %v2794
        %v3063 = vpack.c.bf16 %v2797, %v2796
        %v3064 = vpack.c.bf16 %v2799, %v2798
        %v3065 = vpack.c.bf16 %v2801, %v2800
        %v3066 = vpack.c.bf16 %v2803, %v2802
        %v3067 = vpack.c.bf16 %v2805, %v2804
        %v3068 = vpack.c.bf16 %v2807, %v2806
        %v3069 = vpack.c.bf16 %v2809, %v2808
        %v3070 = vpack.c.bf16 %v2811, %v2810
        %v3071 = vpack.c.bf16 %v2813, %v2812
        %v3072 = vpack.c.bf16 %v2815, %v2814
        %v3073 = vpack.c.bf16 %v2817, %v2816
        %v3074 = vpack.c.bf16 %v2819, %v2818
        %v3075 = vpack.c.bf16 %v2821, %v2820
        %v3076 = vpack.c.bf16 %v2823, %v2822
        %v3077 = vpack.c.bf16 %v2825, %v2824
        %v3078 = vpack.c.bf16 %v2827, %v2826
        %v3079 = vpack.c.bf16 %v2829, %v2828
        %v3080 = vpack.c.bf16 %v2831, %v2830
        %v3081 = vpack.c.bf16 %v2833, %v2832
        %v3082 = vpack.c.bf16 %v2835, %v2834
        %v3083 = vpack.c.bf16 %v2837, %v2836
        %v3084 = vpack.c.bf16 %v2839, %v2838
        %v3085 = vpack.c.bf16 %v2841, %v2840
        %v3086 = vpack.c.bf16 %v2843, %v2842
        %v3087 = vpack.c.bf16 %v2845, %v2844
        %v3088 = vpack.c.bf16 %v2847, %v2846
        %v3089 = vpack.c.bf16 %v2849, %v2848
        %v3090 = vpack.c.bf16 %v2851, %v2850
        %v3091 = vpack.c.bf16 %v2853, %v2852
        %v3092 = vpack.c.bf16 %v2855, %v2854
        %v3093 = vpack.c.bf16 %v2857, %v2856
        %v3094 = vpack.c.bf16 %v2859, %v2858
        %v3095 = vpack.c.bf16 %v2861, %v2860
        %v3096 = vpack.c.bf16 %v2863, %v2862
        %v3097 = vpack.c.bf16 %v2865, %v2864
        %v3098 = vpack.c.bf16 %v2867, %v2866
        %v3099 = vld [vmem:[%s602] sm:$0xf]
        %v3100 = vld [vmem:[%s602 + $0x4] sm:$0xf]
        %v3101 = vld [vmem:[%s602 + $0x8] sm:$0xf]
        %v3102 = vld [vmem:[%s602 + $0xc] sm:$0xf]
        %v3103 = vld [vmem:[%s602 + $0x10] sm:$0xf]
        %v3104 = vld [vmem:[%s602 + $0x14] sm:$0xf]
        %v3105 = vld [vmem:[%s602 + $0x18] sm:$0xf]
        %v3106 = vld [vmem:[%s602 + $0x1c] sm:$0xf]
        %v3107 = vld [vmem:[%s602 + $0x20] sm:$0xf]
        %v3108 = vld [vmem:[%s602 + $0x24] sm:$0xf]
        %v3109 = vld [vmem:[%s602 + $0x28] sm:$0xf]
        %v3110 = vld [vmem:[%s602 + $0x2c] sm:$0xf]
        %v3111 = vld [vmem:[%s602 + $0x30] sm:$0xf]
        %v3112 = vld [vmem:[%s602 + $0x34] sm:$0xf]
        %v3113 = vld [vmem:[%s602 + $0x38] sm:$0xf]
        %v3114 = vld [vmem:[%s602 + $0x3c] sm:$0xf]
        %v3115 = vld [vmem:[%s602 + $0x40] sm:$0xf]
        %v3116 = vld [vmem:[%s602 + $0x44] sm:$0xf]
        %v3117 = vld [vmem:[%s602 + $0x48] sm:$0xf]
        %v3118 = vld [vmem:[%s602 + $0x4c] sm:$0xf]
        %v3119 = vld [vmem:[%s602 + $0x50] sm:$0xf]
        %v3120 = vld [vmem:[%s602 + $0x54] sm:$0xf]
        %v3121 = vld [vmem:[%s602 + $0x58] sm:$0xf]
        %v3122 = vld [vmem:[%s602 + $0x5c] sm:$0xf]
        %v3123 = vld [vmem:[%s602 + $0x60] sm:$0xf]
        %v3124 = vld [vmem:[%s602 + $0x64] sm:$0xf]
        %v3125 = vld [vmem:[%s602 + $0x68] sm:$0xf]
        %v3126 = vld [vmem:[%s602 + $0x6c] sm:$0xf]
        %v3127 = vld [vmem:[%s602 + $0x70] sm:$0xf]
        %v3128 = vld [vmem:[%s602 + $0x74] sm:$0xf]
        %v3129 = vld [vmem:[%s602 + $0x78] sm:$0xf]
        %v3130 = vld [vmem:[%s602 + $0x7c] sm:$0xf]
        %v3131 = vld [vmem:[%s602 + $0x80] sm:$0xf]
        %v3132 = vld [vmem:[%s602 + $0x84] sm:$0xf]
        %v3133 = vld [vmem:[%s602 + $0x88] sm:$0xf]
        %v3134 = vld [vmem:[%s602 + $0x8c] sm:$0xf]
        %v3135 = vld [vmem:[%s602 + $0x90] sm:$0xf]
        %v3136 = vld [vmem:[%s602 + $0x94] sm:$0xf]
        %v3137 = vld [vmem:[%s602 + $0x98] sm:$0xf]
        %v3138 = vld [vmem:[%s602 + $0x9c] sm:$0xf]
        %v3139 = vld [vmem:[%s602 + $0xa0] sm:$0xf]
        %v3140 = vld [vmem:[%s602 + $0xa4] sm:$0xf]
        %v3141 = vld [vmem:[%s602 + $0xa8] sm:$0xf]
        %v3142 = vld [vmem:[%s602 + $0xac] sm:$0xf]
        %v3143 = vld [vmem:[%s602 + $0xb0] sm:$0xf]
        %v3144 = vld [vmem:[%s602 + $0xb4] sm:$0xf]
        %v3145 = vld [vmem:[%s602 + $0xb8] sm:$0xf]
        %v3146 = vld [vmem:[%s602 + $0xbc] sm:$0xf]
        %v3147 = vld [vmem:[%s602 + $0xc0] sm:$0xf]
        %v3148 = vld [vmem:[%s602 + $0xc4] sm:$0xf]
        %v3149 = vld [vmem:[%s602 + $0xc8] sm:$0xf]
        %v3150 = vld [vmem:[%s602 + $0xcc] sm:$0xf]
        %v3151 = vld [vmem:[%s602 + $0xd0] sm:$0xf]
        %v3152 = vld [vmem:[%s602 + $0xd4] sm:$0xf]
        %v3153 = vld [vmem:[%s602 + $0xd8] sm:$0xf]
        %v3154 = vld [vmem:[%s602 + $0xdc] sm:$0xf]
        %v3155 = vld [vmem:[%s602 + $0xe0] sm:$0xf]
        %v3156 = vld [vmem:[%s602 + $0xe4] sm:$0xf]
        %v3157 = vld [vmem:[%s602 + $0xe8] sm:$0xf]
        %v3158 = vld [vmem:[%s602 + $0xec] sm:$0xf]
        %v3159 = vld [vmem:[%s602 + $0xf0] sm:$0xf]
        %v3160 = vld [vmem:[%s602 + $0xf4] sm:$0xf]
        %v3161 = vld [vmem:[%s602 + $0xf8] sm:$0xf]
        %v3162 = vld [vmem:[%s602 + $0xfc] sm:$0xf]
        %v3163 = vld [vmem:[%s602 + $0x100] sm:$0xf]
        %v3164 = vld [vmem:[%s602 + $0x104] sm:$0xf]
        %v3165 = vld [vmem:[%s602 + $0x108] sm:$0xf]
        %v3166 = vld [vmem:[%s602 + $0x10c] sm:$0xf]
        %v3167 = vld [vmem:[%s602 + $0x110] sm:$0xf]
        %v3168 = vld [vmem:[%s602 + $0x114] sm:$0xf]
        %v3169 = vld [vmem:[%s602 + $0x118] sm:$0xf]
        %v3170 = vld [vmem:[%s602 + $0x11c] sm:$0xf]
        %v3171 = vld [vmem:[%s602 + $0x120] sm:$0xf]
        %v3172 = vld [vmem:[%s602 + $0x124] sm:$0xf]
        %v3173 = vld [vmem:[%s602 + $0x128] sm:$0xf]
        %v3174 = vld [vmem:[%s602 + $0x12c] sm:$0xf]
        %v3175 = vld [vmem:[%s602 + $0x130] sm:$0xf]
        %v3176 = vld [vmem:[%s602 + $0x134] sm:$0xf]
        %v3177 = vld [vmem:[%s602 + $0x138] sm:$0xf]
        %v3178 = vld [vmem:[%s602 + $0x13c] sm:$0xf]
        %v3179 = vld [vmem:[%s602 + $0x140] sm:$0xf]
        %v3180 = vld [vmem:[%s602 + $0x144] sm:$0xf]
        %v3181 = vld [vmem:[%s602 + $0x148] sm:$0xf]
        %v3182 = vld [vmem:[%s602 + $0x14c] sm:$0xf]
        %v3183 = vld [vmem:[%s602 + $0x150] sm:$0xf]
        %v3184 = vld [vmem:[%s602 + $0x154] sm:$0xf]
        %v3185 = vld [vmem:[%s602 + $0x158] sm:$0xf]
        %v3186 = vld [vmem:[%s602 + $0x15c] sm:$0xf]
        %v3187 = vld [vmem:[%s602 + $0x160] sm:$0xf]
        %v3188 = vld [vmem:[%s602 + $0x164] sm:$0xf]
        %v3189 = vld [vmem:[%s602 + $0x168] sm:$0xf]
        %v3190 = vld [vmem:[%s602 + $0x16c] sm:$0xf]
        %v3191 = vld [vmem:[%s602 + $0x170] sm:$0xf]
        %v3192 = vld [vmem:[%s602 + $0x174] sm:$0xf]
        %v3193 = vld [vmem:[%s602 + $0x178] sm:$0xf]
        %v3194 = vld [vmem:[%s602 + $0x17c] sm:$0xf]
        %v3195 = vld [vmem:[%s602 + $0x180] sm:$0xf]
        %v3196 = vld [vmem:[%s602 + $0x184] sm:$0xf]
        %v3197 = vld [vmem:[%s602 + $0x188] sm:$0xf]
        %v3198 = vld [vmem:[%s602 + $0x18c] sm:$0xf]
        %v3199 = vld [vmem:[%s602 + $0x190] sm:$0xf]
        %v3200 = vld [vmem:[%s602 + $0x194] sm:$0xf]
        %v3201 = vld [vmem:[%s602 + $0x198] sm:$0xf]
        %v3202 = vld [vmem:[%s602 + $0x19c] sm:$0xf]
        %v3203 = vld [vmem:[%s602 + $0x1a0] sm:$0xf]
        %v3204 = vld [vmem:[%s602 + $0x1a4] sm:$0xf]
        %v3205 = vld [vmem:[%s602 + $0x1a8] sm:$0xf]
        %v3206 = vld [vmem:[%s602 + $0x1ac] sm:$0xf]
        %v3207 = vld [vmem:[%s602 + $0x1b0] sm:$0xf]
        %v3208 = vld [vmem:[%s602 + $0x1b4] sm:$0xf]
        %v3209 = vld [vmem:[%s602 + $0x1b8] sm:$0xf]
        %v3210 = vld [vmem:[%s602 + $0x1bc] sm:$0xf]
        %v3211 = vld [vmem:[%s602 + $0x1c0] sm:$0xf]
        %v3212 = vld [vmem:[%s602 + $0x1c4] sm:$0xf]
        %v3213 = vld [vmem:[%s602 + $0x1c8] sm:$0xf]
        %v3214 = vld [vmem:[%s602 + $0x1cc] sm:$0xf]
        %v3215 = vld [vmem:[%s602 + $0x1d0] sm:$0xf]
        %v3216 = vld [vmem:[%s602 + $0x1d4] sm:$0xf]
        %v3217 = vld [vmem:[%s602 + $0x1d8] sm:$0xf]
        %v3218 = vld [vmem:[%s602 + $0x1dc] sm:$0xf]
        %v3219 = vld [vmem:[%s602 + $0x1e0] sm:$0xf]
        %v3220 = vld [vmem:[%s602 + $0x1e4] sm:$0xf]
        %v3221 = vld [vmem:[%s602 + $0x1e8] sm:$0xf]
        %v3222 = vld [vmem:[%s602 + $0x1ec] sm:$0xf]
        %v3223 = vld [vmem:[%s602 + $0x1f0] sm:$0xf]
        %v3224 = vld [vmem:[%s602 + $0x1f4] sm:$0xf]
        %v3225 = vld [vmem:[%s602 + $0x1f8] sm:$0xf]
        %v3226 = vld [vmem:[%s602 + $0x1fc] sm:$0xf]
        %v3243 = vunpack.c.l.b16 %v3035
        %v3244 = vunpack.c.h.b16 %v3035
        %v3245 = vunpack.c.l.b16 %v3036
        %v3246 = vunpack.c.h.b16 %v3036
        %v3247 = vunpack.c.l.b16 %v3037
        %v3248 = vunpack.c.h.b16 %v3037
        %v3249 = vunpack.c.l.b16 %v3038
        %v3250 = vunpack.c.h.b16 %v3038
        %v3251 = vunpack.c.l.b16 %v3039
        %v3252 = vunpack.c.h.b16 %v3039
        %v3253 = vunpack.c.l.b16 %v3040
        %v3254 = vunpack.c.h.b16 %v3040
        %v3255 = vunpack.c.l.b16 %v3041
        %v3256 = vunpack.c.h.b16 %v3041
        %v3257 = vunpack.c.l.b16 %v3042
        %v3258 = vunpack.c.h.b16 %v3042
        %v3259 = vunpack.c.l.b16 %v3043
        %v3260 = vunpack.c.h.b16 %v3043
        %v3261 = vunpack.c.l.b16 %v3044
        %v3262 = vunpack.c.h.b16 %v3044
        %v3263 = vunpack.c.l.b16 %v3045
        %v3264 = vunpack.c.h.b16 %v3045
        %v3265 = vunpack.c.l.b16 %v3046
        %v3266 = vunpack.c.h.b16 %v3046
        %v3267 = vunpack.c.l.b16 %v3047
        %v3268 = vunpack.c.h.b16 %v3047
        %v3269 = vunpack.c.l.b16 %v3048
        %v3270 = vunpack.c.h.b16 %v3048
        %v3271 = vunpack.c.l.b16 %v3049
        %v3272 = vunpack.c.h.b16 %v3049
        %v3273 = vunpack.c.l.b16 %v3050
        %v3274 = vunpack.c.h.b16 %v3050
        %v3275 = vpack.c.b16 %v3245, %v3243
        %v3276 = vpack.c.b16 %v3246, %v3244
        %v3277 = vpack.c.b16 %v3249, %v3247
        %v3278 = vpack.c.b16 %v3250, %v3248
        %v3279 = vpack.c.b16 %v3253, %v3251
        %v3280 = vpack.c.b16 %v3254, %v3252
        %v3281 = vpack.c.b16 %v3257, %v3255
        %v3282 = vpack.c.b16 %v3258, %v3256
        %v3283 = vpack.c.b16 %v3261, %v3259
        %v3284 = vpack.c.b16 %v3262, %v3260
        %v3285 = vpack.c.b16 %v3265, %v3263
        %v3286 = vpack.c.b16 %v3266, %v3264
        %v3287 = vpack.c.b16 %v3269, %v3267
        %v3288 = vpack.c.b16 %v3270, %v3268
        %v3289 = vpack.c.b16 %v3273, %v3271
        %v3290 = vpack.c.b16 %v3274, %v3272
        %v3339 = vunpack.c.l.b16 %v3099
        %v3340 = vunpack.c.l.b16 %v3100
        %v3341 = vunpack.c.l.b16 %v3101
        %v3342 = vunpack.c.l.b16 %v3102
        %v3343 = vunpack.c.l.b16 %v3103
        %v3344 = vunpack.c.l.b16 %v3104
        %v3345 = vunpack.c.l.b16 %v3105
        %v3346 = vunpack.c.l.b16 %v3106
        %v3347 = vunpack.c.l.b16 %v3107
        %v3348 = vunpack.c.l.b16 %v3108
        %v3349 = vunpack.c.l.b16 %v3109
        %v3350 = vunpack.c.l.b16 %v3110
        %v3351 = vunpack.c.l.b16 %v3111
        %v3352 = vunpack.c.l.b16 %v3112
        %v3353 = vunpack.c.l.b16 %v3113
        %v3354 = vunpack.c.l.b16 %v3114
        %v3355 = vunpack.c.l.b16 %v3115
        %v3356 = vunpack.c.l.b16 %v3116
        %v3357 = vunpack.c.l.b16 %v3117
        %v3358 = vunpack.c.l.b16 %v3118
        %v3359 = vunpack.c.l.b16 %v3119
        %v3360 = vunpack.c.l.b16 %v3120
        %v3361 = vunpack.c.l.b16 %v3121
        %v3362 = vunpack.c.l.b16 %v3122
        %v3363 = vunpack.c.l.b16 %v3123
        %v3364 = vunpack.c.l.b16 %v3124
        %v3365 = vunpack.c.l.b16 %v3125
        %v3366 = vunpack.c.l.b16 %v3126
        %v3367 = vunpack.c.l.b16 %v3127
        %v3368 = vunpack.c.l.b16 %v3128
        %v3369 = vunpack.c.l.b16 %v3129
        %v3370 = vunpack.c.l.b16 %v3130
        %v3371 = vpack.c.b16 %v3340, %v3339
        %v3372 = vpack.c.b16 %v3342, %v3341
        %v3373 = vpack.c.b16 %v3344, %v3343
        %v3374 = vpack.c.b16 %v3346, %v3345
        %v3375 = vpack.c.b16 %v3348, %v3347
        %v3376 = vpack.c.b16 %v3350, %v3349
        %v3377 = vpack.c.b16 %v3352, %v3351
        %v3378 = vpack.c.b16 %v3354, %v3353
        %v3379 = vpack.c.b16 %v3356, %v3355
        %v3380 = vpack.c.b16 %v3358, %v3357
        %v3381 = vpack.c.b16 %v3360, %v3359
        %v3382 = vpack.c.b16 %v3362, %v3361
        %v3383 = vpack.c.b16 %v3364, %v3363
        %v3384 = vpack.c.b16 %v3366, %v3365
        %v3385 = vpack.c.b16 %v3368, %v3367
        %v3386 = vpack.c.b16 %v3370, %v3369
        %3403 = vmatpush.bf16.msra.mxu0 %v3378
        %3404 = vmatpush.bf16.msra.mxu0 %v3377
        %3405 = vmatpush.bf16.msra.mxu0 %v3376
        %3406 = vmatpush.bf16.msra.mxu0 %v3375
        %3407 = vmatpush.bf16.msra.mxu0 %v3374
        %3408 = vmatpush.bf16.msra.mxu0 %v3373
        %3409 = vmatpush.bf16.msra.mxu0 %v3372
        %3410 = vmatpush.bf16.msra.mxu0 %v3371
        %3411 = vmatmul.bf16.gmra.mxu0 %v3275
        %v3412 = vpop.f32.mrf.mxu0
        %v3413 = vadd.f32 0.0, %v3412
        %v3414 = vpop.f32.mrf.mxu0
        %v3415 = vadd.f32 0.0, %v3414
        %3416 = vmatmul.bf16.gmra.mxu0 %v3277
        %v3417 = vpop.f32.mrf.mxu0
        %v3418 = vadd.f32 0.0, %v3417
        %v3419 = vpop.f32.mrf.mxu0
        %v3420 = vadd.f32 0.0, %v3419
        %3421 = vmatmul.bf16.gmra.mxu0 %v3279
        %v3422 = vpop.f32.mrf.mxu0
        %v3423 = vadd.f32 0.0, %v3422
        %v3424 = vpop.f32.mrf.mxu0
        %v3425 = vadd.f32 0.0, %v3424
        %3426 = vmatmul.bf16.gmra.mxu0 %v3281
        %v3427 = vpop.f32.mrf.mxu0
        %v3428 = vadd.f32 0.0, %v3427
        %v3429 = vpop.f32.mrf.mxu0
        %v3430 = vadd.f32 0.0, %v3429
        %3431 = vmatmul.bf16.gmra.mxu0 %v3283
        %v3432 = vpop.f32.mrf.mxu0
        %v3433 = vadd.f32 0.0, %v3432
        %v3434 = vpop.f32.mrf.mxu0
        %v3435 = vadd.f32 0.0, %v3434
        %3436 = vmatmul.bf16.gmra.mxu0 %v3285
        %v3437 = vpop.f32.mrf.mxu0
        %v3438 = vadd.f32 0.0, %v3437
        %v3439 = vpop.f32.mrf.mxu0
        %v3440 = vadd.f32 0.0, %v3439
        %3441 = vmatmul.bf16.gmra.mxu0 %v3287
        %v3442 = vpop.f32.mrf.mxu0
        %v3443 = vadd.f32 0.0, %v3442
        %v3444 = vpop.f32.mrf.mxu0
        %v3445 = vadd.f32 0.0, %v3444
        %3446 = vmatmul.bf16.gmra.mxu0 %v3289
        %v3447 = vpop.f32.mrf.mxu0
        %v3448 = vadd.f32 0.0, %v3447
        %v3449 = vpop.f32.mrf.mxu0
        %v3450 = vadd.f32 0.0, %v3449
        %3451 = vdwg.mxu0
        %3452 = vmatpush.bf16.msra.mxu0 %v3386
        %3453 = vmatpush.bf16.msra.mxu0 %v3385
        %3454 = vmatpush.bf16.msra.mxu0 %v3384
        %3455 = vmatpush.bf16.msra.mxu0 %v3383
        %3456 = vmatpush.bf16.msra.mxu0 %v3382
        %3457 = vmatpush.bf16.msra.mxu0 %v3381
        %3458 = vmatpush.bf16.msra.mxu0 %v3380
        %3459 = vmatpush.bf16.msra.mxu0 %v3379
        %3460 = vmatmul.bf16.gmra.mxu0 %v3276
        %v3461 = vpop.f32.mrf.mxu0
        %v3462 = vadd.f32 %v3413, %v3461
        %v3463 = vpop.f32.mrf.mxu0
        %v3464 = vadd.f32 %v3415, %v3463
        %3465 = vmatmul.bf16.gmra.mxu0 %v3278
        %v3466 = vpop.f32.mrf.mxu0
        %v3467 = vadd.f32 %v3418, %v3466
        %v3468 = vpop.f32.mrf.mxu0
        %v3469 = vadd.f32 %v3420, %v3468
        %3470 = vmatmul.bf16.gmra.mxu0 %v3280
        %v3471 = vpop.f32.mrf.mxu0
        %v3472 = vadd.f32 %v3423, %v3471
        %v3473 = vpop.f32.mrf.mxu0
        %v3474 = vadd.f32 %v3425, %v3473
        %3475 = vmatmul.bf16.gmra.mxu0 %v3282
        %v3476 = vpop.f32.mrf.mxu0
        %v3477 = vadd.f32 %v3428, %v3476
        %v3478 = vpop.f32.mrf.mxu0
        %v3479 = vadd.f32 %v3430, %v3478
        %3480 = vmatmul.bf16.gmra.mxu0 %v3284
        %v3481 = vpop.f32.mrf.mxu0
        %v3482 = vadd.f32 %v3433, %v3481
        %v3483 = vpop.f32.mrf.mxu0
        %v3484 = vadd.f32 %v3435, %v3483
        %3485 = vmatmul.bf16.gmra.mxu0 %v3286
        %v3486 = vpop.f32.mrf.mxu0
        %v3487 = vadd.f32 %v3438, %v3486
        %v3488 = vpop.f32.mrf.mxu0
        %v3489 = vadd.f32 %v3440, %v3488
        %3490 = vmatmul.bf16.gmra.mxu0 %v3288
        %v3491 = vpop.f32.mrf.mxu0
        %v3492 = vadd.f32 %v3443, %v3491
        %v3493 = vpop.f32.mrf.mxu0
        %v3494 = vadd.f32 %v3445, %v3493
        %3495 = vmatmul.bf16.gmra.mxu0 %v3290
        %v3496 = vpop.f32.mrf.mxu0
        %v3497 = vadd.f32 %v3448, %v3496
        %v3498 = vpop.f32.mrf.mxu0
        %v3499 = vadd.f32 %v3450, %v3498
        %3500 = vdwg.mxu0
        %v3517 = vunpack.c.l.b16 %v3051
        %v3518 = vunpack.c.h.b16 %v3051
        %v3519 = vunpack.c.l.b16 %v3052
        %v3520 = vunpack.c.h.b16 %v3052
        %v3521 = vunpack.c.l.b16 %v3053
        %v3522 = vunpack.c.h.b16 %v3053
        %v3523 = vunpack.c.l.b16 %v3054
        %v3524 = vunpack.c.h.b16 %v3054
        %v3525 = vunpack.c.l.b16 %v3055
        %v3526 = vunpack.c.h.b16 %v3055
        %v3527 = vunpack.c.l.b16 %v3056
        %v3528 = vunpack.c.h.b16 %v3056
        %v3529 = vunpack.c.l.b16 %v3057
        %v3530 = vunpack.c.h.b16 %v3057
        %v3531 = vunpack.c.l.b16 %v3058
        %v3532 = vunpack.c.h.b16 %v3058
        %v3533 = vunpack.c.l.b16 %v3059
        %v3534 = vunpack.c.h.b16 %v3059
        %v3535 = vunpack.c.l.b16 %v3060
        %v3536 = vunpack.c.h.b16 %v3060
        %v3537 = vunpack.c.l.b16 %v3061
        %v3538 = vunpack.c.h.b16 %v3061
        %v3539 = vunpack.c.l.b16 %v3062
        %v3540 = vunpack.c.h.b16 %v3062
        %v3541 = vunpack.c.l.b16 %v3063
        %v3542 = vunpack.c.h.b16 %v3063
        %v3543 = vunpack.c.l.b16 %v3064
        %v3544 = vunpack.c.h.b16 %v3064
        %v3545 = vunpack.c.l.b16 %v3065
        %v3546 = vunpack.c.h.b16 %v3065
        %v3547 = vunpack.c.l.b16 %v3066
        %v3548 = vunpack.c.h.b16 %v3066
        %v3549 = vpack.c.b16 %v3519, %v3517
        %v3550 = vpack.c.b16 %v3520, %v3518
        %v3551 = vpack.c.b16 %v3523, %v3521
        %v3552 = vpack.c.b16 %v3524, %v3522
        %v3553 = vpack.c.b16 %v3527, %v3525
        %v3554 = vpack.c.b16 %v3528, %v3526
        %v3555 = vpack.c.b16 %v3531, %v3529
        %v3556 = vpack.c.b16 %v3532, %v3530
        %v3557 = vpack.c.b16 %v3535, %v3533
        %v3558 = vpack.c.b16 %v3536, %v3534
        %v3559 = vpack.c.b16 %v3539, %v3537
        %v3560 = vpack.c.b16 %v3540, %v3538
        %v3561 = vpack.c.b16 %v3543, %v3541
        %v3562 = vpack.c.b16 %v3544, %v3542
        %v3563 = vpack.c.b16 %v3547, %v3545
        %v3564 = vpack.c.b16 %v3548, %v3546
        %v3613 = vunpack.c.l.b16 %v3131
        %v3614 = vunpack.c.l.b16 %v3132
        %v3615 = vunpack.c.l.b16 %v3133
        %v3616 = vunpack.c.l.b16 %v3134
        %v3617 = vunpack.c.l.b16 %v3135
        %v3618 = vunpack.c.l.b16 %v3136
        %v3619 = vunpack.c.l.b16 %v3137
        %v3620 = vunpack.c.l.b16 %v3138
        %v3621 = vunpack.c.l.b16 %v3139
        %v3622 = vunpack.c.l.b16 %v3140
        %v3623 = vunpack.c.l.b16 %v3141
        %v3624 = vunpack.c.l.b16 %v3142
        %v3625 = vunpack.c.l.b16 %v3143
        %v3626 = vunpack.c.l.b16 %v3144
        %v3627 = vunpack.c.l.b16 %v3145
        %v3628 = vunpack.c.l.b16 %v3146
        %v3629 = vunpack.c.l.b16 %v3147
        %v3630 = vunpack.c.l.b16 %v3148
        %v3631 = vunpack.c.l.b16 %v3149
        %v3632 = vunpack.c.l.b16 %v3150
        %v3633 = vunpack.c.l.b16 %v3151
        %v3634 = vunpack.c.l.b16 %v3152
        %v3635 = vunpack.c.l.b16 %v3153
        %v3636 = vunpack.c.l.b16 %v3154
        %v3637 = vunpack.c.l.b16 %v3155
        %v3638 = vunpack.c.l.b16 %v3156
        %v3639 = vunpack.c.l.b16 %v3157
        %v3640 = vunpack.c.l.b16 %v3158
        %v3641 = vunpack.c.l.b16 %v3159
        %v3642 = vunpack.c.l.b16 %v3160
        %v3643 = vunpack.c.l.b16 %v3161
        %v3644 = vunpack.c.l.b16 %v3162
        %v3645 = vpack.c.b16 %v3614, %v3613
        %v3646 = vpack.c.b16 %v3616, %v3615
        %v3647 = vpack.c.b16 %v3618, %v3617
        %v3648 = vpack.c.b16 %v3620, %v3619
        %v3649 = vpack.c.b16 %v3622, %v3621
        %v3650 = vpack.c.b16 %v3624, %v3623
        %v3651 = vpack.c.b16 %v3626, %v3625
        %v3652 = vpack.c.b16 %v3628, %v3627
        %v3653 = vpack.c.b16 %v3630, %v3629
        %v3654 = vpack.c.b16 %v3632, %v3631
        %v3655 = vpack.c.b16 %v3634, %v3633
        %v3656 = vpack.c.b16 %v3636, %v3635
        %v3657 = vpack.c.b16 %v3638, %v3637
        %v3658 = vpack.c.b16 %v3640, %v3639
        %v3659 = vpack.c.b16 %v3642, %v3641
        %v3660 = vpack.c.b16 %v3644, %v3643
        %3677 = vmatpush.bf16.msra.mxu0 %v3652
        %3678 = vmatpush.bf16.msra.mxu0 %v3651
        %3679 = vmatpush.bf16.msra.mxu0 %v3650
        %3680 = vmatpush.bf16.msra.mxu0 %v3649
        %3681 = vmatpush.bf16.msra.mxu0 %v3648
        %3682 = vmatpush.bf16.msra.mxu0 %v3647
        %3683 = vmatpush.bf16.msra.mxu0 %v3646
        %3684 = vmatpush.bf16.msra.mxu0 %v3645
        %3685 = vmatmul.bf16.gmra.mxu0 %v3549
        %v3686 = vpop.f32.mrf.mxu0
        %v3687 = vadd.f32 0.0, %v3686
        %v3688 = vpop.f32.mrf.mxu0
        %v3689 = vadd.f32 0.0, %v3688
        %3690 = vmatmul.bf16.gmra.mxu0 %v3551
        %v3691 = vpop.f32.mrf.mxu0
        %v3692 = vadd.f32 0.0, %v3691
        %v3693 = vpop.f32.mrf.mxu0
        %v3694 = vadd.f32 0.0, %v3693
        %3695 = vmatmul.bf16.gmra.mxu0 %v3553
        %v3696 = vpop.f32.mrf.mxu0
        %v3697 = vadd.f32 0.0, %v3696
        %v3698 = vpop.f32.mrf.mxu0
        %v3699 = vadd.f32 0.0, %v3698
        %3700 = vmatmul.bf16.gmra.mxu0 %v3555
        %v3701 = vpop.f32.mrf.mxu0
        %v3702 = vadd.f32 0.0, %v3701
        %v3703 = vpop.f32.mrf.mxu0
        %v3704 = vadd.f32 0.0, %v3703
        %3705 = vmatmul.bf16.gmra.mxu0 %v3557
        %v3706 = vpop.f32.mrf.mxu0
        %v3707 = vadd.f32 0.0, %v3706
        %v3708 = vpop.f32.mrf.mxu0
        %v3709 = vadd.f32 0.0, %v3708
        %3710 = vmatmul.bf16.gmra.mxu0 %v3559
        %v3711 = vpop.f32.mrf.mxu0
        %v3712 = vadd.f32 0.0, %v3711
        %v3713 = vpop.f32.mrf.mxu0
        %v3714 = vadd.f32 0.0, %v3713
        %3715 = vmatmul.bf16.gmra.mxu0 %v3561
        %v3716 = vpop.f32.mrf.mxu0
        %v3717 = vadd.f32 0.0, %v3716
        %v3718 = vpop.f32.mrf.mxu0
        %v3719 = vadd.f32 0.0, %v3718
        %3720 = vmatmul.bf16.gmra.mxu0 %v3563
        %v3721 = vpop.f32.mrf.mxu0
        %v3722 = vadd.f32 0.0, %v3721
        %v3723 = vpop.f32.mrf.mxu0
        %v3724 = vadd.f32 0.0, %v3723
        %3725 = vdwg.mxu0
        %3726 = vmatpush.bf16.msra.mxu0 %v3660
        %3727 = vmatpush.bf16.msra.mxu0 %v3659
        %3728 = vmatpush.bf16.msra.mxu0 %v3658
        %3729 = vmatpush.bf16.msra.mxu0 %v3657
        %3730 = vmatpush.bf16.msra.mxu0 %v3656
        %3731 = vmatpush.bf16.msra.mxu0 %v3655
        %3732 = vmatpush.bf16.msra.mxu0 %v3654
        %3733 = vmatpush.bf16.msra.mxu0 %v3653
        %3734 = vmatmul.bf16.gmra.mxu0 %v3550
        %v3735 = vpop.f32.mrf.mxu0
        %v3736 = vadd.f32 %v3687, %v3735
        %v3737 = vpop.f32.mrf.mxu0
        %v3738 = vadd.f32 %v3689, %v3737
        %3739 = vmatmul.bf16.gmra.mxu0 %v3552
        %v3740 = vpop.f32.mrf.mxu0
        %v3741 = vadd.f32 %v3692, %v3740
        %v3742 = vpop.f32.mrf.mxu0
        %v3743 = vadd.f32 %v3694, %v3742
        %3744 = vmatmul.bf16.gmra.mxu0 %v3554
        %v3745 = vpop.f32.mrf.mxu0
        %v3746 = vadd.f32 %v3697, %v3745
        %v3747 = vpop.f32.mrf.mxu0
        %v3748 = vadd.f32 %v3699, %v3747
        %3749 = vmatmul.bf16.gmra.mxu0 %v3556
        %v3750 = vpop.f32.mrf.mxu0
        %v3751 = vadd.f32 %v3702, %v3750
        %v3752 = vpop.f32.mrf.mxu0
        %v3753 = vadd.f32 %v3704, %v3752
        %3754 = vmatmul.bf16.gmra.mxu0 %v3558
        %v3755 = vpop.f32.mrf.mxu0
        %v3756 = vadd.f32 %v3707, %v3755
        %v3757 = vpop.f32.mrf.mxu0
        %v3758 = vadd.f32 %v3709, %v3757
        %3759 = vmatmul.bf16.gmra.mxu0 %v3560
        %v3760 = vpop.f32.mrf.mxu0
        %v3761 = vadd.f32 %v3712, %v3760
        %v3762 = vpop.f32.mrf.mxu0
        %v3763 = vadd.f32 %v3714, %v3762
        %3764 = vmatmul.bf16.gmra.mxu0 %v3562
        %v3765 = vpop.f32.mrf.mxu0
        %v3766 = vadd.f32 %v3717, %v3765
        %v3767 = vpop.f32.mrf.mxu0
        %v3768 = vadd.f32 %v3719, %v3767
        %3769 = vmatmul.bf16.gmra.mxu0 %v3564
        %v3770 = vpop.f32.mrf.mxu0
        %v3771 = vadd.f32 %v3722, %v3770
        %v3772 = vpop.f32.mrf.mxu0
        %v3773 = vadd.f32 %v3724, %v3772
        %3774 = vdwg.mxu0
        %v3791 = vunpack.c.l.b16 %v3067
        %v3792 = vunpack.c.h.b16 %v3067
        %v3793 = vunpack.c.l.b16 %v3068
        %v3794 = vunpack.c.h.b16 %v3068
        %v3795 = vunpack.c.l.b16 %v3069
        %v3796 = vunpack.c.h.b16 %v3069
        %v3797 = vunpack.c.l.b16 %v3070
        %v3798 = vunpack.c.h.b16 %v3070
        %v3799 = vunpack.c.l.b16 %v3071
        %v3800 = vunpack.c.h.b16 %v3071
        %v3801 = vunpack.c.l.b16 %v3072
        %v3802 = vunpack.c.h.b16 %v3072
        %v3803 = vunpack.c.l.b16 %v3073
        %v3804 = vunpack.c.h.b16 %v3073
        %v3805 = vunpack.c.l.b16 %v3074
        %v3806 = vunpack.c.h.b16 %v3074
        %v3807 = vunpack.c.l.b16 %v3075
        %v3808 = vunpack.c.h.b16 %v3075
        %v3809 = vunpack.c.l.b16 %v3076
        %v3810 = vunpack.c.h.b16 %v3076
        %v3811 = vunpack.c.l.b16 %v3077
        %v3812 = vunpack.c.h.b16 %v3077
        %v3813 = vunpack.c.l.b16 %v3078
        %v3814 = vunpack.c.h.b16 %v3078
        %v3815 = vunpack.c.l.b16 %v3079
        %v3816 = vunpack.c.h.b16 %v3079
        %v3817 = vunpack.c.l.b16 %v3080
        %v3818 = vunpack.c.h.b16 %v3080
        %v3819 = vunpack.c.l.b16 %v3081
        %v3820 = vunpack.c.h.b16 %v3081
        %v3821 = vunpack.c.l.b16 %v3082
        %v3822 = vunpack.c.h.b16 %v3082
        %v3823 = vpack.c.b16 %v3793, %v3791
        %v3824 = vpack.c.b16 %v3794, %v3792
        %v3825 = vpack.c.b16 %v3797, %v3795
        %v3826 = vpack.c.b16 %v3798, %v3796
        %v3827 = vpack.c.b16 %v3801, %v3799
        %v3828 = vpack.c.b16 %v3802, %v3800
        %v3829 = vpack.c.b16 %v3805, %v3803
        %v3830 = vpack.c.b16 %v3806, %v3804
        %v3831 = vpack.c.b16 %v3809, %v3807
        %v3832 = vpack.c.b16 %v3810, %v3808
        %v3833 = vpack.c.b16 %v3813, %v3811
        %v3834 = vpack.c.b16 %v3814, %v3812
        %v3835 = vpack.c.b16 %v3817, %v3815
        %v3836 = vpack.c.b16 %v3818, %v3816
        %v3837 = vpack.c.b16 %v3821, %v3819
        %v3838 = vpack.c.b16 %v3822, %v3820
        %v3887 = vunpack.c.l.b16 %v3163
        %v3888 = vunpack.c.l.b16 %v3164
        %v3889 = vunpack.c.l.b16 %v3165
        %v3890 = vunpack.c.l.b16 %v3166
        %v3891 = vunpack.c.l.b16 %v3167
        %v3892 = vunpack.c.l.b16 %v3168
        %v3893 = vunpack.c.l.b16 %v3169
        %v3894 = vunpack.c.l.b16 %v3170
        %v3895 = vunpack.c.l.b16 %v3171
        %v3896 = vunpack.c.l.b16 %v3172
        %v3897 = vunpack.c.l.b16 %v3173
        %v3898 = vunpack.c.l.b16 %v3174
        %v3899 = vunpack.c.l.b16 %v3175
        %v3900 = vunpack.c.l.b16 %v3176
        %v3901 = vunpack.c.l.b16 %v3177
        %v3902 = vunpack.c.l.b16 %v3178
        %v3903 = vunpack.c.l.b16 %v3179
        %v3904 = vunpack.c.l.b16 %v3180
        %v3905 = vunpack.c.l.b16 %v3181
        %v3906 = vunpack.c.l.b16 %v3182
        %v3907 = vunpack.c.l.b16 %v3183
        %v3908 = vunpack.c.l.b16 %v3184
        %v3909 = vunpack.c.l.b16 %v3185
        %v3910 = vunpack.c.l.b16 %v3186
        %v3911 = vunpack.c.l.b16 %v3187
        %v3912 = vunpack.c.l.b16 %v3188
        %v3913 = vunpack.c.l.b16 %v3189
        %v3914 = vunpack.c.l.b16 %v3190
        %v3915 = vunpack.c.l.b16 %v3191
        %v3916 = vunpack.c.l.b16 %v3192
        %v3917 = vunpack.c.l.b16 %v3193
        %v3918 = vunpack.c.l.b16 %v3194
        %v3919 = vpack.c.b16 %v3888, %v3887
        %v3920 = vpack.c.b16 %v3890, %v3889
        %v3921 = vpack.c.b16 %v3892, %v3891
        %v3922 = vpack.c.b16 %v3894, %v3893
        %v3923 = vpack.c.b16 %v3896, %v3895
        %v3924 = vpack.c.b16 %v3898, %v3897
        %v3925 = vpack.c.b16 %v3900, %v3899
        %v3926 = vpack.c.b16 %v3902, %v3901
        %v3927 = vpack.c.b16 %v3904, %v3903
        %v3928 = vpack.c.b16 %v3906, %v3905
        %v3929 = vpack.c.b16 %v3908, %v3907
        %v3930 = vpack.c.b16 %v3910, %v3909
        %v3931 = vpack.c.b16 %v3912, %v3911
        %v3932 = vpack.c.b16 %v3914, %v3913
        %v3933 = vpack.c.b16 %v3916, %v3915
        %v3934 = vpack.c.b16 %v3918, %v3917
        %3951 = vmatpush.bf16.msra.mxu0 %v3926
        %3952 = vmatpush.bf16.msra.mxu0 %v3925
        %3953 = vmatpush.bf16.msra.mxu0 %v3924
        %3954 = vmatpush.bf16.msra.mxu0 %v3923
        %3955 = vmatpush.bf16.msra.mxu0 %v3922
        %3956 = vmatpush.bf16.msra.mxu0 %v3921
        %3957 = vmatpush.bf16.msra.mxu0 %v3920
        %3958 = vmatpush.bf16.msra.mxu0 %v3919
        %3959 = vmatmul.bf16.gmra.mxu0 %v3823
        %v3960 = vpop.f32.mrf.mxu0
        %v3961 = vadd.f32 0.0, %v3960
        %v3962 = vpop.f32.mrf.mxu0
        %v3963 = vadd.f32 0.0, %v3962
        %3964 = vmatmul.bf16.gmra.mxu0 %v3825
        %v3965 = vpop.f32.mrf.mxu0
        %v3966 = vadd.f32 0.0, %v3965
        %v3967 = vpop.f32.mrf.mxu0
        %v3968 = vadd.f32 0.0, %v3967
        %3969 = vmatmul.bf16.gmra.mxu0 %v3827
        %v3970 = vpop.f32.mrf.mxu0
        %v3971 = vadd.f32 0.0, %v3970
        %v3972 = vpop.f32.mrf.mxu0
        %v3973 = vadd.f32 0.0, %v3972
        %3974 = vmatmul.bf16.gmra.mxu0 %v3829
        %v3975 = vpop.f32.mrf.mxu0
        %v3976 = vadd.f32 0.0, %v3975
        %v3977 = vpop.f32.mrf.mxu0
        %v3978 = vadd.f32 0.0, %v3977
        %3979 = vmatmul.bf16.gmra.mxu0 %v3831
        %v3980 = vpop.f32.mrf.mxu0
        %v3981 = vadd.f32 0.0, %v3980
        %v3982 = vpop.f32.mrf.mxu0
        %v3983 = vadd.f32 0.0, %v3982
        %3984 = vmatmul.bf16.gmra.mxu0 %v3833
        %v3985 = vpop.f32.mrf.mxu0
        %v3986 = vadd.f32 0.0, %v3985
        %v3987 = vpop.f32.mrf.mxu0
        %v3988 = vadd.f32 0.0, %v3987
        %3989 = vmatmul.bf16.gmra.mxu0 %v3835
        %v3990 = vpop.f32.mrf.mxu0
        %v3991 = vadd.f32 0.0, %v3990
        %v3992 = vpop.f32.mrf.mxu0
        %v3993 = vadd.f32 0.0, %v3992
        %3994 = vmatmul.bf16.gmra.mxu0 %v3837
        %v3995 = vpop.f32.mrf.mxu0
        %v3996 = vadd.f32 0.0, %v3995
        %v3997 = vpop.f32.mrf.mxu0
        %v3998 = vadd.f32 0.0, %v3997
        %3999 = vdwg.mxu0
        %4000 = vmatpush.bf16.msra.mxu0 %v3934
        %4001 = vmatpush.bf16.msra.mxu0 %v3933
        %4002 = vmatpush.bf16.msra.mxu0 %v3932
        %4003 = vmatpush.bf16.msra.mxu0 %v3931
        %4004 = vmatpush.bf16.msra.mxu0 %v3930
        %4005 = vmatpush.bf16.msra.mxu0 %v3929
        %4006 = vmatpush.bf16.msra.mxu0 %v3928
        %4007 = vmatpush.bf16.msra.mxu0 %v3927
        %4008 = vmatmul.bf16.gmra.mxu0 %v3824
        %v4009 = vpop.f32.mrf.mxu0
        %v4010 = vadd.f32 %v3961, %v4009
        %v4011 = vpop.f32.mrf.mxu0
        %v4012 = vadd.f32 %v3963, %v4011
        %4013 = vmatmul.bf16.gmra.mxu0 %v3826
        %v4014 = vpop.f32.mrf.mxu0
        %v4015 = vadd.f32 %v3966, %v4014
        %v4016 = vpop.f32.mrf.mxu0
        %v4017 = vadd.f32 %v3968, %v4016
        %4018 = vmatmul.bf16.gmra.mxu0 %v3828
        %v4019 = vpop.f32.mrf.mxu0
        %v4020 = vadd.f32 %v3971, %v4019
        %v4021 = vpop.f32.mrf.mxu0
        %v4022 = vadd.f32 %v3973, %v4021
        %4023 = vmatmul.bf16.gmra.mxu0 %v3830
        %v4024 = vpop.f32.mrf.mxu0
        %v4025 = vadd.f32 %v3976, %v4024
        %v4026 = vpop.f32.mrf.mxu0
        %v4027 = vadd.f32 %v3978, %v4026
        %4028 = vmatmul.bf16.gmra.mxu0 %v3832
        %v4029 = vpop.f32.mrf.mxu0
        %v4030 = vadd.f32 %v3981, %v4029
        %v4031 = vpop.f32.mrf.mxu0
        %v4032 = vadd.f32 %v3983, %v4031
        %4033 = vmatmul.bf16.gmra.mxu0 %v3834
        %v4034 = vpop.f32.mrf.mxu0
        %v4035 = vadd.f32 %v3986, %v4034
        %v4036 = vpop.f32.mrf.mxu0
        %v4037 = vadd.f32 %v3988, %v4036
        %4038 = vmatmul.bf16.gmra.mxu0 %v3836
        %v4039 = vpop.f32.mrf.mxu0
        %v4040 = vadd.f32 %v3991, %v4039
        %v4041 = vpop.f32.mrf.mxu0
        %v4042 = vadd.f32 %v3993, %v4041
        %4043 = vmatmul.bf16.gmra.mxu0 %v3838
        %v4044 = vpop.f32.mrf.mxu0
        %v4045 = vadd.f32 %v3996, %v4044
        %v4046 = vpop.f32.mrf.mxu0
        %v4047 = vadd.f32 %v3998, %v4046
        %4048 = vdwg.mxu0
        %v4065 = vunpack.c.l.b16 %v3083
        %v4066 = vunpack.c.h.b16 %v3083
        %v4067 = vunpack.c.l.b16 %v3084
        %v4068 = vunpack.c.h.b16 %v3084
        %v4069 = vunpack.c.l.b16 %v3085
        %v4070 = vunpack.c.h.b16 %v3085
        %v4071 = vunpack.c.l.b16 %v3086
        %v4072 = vunpack.c.h.b16 %v3086
        %v4073 = vunpack.c.l.b16 %v3087
        %v4074 = vunpack.c.h.b16 %v3087
        %v4075 = vunpack.c.l.b16 %v3088
        %v4076 = vunpack.c.h.b16 %v3088
        %v4077 = vunpack.c.l.b16 %v3089
        %v4078 = vunpack.c.h.b16 %v3089
        %v4079 = vunpack.c.l.b16 %v3090
        %v4080 = vunpack.c.h.b16 %v3090
        %v4081 = vunpack.c.l.b16 %v3091
        %v4082 = vunpack.c.h.b16 %v3091
        %v4083 = vunpack.c.l.b16 %v3092
        %v4084 = vunpack.c.h.b16 %v3092
        %v4085 = vunpack.c.l.b16 %v3093
        %v4086 = vunpack.c.h.b16 %v3093
        %v4087 = vunpack.c.l.b16 %v3094
        %v4088 = vunpack.c.h.b16 %v3094
        %v4089 = vunpack.c.l.b16 %v3095
        %v4090 = vunpack.c.h.b16 %v3095
        %v4091 = vunpack.c.l.b16 %v3096
        %v4092 = vunpack.c.h.b16 %v3096
        %v4093 = vunpack.c.l.b16 %v3097
        %v4094 = vunpack.c.h.b16 %v3097
        %v4095 = vunpack.c.l.b16 %v3098
        %v4096 = vunpack.c.h.b16 %v3098
        %v4097 = vpack.c.b16 %v4067, %v4065
        %v4098 = vpack.c.b16 %v4068, %v4066
        %v4099 = vpack.c.b16 %v4071, %v4069
        %v4100 = vpack.c.b16 %v4072, %v4070
        %v4101 = vpack.c.b16 %v4075, %v4073
        %v4102 = vpack.c.b16 %v4076, %v4074
        %v4103 = vpack.c.b16 %v4079, %v4077
        %v4104 = vpack.c.b16 %v4080, %v4078
        %v4105 = vpack.c.b16 %v4083, %v4081
        %v4106 = vpack.c.b16 %v4084, %v4082
        %v4107 = vpack.c.b16 %v4087, %v4085
        %v4108 = vpack.c.b16 %v4088, %v4086
        %v4109 = vpack.c.b16 %v4091, %v4089
        %v4110 = vpack.c.b16 %v4092, %v4090
        %v4111 = vpack.c.b16 %v4095, %v4093
        %v4112 = vpack.c.b16 %v4096, %v4094
        %v4161 = vunpack.c.l.b16 %v3195
        %v4162 = vunpack.c.l.b16 %v3196
        %v4163 = vunpack.c.l.b16 %v3197
        %v4164 = vunpack.c.l.b16 %v3198
        %v4165 = vunpack.c.l.b16 %v3199
        %v4166 = vunpack.c.l.b16 %v3200
        %v4167 = vunpack.c.l.b16 %v3201
        %v4168 = vunpack.c.l.b16 %v3202
        %v4169 = vunpack.c.l.b16 %v3203
        %v4170 = vunpack.c.l.b16 %v3204
        %v4171 = vunpack.c.l.b16 %v3205
        %v4172 = vunpack.c.l.b16 %v3206
        %v4173 = vunpack.c.l.b16 %v3207
        %v4174 = vunpack.c.l.b16 %v3208
        %v4175 = vunpack.c.l.b16 %v3209
        %v4176 = vunpack.c.l.b16 %v3210
        %v4177 = vunpack.c.l.b16 %v3211
        %v4178 = vunpack.c.l.b16 %v3212
        %v4179 = vunpack.c.l.b16 %v3213
        %v4180 = vunpack.c.l.b16 %v3214
        %v4181 = vunpack.c.l.b16 %v3215
        %v4182 = vunpack.c.l.b16 %v3216
        %v4183 = vunpack.c.l.b16 %v3217
        %v4184 = vunpack.c.l.b16 %v3218
        %v4185 = vunpack.c.l.b16 %v3219
        %v4186 = vunpack.c.l.b16 %v3220
        %v4187 = vunpack.c.l.b16 %v3221
        %v4188 = vunpack.c.l.b16 %v3222
        %v4189 = vunpack.c.l.b16 %v3223
        %v4190 = vunpack.c.l.b16 %v3224
        %v4191 = vunpack.c.l.b16 %v3225
        %v4192 = vunpack.c.l.b16 %v3226
        %v4193 = vpack.c.b16 %v4162, %v4161
        %v4194 = vpack.c.b16 %v4164, %v4163
        %v4195 = vpack.c.b16 %v4166, %v4165
        %v4196 = vpack.c.b16 %v4168, %v4167
        %v4197 = vpack.c.b16 %v4170, %v4169
        %v4198 = vpack.c.b16 %v4172, %v4171
        %v4199 = vpack.c.b16 %v4174, %v4173
        %v4200 = vpack.c.b16 %v4176, %v4175
        %v4201 = vpack.c.b16 %v4178, %v4177
        %v4202 = vpack.c.b16 %v4180, %v4179
        %v4203 = vpack.c.b16 %v4182, %v4181
        %v4204 = vpack.c.b16 %v4184, %v4183
        %v4205 = vpack.c.b16 %v4186, %v4185
        %v4206 = vpack.c.b16 %v4188, %v4187
        %v4207 = vpack.c.b16 %v4190, %v4189
        %v4208 = vpack.c.b16 %v4192, %v4191
        %4225 = vmatpush.bf16.msra.mxu0 %v4200
        %4226 = vmatpush.bf16.msra.mxu0 %v4199
        %4227 = vmatpush.bf16.msra.mxu0 %v4198
        %4228 = vmatpush.bf16.msra.mxu0 %v4197
        %4229 = vmatpush.bf16.msra.mxu0 %v4196
        %4230 = vmatpush.bf16.msra.mxu0 %v4195
        %4231 = vmatpush.bf16.msra.mxu0 %v4194
        %4232 = vmatpush.bf16.msra.mxu0 %v4193
        %4233 = vmatmul.bf16.gmra.mxu0 %v4097
        %v4234 = vpop.f32.mrf.mxu0
        %v4235 = vadd.f32 0.0, %v4234
        %v4236 = vpop.f32.mrf.mxu0
        %v4237 = vadd.f32 0.0, %v4236
        %4238 = vmatmul.bf16.gmra.mxu0 %v4099
        %v4239 = vpop.f32.mrf.mxu0
        %v4240 = vadd.f32 0.0, %v4239
        %v4241 = vpop.f32.mrf.mxu0
        %v4242 = vadd.f32 0.0, %v4241
        %4243 = vmatmul.bf16.gmra.mxu0 %v4101
        %v4244 = vpop.f32.mrf.mxu0
        %v4245 = vadd.f32 0.0, %v4244
        %v4246 = vpop.f32.mrf.mxu0
        %v4247 = vadd.f32 0.0, %v4246
        %4248 = vmatmul.bf16.gmra.mxu0 %v4103
        %v4249 = vpop.f32.mrf.mxu0
        %v4250 = vadd.f32 0.0, %v4249
        %v4251 = vpop.f32.mrf.mxu0
        %v4252 = vadd.f32 0.0, %v4251
        %4253 = vmatmul.bf16.gmra.mxu0 %v4105
        %v4254 = vpop.f32.mrf.mxu0
        %v4255 = vadd.f32 0.0, %v4254
        %v4256 = vpop.f32.mrf.mxu0
        %v4257 = vadd.f32 0.0, %v4256
        %4258 = vmatmul.bf16.gmra.mxu0 %v4107
        %v4259 = vpop.f32.mrf.mxu0
        %v4260 = vadd.f32 0.0, %v4259
        %v4261 = vpop.f32.mrf.mxu0
        %v4262 = vadd.f32 0.0, %v4261
        %4263 = vmatmul.bf16.gmra.mxu0 %v4109
        %v4264 = vpop.f32.mrf.mxu0
        %v4265 = vadd.f32 0.0, %v4264
        %v4266 = vpop.f32.mrf.mxu0
        %v4267 = vadd.f32 0.0, %v4266
        %4268 = vmatmul.bf16.gmra.mxu0 %v4111
        %v4269 = vpop.f32.mrf.mxu0
        %v4270 = vadd.f32 0.0, %v4269
        %v4271 = vpop.f32.mrf.mxu0
        %v4272 = vadd.f32 0.0, %v4271
        %4273 = vdwg.mxu0
        %4274 = vmatpush.bf16.msra.mxu0 %v4208
        %4275 = vmatpush.bf16.msra.mxu0 %v4207
        %4276 = vmatpush.bf16.msra.mxu0 %v4206
        %4277 = vmatpush.bf16.msra.mxu0 %v4205
        %4278 = vmatpush.bf16.msra.mxu0 %v4204
        %4279 = vmatpush.bf16.msra.mxu0 %v4203
        %4280 = vmatpush.bf16.msra.mxu0 %v4202
        %4281 = vmatpush.bf16.msra.mxu0 %v4201
        %4282 = vmatmul.bf16.gmra.mxu0 %v4098
        %v4283 = vpop.f32.mrf.mxu0
        %v4284 = vadd.f32 %v4235, %v4283
        %v4285 = vpop.f32.mrf.mxu0
        %v4286 = vadd.f32 %v4237, %v4285
        %4287 = vmatmul.bf16.gmra.mxu0 %v4100
        %v4288 = vpop.f32.mrf.mxu0
        %v4289 = vadd.f32 %v4240, %v4288
        %v4290 = vpop.f32.mrf.mxu0
        %v4291 = vadd.f32 %v4242, %v4290
        %4292 = vmatmul.bf16.gmra.mxu0 %v4102
        %v4293 = vpop.f32.mrf.mxu0
        %v4294 = vadd.f32 %v4245, %v4293
        %v4295 = vpop.f32.mrf.mxu0
        %v4296 = vadd.f32 %v4247, %v4295
        %4297 = vmatmul.bf16.gmra.mxu0 %v4104
        %v4298 = vpop.f32.mrf.mxu0
        %v4299 = vadd.f32 %v4250, %v4298
        %v4300 = vpop.f32.mrf.mxu0
        %v4301 = vadd.f32 %v4252, %v4300
        %4302 = vmatmul.bf16.gmra.mxu0 %v4106
        %v4303 = vpop.f32.mrf.mxu0
        %v4304 = vadd.f32 %v4255, %v4303
        %v4305 = vpop.f32.mrf.mxu0
        %v4306 = vadd.f32 %v4257, %v4305
        %4307 = vmatmul.bf16.gmra.mxu0 %v4108
        %v4308 = vpop.f32.mrf.mxu0
        %v4309 = vadd.f32 %v4260, %v4308
        %v4310 = vpop.f32.mrf.mxu0
        %v4311 = vadd.f32 %v4262, %v4310
        %4312 = vmatmul.bf16.gmra.mxu0 %v4110
        %v4313 = vpop.f32.mrf.mxu0
        %v4314 = vadd.f32 %v4265, %v4313
        %v4315 = vpop.f32.mrf.mxu0
        %v4316 = vadd.f32 %v4267, %v4315
        %4317 = vmatmul.bf16.gmra.mxu0 %v4112
        %v4318 = vpop.f32.mrf.mxu0
        %v4319 = vadd.f32 %v4270, %v4318
        %v4320 = vpop.f32.mrf.mxu0
        %v4321 = vadd.f32 %v4272, %v4320
        %4322 = vdwg.mxu0
        %4339 = vrot.lane.b32.xlu0 %v3736, 32
        %v4340 = vpop.permute.xlu0 %4339
        %4341 = vrot.lane.b32.xlu0 %v3738, 32
        %v4342 = vpop.permute.xlu0 %4341
        %4343 = vrot.lane.b32.xlu0 %v3741, 32
        %v4344 = vpop.permute.xlu0 %4343
        %4345 = vrot.lane.b32.xlu0 %v3743, 32
        %v4346 = vpop.permute.xlu0 %4345
        %4347 = vrot.lane.b32.xlu0 %v3746, 32
        %v4348 = vpop.permute.xlu0 %4347
        %4349 = vrot.lane.b32.xlu0 %v3748, 32
        %v4350 = vpop.permute.xlu0 %4349
        %4351 = vrot.lane.b32.xlu0 %v3751, 32
        %v4352 = vpop.permute.xlu0 %4351
        %4353 = vrot.lane.b32.xlu0 %v3753, 32
        %v4354 = vpop.permute.xlu0 %4353
        %4355 = vrot.lane.b32.xlu0 %v3756, 32
        %v4356 = vpop.permute.xlu0 %4355
        %4357 = vrot.lane.b32.xlu0 %v3758, 32
        %v4358 = vpop.permute.xlu0 %4357
        %4359 = vrot.lane.b32.xlu0 %v3761, 32
        %v4360 = vpop.permute.xlu0 %4359
        %4361 = vrot.lane.b32.xlu0 %v3763, 32
        %v4362 = vpop.permute.xlu0 %4361
        %4363 = vrot.lane.b32.xlu0 %v3766, 32
        %v4364 = vpop.permute.xlu0 %4363
        %4365 = vrot.lane.b32.xlu0 %v3768, 32
        %v4366 = vpop.permute.xlu0 %4365
        %4367 = vrot.lane.b32.xlu0 %v3771, 32
        %v4368 = vpop.permute.xlu0 %4367
        %4369 = vrot.lane.b32.xlu0 %v3773, 32
        %v4370 = vpop.permute.xlu0 %4369
        %4403 = vrot.lane.b32.xlu0 %v4010, 64
        %v4404 = vpop.permute.xlu0 %4403
        %4405 = vrot.lane.b32.xlu0 %v4012, 64
        %v4406 = vpop.permute.xlu0 %4405
        %4407 = vrot.lane.b32.xlu0 %v4015, 64
        %v4408 = vpop.permute.xlu0 %4407
        %4409 = vrot.lane.b32.xlu0 %v4017, 64
        %v4410 = vpop.permute.xlu0 %4409
        %4411 = vrot.lane.b32.xlu0 %v4020, 64
        %v4412 = vpop.permute.xlu0 %4411
        %4413 = vrot.lane.b32.xlu0 %v4022, 64
        %v4414 = vpop.permute.xlu0 %4413
        %4415 = vrot.lane.b32.xlu0 %v4025, 64
        %v4416 = vpop.permute.xlu0 %4415
        %4417 = vrot.lane.b32.xlu0 %v4027, 64
        %v4418 = vpop.permute.xlu0 %4417
        %4419 = vrot.lane.b32.xlu0 %v4030, 64
        %v4420 = vpop.permute.xlu0 %4419
        %4421 = vrot.lane.b32.xlu0 %v4032, 64
        %v4422 = vpop.permute.xlu0 %4421
        %4423 = vrot.lane.b32.xlu0 %v4035, 64
        %v4424 = vpop.permute.xlu0 %4423
        %4425 = vrot.lane.b32.xlu0 %v4037, 64
        %v4426 = vpop.permute.xlu0 %4425
        %4427 = vrot.lane.b32.xlu0 %v4040, 64
        %v4428 = vpop.permute.xlu0 %4427
        %4429 = vrot.lane.b32.xlu0 %v4042, 64
        %v4430 = vpop.permute.xlu0 %4429
        %4431 = vrot.lane.b32.xlu0 %v4045, 64
        %v4432 = vpop.permute.xlu0 %4431
        %4433 = vrot.lane.b32.xlu0 %v4047, 64
        %v4434 = vpop.permute.xlu0 %4433
        %4467 = vrot.lane.b32.xlu0 %v4284, 96
        %v4468 = vpop.permute.xlu0 %4467
        %4469 = vrot.lane.b32.xlu0 %v4286, 96
        %v4470 = vpop.permute.xlu0 %4469
        %4471 = vrot.lane.b32.xlu0 %v4289, 96
        %v4472 = vpop.permute.xlu0 %4471
        %4473 = vrot.lane.b32.xlu0 %v4291, 96
        %v4474 = vpop.permute.xlu0 %4473
        %4475 = vrot.lane.b32.xlu0 %v4294, 96
        %v4476 = vpop.permute.xlu0 %4475
        %4477 = vrot.lane.b32.xlu0 %v4296, 96
        %v4478 = vpop.permute.xlu0 %4477
        %4479 = vrot.lane.b32.xlu0 %v4299, 96
        %v4480 = vpop.permute.xlu0 %4479
        %4481 = vrot.lane.b32.xlu0 %v4301, 96
        %v4482 = vpop.permute.xlu0 %4481
        %4483 = vrot.lane.b32.xlu0 %v4304, 96
        %v4484 = vpop.permute.xlu0 %4483
        %4485 = vrot.lane.b32.xlu0 %v4306, 96
        %v4486 = vpop.permute.xlu0 %4485
        %4487 = vrot.lane.b32.xlu0 %v4309, 96
        %v4488 = vpop.permute.xlu0 %4487
        %4489 = vrot.lane.b32.xlu0 %v4311, 96
        %v4490 = vpop.permute.xlu0 %4489
        %4491 = vrot.lane.b32.xlu0 %v4314, 96
        %v4492 = vpop.permute.xlu0 %4491
        %4493 = vrot.lane.b32.xlu0 %v4316, 96
        %v4494 = vpop.permute.xlu0 %4493
        %4495 = vrot.lane.b32.xlu0 %v4319, 96
        %v4496 = vpop.permute.xlu0 %4495
        %4497 = vrot.lane.b32.xlu0 %v4321, 96
        %v4498 = vpop.permute.xlu0 %4497
        %v4515 = vsel %vm1047, %v3462, %v4340
        %v4516 = vsel %vm1047, %v3464, %v4342
        %v4517 = vsel %vm1047, %v3467, %v4344
        %v4518 = vsel %vm1047, %v3469, %v4346
        %v4519 = vsel %vm1047, %v3472, %v4348
        %v4520 = vsel %vm1047, %v3474, %v4350
        %v4521 = vsel %vm1047, %v3477, %v4352
        %v4522 = vsel %vm1047, %v3479, %v4354
        %v4523 = vsel %vm1047, %v3482, %v4356
        %v4524 = vsel %vm1047, %v3484, %v4358
        %v4525 = vsel %vm1047, %v3487, %v4360
        %v4526 = vsel %vm1047, %v3489, %v4362
        %v4527 = vsel %vm1047, %v3492, %v4364
        %v4528 = vsel %vm1047, %v3494, %v4366
        %v4529 = vsel %vm1047, %v3497, %v4368
        %v4530 = vsel %vm1047, %v3499, %v4370
        %vm4531 = vcmask 523264
        %v4532 = vsel %vm4531, %v4515, %v4404
        %v4533 = vsel %vm4531, %v4516, %v4406
        %v4534 = vsel %vm4531, %v4517, %v4408
        %v4535 = vsel %vm4531, %v4518, %v4410
        %v4536 = vsel %vm4531, %v4519, %v4412
        %v4537 = vsel %vm4531, %v4520, %v4414
        %v4538 = vsel %vm4531, %v4521, %v4416
        %v4539 = vsel %vm4531, %v4522, %v4418
        %v4540 = vsel %vm4531, %v4523, %v4420
        %v4541 = vsel %vm4531, %v4524, %v4422
        %v4542 = vsel %vm4531, %v4525, %v4424
        %v4543 = vsel %vm4531, %v4526, %v4426
        %v4544 = vsel %vm4531, %v4527, %v4428
        %v4545 = vsel %vm4531, %v4528, %v4430
        %v4546 = vsel %vm4531, %v4529, %v4432
        %v4547 = vsel %vm4531, %v4530, %v4434
        %vm4548 = vcmask 785408
        %v4549 = vsel %vm4548, %v4532, %v4468
        %v4550 = vsel %vm4548, %v4533, %v4470
        %v4551 = vsel %vm4548, %v4534, %v4472
        %v4552 = vsel %vm4548, %v4535, %v4474
        %v4553 = vsel %vm4548, %v4536, %v4476
        %v4554 = vsel %vm4548, %v4537, %v4478
        %v4555 = vsel %vm4548, %v4538, %v4480
        %v4556 = vsel %vm4548, %v4539, %v4482
        %v4557 = vsel %vm4548, %v4540, %v4484
        %v4558 = vsel %vm4548, %v4541, %v4486
        %v4559 = vsel %vm4548, %v4542, %v4488
        %v4560 = vsel %vm4548, %v4543, %v4490
        %v4561 = vsel %vm4548, %v4544, %v4492
        %v4562 = vsel %vm4548, %v4545, %v4494
        %v4563 = vsel %vm4548, %v4546, %v4496
        %v4564 = vsel %vm4548, %v4547, %v4498
        %v4565 = vpack.c.bf16 %v4550, %v4549
        %v4566 = vpack.c.bf16 %v4552, %v4551
        %v4567 = vpack.c.bf16 %v4554, %v4553
        %v4568 = vpack.c.bf16 %v4556, %v4555
        %v4569 = vpack.c.bf16 %v4558, %v4557
        %v4570 = vpack.c.bf16 %v4560, %v4559
        %v4571 = vpack.c.bf16 %v4562, %v4561
        %v4572 = vpack.c.bf16 %v4564, %v4563
        %v4573 = vld [vmem:[%s5] sm:$0xf]
        %v4574 = vld [vmem:[%s5 + $0x4] sm:$0xf]
        %v4575 = vld [vmem:[%s5 + $0x8] sm:$0xf]
        %v4576 = vld [vmem:[%s5 + $0xc] sm:$0xf]
        %v4577 = vld [vmem:[%s5 + $0x10] sm:$0xf]
        %v4578 = vld [vmem:[%s5 + $0x14] sm:$0xf]
        %v4579 = vld [vmem:[%s5 + $0x18] sm:$0xf]
        %v4580 = vld [vmem:[%s5 + $0x1c] sm:$0xf]
        %v4581 = vld [vmem:[%s5 + $0x20] sm:$0xf]
        %v4582 = vld [vmem:[%s5 + $0x24] sm:$0xf]
        %v4583 = vld [vmem:[%s5 + $0x28] sm:$0xf]
        %v4584 = vld [vmem:[%s5 + $0x2c] sm:$0xf]
        %v4585 = vld [vmem:[%s5 + $0x30] sm:$0xf]
        %v4586 = vld [vmem:[%s5 + $0x34] sm:$0xf]
        %v4587 = vld [vmem:[%s5 + $0x38] sm:$0xf]
        %v4588 = vld [vmem:[%s5 + $0x3c] sm:$0xf]
        %v4589 = vld [vmem:[%s6] sm:$0x1]
        %v4591 = vperm.slane %v4589, 0
        %v4609 = vunpack.c.l.b16 %v4573
        %v4610 = vunpack.c.l.b16 %v4574
        %v4611 = vunpack.c.l.b16 %v4575
        %v4612 = vunpack.c.l.b16 %v4576
        %v4613 = vunpack.c.l.b16 %v4577
        %v4614 = vunpack.c.l.b16 %v4578
        %v4615 = vunpack.c.l.b16 %v4579
        %v4616 = vunpack.c.l.b16 %v4580
        %v4617 = vunpack.c.l.b16 %v4581
        %v4618 = vunpack.c.l.b16 %v4582
        %v4619 = vunpack.c.l.b16 %v4583
        %v4620 = vunpack.c.l.b16 %v4584
        %v4621 = vunpack.c.l.b16 %v4585
        %v4622 = vunpack.c.l.b16 %v4586
        %v4623 = vunpack.c.l.b16 %v4587
        %v4624 = vunpack.c.l.b16 %v4588
        %v4625 = vpack.c.b16 %v4610, %v4609
        %v4626 = vpack.c.b16 %v4612, %v4611
        %v4627 = vpack.c.b16 %v4614, %v4613
        %v4628 = vpack.c.b16 %v4616, %v4615
        %v4629 = vpack.c.b16 %v4618, %v4617
        %v4630 = vpack.c.b16 %v4620, %v4619
        %v4631 = vpack.c.b16 %v4622, %v4621
        %v4632 = vpack.c.b16 %v4624, %v4623
        %4641 = vmatpush.bf16.msra.mxu0 %v4632
        %4642 = vmatpush.bf16.msra.mxu0 %v4631
        %4643 = vmatpush.bf16.msra.mxu0 %v4630
        %4644 = vmatpush.bf16.msra.mxu0 %v4629
        %4645 = vmatpush.bf16.msra.mxu0 %v4628
        %4646 = vmatpush.bf16.msra.mxu0 %v4627
        %4647 = vmatpush.bf16.msra.mxu0 %v4626
        %4648 = vmatpush.bf16.msra.mxu0 %v4625
        %4649 = vmatmul.bf16.gmra.mxu0 %v4565
        %v4650 = vpop.f32.mrf.mxu0
        %v4651 = vadd.f32 %v4591, %v4650
        %v4652 = vpop.f32.mrf.mxu0
        %v4653 = vadd.f32 %v4591, %v4652
        %4654 = vmatmul.bf16.gmra.mxu0 %v4566
        %v4655 = vpop.f32.mrf.mxu0
        %v4656 = vadd.f32 %v4591, %v4655
        %v4657 = vpop.f32.mrf.mxu0
        %v4658 = vadd.f32 %v4591, %v4657
        %4659 = vmatmul.bf16.gmra.mxu0 %v4567
        %v4660 = vpop.f32.mrf.mxu0
        %v4661 = vadd.f32 %v4591, %v4660
        %v4662 = vpop.f32.mrf.mxu0
        %v4663 = vadd.f32 %v4591, %v4662
        %4664 = vmatmul.bf16.gmra.mxu0 %v4568
        %v4665 = vpop.f32.mrf.mxu0
        %v4666 = vadd.f32 %v4591, %v4665
        %v4667 = vpop.f32.mrf.mxu0
        %v4668 = vadd.f32 %v4591, %v4667
        %4669 = vmatmul.bf16.gmra.mxu0 %v4569
        %v4670 = vpop.f32.mrf.mxu0
        %v4671 = vadd.f32 %v4591, %v4670
        %v4672 = vpop.f32.mrf.mxu0
        %v4673 = vadd.f32 %v4591, %v4672
        %4674 = vmatmul.bf16.gmra.mxu0 %v4570
        %v4675 = vpop.f32.mrf.mxu0
        %v4676 = vadd.f32 %v4591, %v4675
        %v4677 = vpop.f32.mrf.mxu0
        %v4678 = vadd.f32 %v4591, %v4677
        %4679 = vmatmul.bf16.gmra.mxu0 %v4571
        %v4680 = vpop.f32.mrf.mxu0
        %v4681 = vadd.f32 %v4591, %v4680
        %v4682 = vpop.f32.mrf.mxu0
        %v4683 = vadd.f32 %v4591, %v4682
        %4684 = vmatmul.bf16.gmra.mxu0 %v4572
        %v4685 = vpop.f32.mrf.mxu0
        %v4686 = vadd.f32 %v4591, %v4685
        %v4687 = vpop.f32.mrf.mxu0
        %v4688 = vadd.f32 %v4591, %v4687
        %4689 = vdwg.mxu0
        %v4690 = vadd.f32 %v606, %v4651
        %v4691 = vadd.f32 %v607, %v4653
        %v4692 = vadd.f32 %v608, %v4656
        %v4693 = vadd.f32 %v609, %v4658
        %v4694 = vadd.f32 %v610, %v4661
        %v4695 = vadd.f32 %v611, %v4663
        %v4696 = vadd.f32 %v612, %v4666
        %v4697 = vadd.f32 %v613, %v4668
        %v4698 = vadd.f32 %v614, %v4671
        %v4699 = vadd.f32 %v615, %v4673
        %v4700 = vadd.f32 %v616, %v4676
        %v4701 = vadd.f32 %v617, %v4678
        %v4702 = vadd.f32 %v618, %v4681
        %v4703 = vadd.f32 %v619, %v4683
        %v4704 = vadd.f32 %v620, %v4686
        %v4705 = vadd.f32 %v621, %v4688
        %v4706 = vld [vmem:[%s7] sm:$0x1]
        %v4707 = vld [vmem:[%s8] sm:$0x1]
        %4708 = vadd.xlane.f32.xlu0 %v4690
        %v4709 = vpop.xlane.xlu0 %4708
        %4710 = vadd.xlane.f32.xlu0 %v4691
        %v4711 = vpop.xlane.xlu0 %4710
        %4712 = vadd.xlane.f32.xlu0 %v4692
        %v4713 = vpop.xlane.xlu0 %4712
        %4714 = vadd.xlane.f32.xlu0 %v4693
        %v4715 = vpop.xlane.xlu0 %4714
        %4716 = vadd.xlane.f32.xlu0 %v4694
        %v4717 = vpop.xlane.xlu0 %4716
        %4718 = vadd.xlane.f32.xlu0 %v4695
        %v4719 = vpop.xlane.xlu0 %4718
        %4720 = vadd.xlane.f32.xlu0 %v4696
        %v4721 = vpop.xlane.xlu0 %4720
        %4722 = vadd.xlane.f32.xlu0 %v4697
        %v4723 = vpop.xlane.xlu0 %4722
        %4724 = vadd.xlane.f32.xlu0 %v4698
        %v4725 = vpop.xlane.xlu0 %4724
        %4726 = vadd.xlane.f32.xlu0 %v4699
        %v4727 = vpop.xlane.xlu0 %4726
        %4728 = vadd.xlane.f32.xlu0 %v4700
        %v4729 = vpop.xlane.xlu0 %4728
        %4730 = vadd.xlane.f32.xlu0 %v4701
        %v4731 = vpop.xlane.xlu0 %4730
        %4732 = vadd.xlane.f32.xlu0 %v4702
        %v4733 = vpop.xlane.xlu0 %4732
        %4734 = vadd.xlane.f32.xlu0 %v4703
        %v4735 = vpop.xlane.xlu0 %4734
        %4736 = vadd.xlane.f32.xlu0 %v4704
        %v4737 = vpop.xlane.xlu0 %4736
        %4738 = vadd.xlane.f32.xlu0 %v4705
        %v4739 = vpop.xlane.xlu0 %4738
        %v4740 = vrcp.pop 128.0
        %v4741 = vmul.f32 128.0, %v4740
        %v4742 = vsub.f32 1.0, %v4741
        %v4743 = vmul.f32 %v4740, %v4742
        %v4744 = vadd.f32 %v4740, %v4743
        %vm4745 = vweird.f32 %v4740
        %v4746 = vsel %vm4745, %v4740, %v4744
        %v4747 = vmul.f32 %v4709, %v4746
        %v4748 = vmul.f32 %v4711, %v4746
        %v4749 = vmul.f32 %v4713, %v4746
        %v4750 = vmul.f32 %v4715, %v4746
        %v4751 = vmul.f32 %v4717, %v4746
        %v4752 = vmul.f32 %v4719, %v4746
        %v4753 = vmul.f32 %v4721, %v4746
        %v4754 = vmul.f32 %v4723, %v4746
        %v4755 = vmul.f32 %v4725, %v4746
        %v4756 = vmul.f32 %v4727, %v4746
        %v4757 = vmul.f32 %v4729, %v4746
        %v4758 = vmul.f32 %v4731, %v4746
        %v4759 = vmul.f32 %v4733, %v4746
        %v4760 = vmul.f32 %v4735, %v4746
        %v4761 = vmul.f32 %v4737, %v4746
        %v4762 = vmul.f32 %v4739, %v4746
        %v4763 = vsub.f32 %v4690, %v4747
        %v4764 = vsub.f32 %v4691, %v4748
        %v4765 = vsub.f32 %v4692, %v4749
        %v4766 = vsub.f32 %v4693, %v4750
        %v4767 = vsub.f32 %v4694, %v4751
        %v4768 = vsub.f32 %v4695, %v4752
        %v4769 = vsub.f32 %v4696, %v4753
        %v4770 = vsub.f32 %v4697, %v4754
        %v4771 = vsub.f32 %v4698, %v4755
        %v4772 = vsub.f32 %v4699, %v4756
        %v4773 = vsub.f32 %v4700, %v4757
        %v4774 = vsub.f32 %v4701, %v4758
        %v4775 = vsub.f32 %v4702, %v4759
        %v4776 = vsub.f32 %v4703, %v4760
        %v4777 = vsub.f32 %v4704, %v4761
        %v4778 = vsub.f32 %v4705, %v4762
        %v4779 = vmul.f32 %v4763, %v4763
        %v4780 = vmul.f32 %v4764, %v4764
        %v4781 = vmul.f32 %v4765, %v4765
        %v4782 = vmul.f32 %v4766, %v4766
        %v4783 = vmul.f32 %v4767, %v4767
        %v4784 = vmul.f32 %v4768, %v4768
        %v4785 = vmul.f32 %v4769, %v4769
        %v4786 = vmul.f32 %v4770, %v4770
        %v4787 = vmul.f32 %v4771, %v4771
        %v4788 = vmul.f32 %v4772, %v4772
        %v4789 = vmul.f32 %v4773, %v4773
        %v4790 = vmul.f32 %v4774, %v4774
        %v4791 = vmul.f32 %v4775, %v4775
        %v4792 = vmul.f32 %v4776, %v4776
        %v4793 = vmul.f32 %v4777, %v4777
        %v4794 = vmul.f32 %v4778, %v4778
        %4795 = vadd.xlane.f32.xlu0 %v4779
        %v4796 = vpop.xlane.xlu0 %4795
        %4797 = vadd.xlane.f32.xlu0 %v4780
        %v4798 = vpop.xlane.xlu0 %4797
        %4799 = vadd.xlane.f32.xlu0 %v4781
        %v4800 = vpop.xlane.xlu0 %4799
        %4801 = vadd.xlane.f32.xlu0 %v4782
        %v4802 = vpop.xlane.xlu0 %4801
        %4803 = vadd.xlane.f32.xlu0 %v4783
        %v4804 = vpop.xlane.xlu0 %4803
        %4805 = vadd.xlane.f32.xlu0 %v4784
        %v4806 = vpop.xlane.xlu0 %4805
        %4807 = vadd.xlane.f32.xlu0 %v4785
        %v4808 = vpop.xlane.xlu0 %4807
        %4809 = vadd.xlane.f32.xlu0 %v4786
        %v4810 = vpop.xlane.xlu0 %4809
        %4811 = vadd.xlane.f32.xlu0 %v4787
        %v4812 = vpop.xlane.xlu0 %4811
        %4813 = vadd.xlane.f32.xlu0 %v4788
        %v4814 = vpop.xlane.xlu0 %4813
        %4815 = vadd.xlane.f32.xlu0 %v4789
        %v4816 = vpop.xlane.xlu0 %4815
        %4817 = vadd.xlane.f32.xlu0 %v4790
        %v4818 = vpop.xlane.xlu0 %4817
        %4819 = vadd.xlane.f32.xlu0 %v4791
        %v4820 = vpop.xlane.xlu0 %4819
        %4821 = vadd.xlane.f32.xlu0 %v4792
        %v4822 = vpop.xlane.xlu0 %4821
        %4823 = vadd.xlane.f32.xlu0 %v4793
        %v4824 = vpop.xlane.xlu0 %4823
        %4825 = vadd.xlane.f32.xlu0 %v4794
        %v4826 = vpop.xlane.xlu0 %4825
        %v4827 = vmul.f32 %v4796, %v4746
        %v4828 = vmul.f32 %v4798, %v4746
        %v4829 = vmul.f32 %v4800, %v4746
        %v4830 = vmul.f32 %v4802, %v4746
        %v4831 = vmul.f32 %v4804, %v4746
        %v4832 = vmul.f32 %v4806, %v4746
        %v4833 = vmul.f32 %v4808, %v4746
        %v4834 = vmul.f32 %v4810, %v4746
        %v4835 = vmul.f32 %v4812, %v4746
        %v4836 = vmul.f32 %v4814, %v4746
        %v4837 = vmul.f32 %v4816, %v4746
        %v4838 = vmul.f32 %v4818, %v4746
        %v4839 = vmul.f32 %v4820, %v4746
        %v4840 = vmul.f32 %v4822, %v4746
        %v4841 = vmul.f32 %v4824, %v4746
        %v4842 = vmul.f32 %v4826, %v4746
        %v4843 = vadd.f32 %v4827, 1e-05
        %v4844 = vadd.f32 %v4828, 1e-05
        %v4845 = vadd.f32 %v4829, 1e-05
        %v4846 = vadd.f32 %v4830, 1e-05
        %v4847 = vadd.f32 %v4831, 1e-05
        %v4848 = vadd.f32 %v4832, 1e-05
        %v4849 = vadd.f32 %v4833, 1e-05
        %v4850 = vadd.f32 %v4834, 1e-05
        %v4851 = vadd.f32 %v4835, 1e-05
        %v4852 = vadd.f32 %v4836, 1e-05
        %v4853 = vadd.f32 %v4837, 1e-05
        %v4854 = vadd.f32 %v4838, 1e-05
        %v4855 = vadd.f32 %v4839, 1e-05
        %v4856 = vadd.f32 %v4840, 1e-05
        %v4857 = vadd.f32 %v4841, 1e-05
        %v4858 = vadd.f32 %v4842, 1e-05
        %v4859 = vrsqrt.pop %v4843
        %v4860 = vmul.f32 %v4859, %v4843
        %v4861 = vmul.f32 %v4860, %v4859
        %v4862 = vmul.f32 0.5, %v4861
        %v4863 = vsub.f32 1.5, %v4862
        %v4864 = vmul.f32 %v4859, %v4863
        %vm4865 = vweird.f32 %v4843
        %vm4866 = vweird.f32 %v4859
        %vm4867 = vmor %vm4865, %vm4866
        %v4868 = vsel %vm4867, %v4859, %v4864
        %v4869 = vrsqrt.pop %v4844
        %v4870 = vmul.f32 %v4869, %v4844
        %v4871 = vmul.f32 %v4870, %v4869
        %v4872 = vmul.f32 0.5, %v4871
        %v4873 = vsub.f32 1.5, %v4872
        %v4874 = vmul.f32 %v4869, %v4873
        %vm4875 = vweird.f32 %v4844
        %vm4876 = vweird.f32 %v4869
        %vm4877 = vmor %vm4875, %vm4876
        %v4878 = vsel %vm4877, %v4869, %v4874
        %v4879 = vrsqrt.pop %v4845
        %v4880 = vmul.f32 %v4879, %v4845
        %v4881 = vmul.f32 %v4880, %v4879
        %v4882 = vmul.f32 0.5, %v4881
        %v4883 = vsub.f32 1.5, %v4882
        %v4884 = vmul.f32 %v4879, %v4883
        %vm4885 = vweird.f32 %v4845
        %vm4886 = vweird.f32 %v4879
        %vm4887 = vmor %vm4885, %vm4886
        %v4888 = vsel %vm4887, %v4879, %v4884
        %v4889 = vrsqrt.pop %v4846
        %v4890 = vmul.f32 %v4889, %v4846
        %v4891 = vmul.f32 %v4890, %v4889
        %v4892 = vmul.f32 0.5, %v4891
        %v4893 = vsub.f32 1.5, %v4892
        %v4894 = vmul.f32 %v4889, %v4893
        %vm4895 = vweird.f32 %v4846
        %vm4896 = vweird.f32 %v4889
        %vm4897 = vmor %vm4895, %vm4896
        %v4898 = vsel %vm4897, %v4889, %v4894
        %v4899 = vrsqrt.pop %v4847
        %v4900 = vmul.f32 %v4899, %v4847
        %v4901 = vmul.f32 %v4900, %v4899
        %v4902 = vmul.f32 0.5, %v4901
        %v4903 = vsub.f32 1.5, %v4902
        %v4904 = vmul.f32 %v4899, %v4903
        %vm4905 = vweird.f32 %v4847
        %vm4906 = vweird.f32 %v4899
        %vm4907 = vmor %vm4905, %vm4906
        %v4908 = vsel %vm4907, %v4899, %v4904
        %v4909 = vrsqrt.pop %v4848
        %v4910 = vmul.f32 %v4909, %v4848
        %v4911 = vmul.f32 %v4910, %v4909
        %v4912 = vmul.f32 0.5, %v4911
        %v4913 = vsub.f32 1.5, %v4912
        %v4914 = vmul.f32 %v4909, %v4913
        %vm4915 = vweird.f32 %v4848
        %vm4916 = vweird.f32 %v4909
        %vm4917 = vmor %vm4915, %vm4916
        %v4918 = vsel %vm4917, %v4909, %v4914
        %v4919 = vrsqrt.pop %v4849
        %v4920 = vmul.f32 %v4919, %v4849
        %v4921 = vmul.f32 %v4920, %v4919
        %v4922 = vmul.f32 0.5, %v4921
        %v4923 = vsub.f32 1.5, %v4922
        %v4924 = vmul.f32 %v4919, %v4923
        %vm4925 = vweird.f32 %v4849
        %vm4926 = vweird.f32 %v4919
        %vm4927 = vmor %vm4925, %vm4926
        %v4928 = vsel %vm4927, %v4919, %v4924
        %v4929 = vrsqrt.pop %v4850
        %v4930 = vmul.f32 %v4929, %v4850
        %v4931 = vmul.f32 %v4930, %v4929
        %v4932 = vmul.f32 0.5, %v4931
        %v4933 = vsub.f32 1.5, %v4932
        %v4934 = vmul.f32 %v4929, %v4933
        %vm4935 = vweird.f32 %v4850
        %vm4936 = vweird.f32 %v4929
        %vm4937 = vmor %vm4935, %vm4936
        %v4938 = vsel %vm4937, %v4929, %v4934
        %v4939 = vrsqrt.pop %v4851
        %v4940 = vmul.f32 %v4939, %v4851
        %v4941 = vmul.f32 %v4940, %v4939
        %v4942 = vmul.f32 0.5, %v4941
        %v4943 = vsub.f32 1.5, %v4942
        %v4944 = vmul.f32 %v4939, %v4943
        %vm4945 = vweird.f32 %v4851
        %vm4946 = vweird.f32 %v4939
        %vm4947 = vmor %vm4945, %vm4946
        %v4948 = vsel %vm4947, %v4939, %v4944
        %v4949 = vrsqrt.pop %v4852
        %v4950 = vmul.f32 %v4949, %v4852
        %v4951 = vmul.f32 %v4950, %v4949
        %v4952 = vmul.f32 0.5, %v4951
        %v4953 = vsub.f32 1.5, %v4952
        %v4954 = vmul.f32 %v4949, %v4953
        %vm4955 = vweird.f32 %v4852
        %vm4956 = vweird.f32 %v4949
        %vm4957 = vmor %vm4955, %vm4956
        %v4958 = vsel %vm4957, %v4949, %v4954
        %v4959 = vrsqrt.pop %v4853
        %v4960 = vmul.f32 %v4959, %v4853
        %v4961 = vmul.f32 %v4960, %v4959
        %v4962 = vmul.f32 0.5, %v4961
        %v4963 = vsub.f32 1.5, %v4962
        %v4964 = vmul.f32 %v4959, %v4963
        %vm4965 = vweird.f32 %v4853
        %vm4966 = vweird.f32 %v4959
        %vm4967 = vmor %vm4965, %vm4966
        %v4968 = vsel %vm4967, %v4959, %v4964
        %v4969 = vrsqrt.pop %v4854
        %v4970 = vmul.f32 %v4969, %v4854
        %v4971 = vmul.f32 %v4970, %v4969
        %v4972 = vmul.f32 0.5, %v4971
        %v4973 = vsub.f32 1.5, %v4972
        %v4974 = vmul.f32 %v4969, %v4973
        %vm4975 = vweird.f32 %v4854
        %vm4976 = vweird.f32 %v4969
        %vm4977 = vmor %vm4975, %vm4976
        %v4978 = vsel %vm4977, %v4969, %v4974
        %v4979 = vrsqrt.pop %v4855
        %v4980 = vmul.f32 %v4979, %v4855
        %v4981 = vmul.f32 %v4980, %v4979
        %v4982 = vmul.f32 0.5, %v4981
        %v4983 = vsub.f32 1.5, %v4982
        %v4984 = vmul.f32 %v4979, %v4983
        %vm4985 = vweird.f32 %v4855
        %vm4986 = vweird.f32 %v4979
        %vm4987 = vmor %vm4985, %vm4986
        %v4988 = vsel %vm4987, %v4979, %v4984
        %v4989 = vrsqrt.pop %v4856
        %v4990 = vmul.f32 %v4989, %v4856
        %v4991 = vmul.f32 %v4990, %v4989
        %v4992 = vmul.f32 0.5, %v4991
        %v4993 = vsub.f32 1.5, %v4992
        %v4994 = vmul.f32 %v4989, %v4993
        %vm4995 = vweird.f32 %v4856
        %vm4996 = vweird.f32 %v4989
        %vm4997 = vmor %vm4995, %vm4996
        %v4998 = vsel %vm4997, %v4989, %v4994
        %v4999 = vrsqrt.pop %v4857
        %v5000 = vmul.f32 %v4999, %v4857
        %v5001 = vmul.f32 %v5000, %v4999
        %v5002 = vmul.f32 0.5, %v5001
        %v5003 = vsub.f32 1.5, %v5002
        %v5004 = vmul.f32 %v4999, %v5003
        %vm5005 = vweird.f32 %v4857
        %vm5006 = vweird.f32 %v4999
        %vm5007 = vmor %vm5005, %vm5006
        %v5008 = vsel %vm5007, %v4999, %v5004
        %v5009 = vrsqrt.pop %v4858
        %v5010 = vmul.f32 %v5009, %v4858
        %v5011 = vmul.f32 %v5010, %v5009
        %v5012 = vmul.f32 0.5, %v5011
        %v5013 = vsub.f32 1.5, %v5012
        %v5014 = vmul.f32 %v5009, %v5013
        %vm5015 = vweird.f32 %v4858
        %vm5016 = vweird.f32 %v5009
        %vm5017 = vmor %vm5015, %vm5016
        %v5018 = vsel %vm5017, %v5009, %v5014
        %v5019 = vmul.f32 %v4763, %v4868
        %v5020 = vmul.f32 %v4764, %v4878
        %v5021 = vmul.f32 %v4765, %v4888
        %v5022 = vmul.f32 %v4766, %v4898
        %v5023 = vmul.f32 %v4767, %v4908
        %v5024 = vmul.f32 %v4768, %v4918
        %v5025 = vmul.f32 %v4769, %v4928
        %v5026 = vmul.f32 %v4770, %v4938
        %v5027 = vmul.f32 %v4771, %v4948
        %v5028 = vmul.f32 %v4772, %v4958
        %v5029 = vmul.f32 %v4773, %v4968
        %v5030 = vmul.f32 %v4774, %v4978
        %v5031 = vmul.f32 %v4775, %v4988
        %v5032 = vmul.f32 %v4776, %v4998
        %v5033 = vmul.f32 %v4777, %v5008
        %v5034 = vmul.f32 %v4778, %v5018
        %v5036 = vperm.slane %v4706, 0
        %v5038 = vmul.f32 %v5019, %v5036
        %v5039 = vmul.f32 %v5020, %v5036
        %v5040 = vmul.f32 %v5021, %v5036
        %v5041 = vmul.f32 %v5022, %v5036
        %v5042 = vmul.f32 %v5023, %v5036
        %v5043 = vmul.f32 %v5024, %v5036
        %v5044 = vmul.f32 %v5025, %v5036
        %v5045 = vmul.f32 %v5026, %v5036
        %v5046 = vmul.f32 %v5027, %v5036
        %v5047 = vmul.f32 %v5028, %v5036
        %v5048 = vmul.f32 %v5029, %v5036
        %v5049 = vmul.f32 %v5030, %v5036
        %v5050 = vmul.f32 %v5031, %v5036
        %v5051 = vmul.f32 %v5032, %v5036
        %v5052 = vmul.f32 %v5033, %v5036
        %v5053 = vmul.f32 %v5034, %v5036
        %v5055 = vperm.slane %v4707, 0
        %v5057 = vadd.f32 %v5038, %v5055
        %v5058 = vadd.f32 %v5039, %v5055
        %v5059 = vadd.f32 %v5040, %v5055
        %v5060 = vadd.f32 %v5041, %v5055
        %v5061 = vadd.f32 %v5042, %v5055
        %v5062 = vadd.f32 %v5043, %v5055
        %v5063 = vadd.f32 %v5044, %v5055
        %v5064 = vadd.f32 %v5045, %v5055
        %v5065 = vadd.f32 %v5046, %v5055
        %v5066 = vadd.f32 %v5047, %v5055
        %v5067 = vadd.f32 %v5048, %v5055
        %v5068 = vadd.f32 %v5049, %v5055
        %v5069 = vadd.f32 %v5050, %v5055
        %v5070 = vadd.f32 %v5051, %v5055
        %v5071 = vadd.f32 %v5052, %v5055
        %v5072 = vadd.f32 %v5053, %v5055
        %v5073 = vpack.c.bf16 %v5058, %v5057
        %v5074 = vpack.c.bf16 %v5060, %v5059
        %v5075 = vpack.c.bf16 %v5062, %v5061
        %v5076 = vpack.c.bf16 %v5064, %v5063
        %v5077 = vpack.c.bf16 %v5066, %v5065
        %v5078 = vpack.c.bf16 %v5068, %v5067
        %v5079 = vpack.c.bf16 %v5070, %v5069
        %v5080 = vpack.c.bf16 %v5072, %v5071
        %v5081 = vld [vmem:[%s9] sm:$0xff]
        %v5082 = vld [vmem:[%s9 + $0x8] sm:$0xff]
        %v5083 = vld [vmem:[%s9 + $0x10] sm:$0xff]
        %v5084 = vld [vmem:[%s9 + $0x18] sm:$0xff]
        %v5085 = vld [vmem:[%s9 + $0x20] sm:$0xff]
        %v5086 = vld [vmem:[%s9 + $0x28] sm:$0xff]
        %v5087 = vld [vmem:[%s9 + $0x30] sm:$0xff]
        %v5088 = vld [vmem:[%s9 + $0x38] sm:$0xff]
        %v5089 = vld [vmem:[%s9 + $0x40] sm:$0xff]
        %v5090 = vld [vmem:[%s9 + $0x48] sm:$0xff]
        %v5091 = vld [vmem:[%s9 + $0x50] sm:$0xff]
        %v5092 = vld [vmem:[%s9 + $0x58] sm:$0xff]
        %v5093 = vld [vmem:[%s9 + $0x60] sm:$0xff]
        %v5094 = vld [vmem:[%s9 + $0x68] sm:$0xff]
        %v5095 = vld [vmem:[%s9 + $0x70] sm:$0xff]
        %v5096 = vld [vmem:[%s9 + $0x78] sm:$0xff]
        %v5097 = vld [vmem:[%s10] sm:$0x3]
        %v5099 = vperm.slane %v5097, 0
        %v5100 = vperm.slane %v5097, 1
        %v5119 = vunpack.c.l.b16 %v5081
        %v5120 = vunpack.c.h.b16 %v5081
        %v5121 = vunpack.c.l.b16 %v5082
        %v5122 = vunpack.c.h.b16 %v5082
        %v5123 = vunpack.c.l.b16 %v5083
        %v5124 = vunpack.c.h.b16 %v5083
        %v5125 = vunpack.c.l.b16 %v5084
        %v5126 = vunpack.c.h.b16 %v5084
        %v5127 = vunpack.c.l.b16 %v5085
        %v5128 = vunpack.c.h.b16 %v5085
        %v5129 = vunpack.c.l.b16 %v5086
        %v5130 = vunpack.c.h.b16 %v5086
        %v5131 = vunpack.c.l.b16 %v5087
        %v5132 = vunpack.c.h.b16 %v5087
        %v5133 = vunpack.c.l.b16 %v5088
        %v5134 = vunpack.c.h.b16 %v5088
        %v5135 = vunpack.c.l.b16 %v5089
        %v5136 = vunpack.c.h.b16 %v5089
        %v5137 = vunpack.c.l.b16 %v5090
        %v5138 = vunpack.c.h.b16 %v5090
        %v5139 = vunpack.c.l.b16 %v5091
        %v5140 = vunpack.c.h.b16 %v5091
        %v5141 = vunpack.c.l.b16 %v5092
        %v5142 = vunpack.c.h.b16 %v5092
        %v5143 = vunpack.c.l.b16 %v5093
        %v5144 = vunpack.c.h.b16 %v5093
        %v5145 = vunpack.c.l.b16 %v5094
        %v5146 = vunpack.c.h.b16 %v5094
        %v5147 = vunpack.c.l.b16 %v5095
        %v5148 = vunpack.c.h.b16 %v5095
        %v5149 = vunpack.c.l.b16 %v5096
        %v5150 = vunpack.c.h.b16 %v5096
        %v5151 = vpack.c.b16 %v5121, %v5119
        %v5152 = vpack.c.b16 %v5122, %v5120
        %v5153 = vpack.c.b16 %v5125, %v5123
        %v5154 = vpack.c.b16 %v5126, %v5124
        %v5155 = vpack.c.b16 %v5129, %v5127
        %v5156 = vpack.c.b16 %v5130, %v5128
        %v5157 = vpack.c.b16 %v5133, %v5131
        %v5158 = vpack.c.b16 %v5134, %v5132
        %v5159 = vpack.c.b16 %v5137, %v5135
        %v5160 = vpack.c.b16 %v5138, %v5136
        %v5161 = vpack.c.b16 %v5141, %v5139
        %v5162 = vpack.c.b16 %v5142, %v5140
        %v5163 = vpack.c.b16 %v5145, %v5143
        %v5164 = vpack.c.b16 %v5146, %v5144
        %v5165 = vpack.c.b16 %v5149, %v5147
        %v5166 = vpack.c.b16 %v5150, %v5148
        %5183 = vmatpush.bf16.msra.mxu0 %v5165
        %5184 = vmatpush.bf16.msra.mxu0 %v5163
        %5185 = vmatpush.bf16.msra.mxu0 %v5161
        %5186 = vmatpush.bf16.msra.mxu0 %v5159
        %5187 = vmatpush.bf16.msra.mxu0 %v5157
        %5188 = vmatpush.bf16.msra.mxu0 %v5155
        %5189 = vmatpush.bf16.msra.mxu0 %v5153
        %5190 = vmatpush.bf16.msra.mxu0 %v5151
        %5191 = vmatmul.bf16.gmra.mxu0 %v5073
        %v5192 = vpop.f32.mrf.mxu0
        %v5193 = vadd.f32 %v5099, %v5192
        %v5194 = vpop.f32.mrf.mxu0
        %v5195 = vadd.f32 %v5099, %v5194
        %5196 = vmatmul.bf16.gmra.mxu0 %v5074
        %v5197 = vpop.f32.mrf.mxu0
        %v5198 = vadd.f32 %v5099, %v5197
        %v5199 = vpop.f32.mrf.mxu0
        %v5200 = vadd.f32 %v5099, %v5199
        %5201 = vmatmul.bf16.gmra.mxu0 %v5075
        %v5202 = vpop.f32.mrf.mxu0
        %v5203 = vadd.f32 %v5099, %v5202
        %v5204 = vpop.f32.mrf.mxu0
        %v5205 = vadd.f32 %v5099, %v5204
        %5206 = vmatmul.bf16.gmra.mxu0 %v5076
        %v5207 = vpop.f32.mrf.mxu0
        %v5208 = vadd.f32 %v5099, %v5207
        %v5209 = vpop.f32.mrf.mxu0
        %v5210 = vadd.f32 %v5099, %v5209
        %5211 = vmatmul.bf16.gmra.mxu0 %v5077
        %v5212 = vpop.f32.mrf.mxu0
        %v5213 = vadd.f32 %v5099, %v5212
        %v5214 = vpop.f32.mrf.mxu0
        %v5215 = vadd.f32 %v5099, %v5214
        %5216 = vmatmul.bf16.gmra.mxu0 %v5078
        %v5217 = vpop.f32.mrf.mxu0
        %v5218 = vadd.f32 %v5099, %v5217
        %v5219 = vpop.f32.mrf.mxu0
        %v5220 = vadd.f32 %v5099, %v5219
        %5221 = vmatmul.bf16.gmra.mxu0 %v5079
        %v5222 = vpop.f32.mrf.mxu0
        %v5223 = vadd.f32 %v5099, %v5222
        %v5224 = vpop.f32.mrf.mxu0
        %v5225 = vadd.f32 %v5099, %v5224
        %5226 = vmatmul.bf16.gmra.mxu0 %v5080
        %v5227 = vpop.f32.mrf.mxu0
        %v5228 = vadd.f32 %v5099, %v5227
        %v5229 = vpop.f32.mrf.mxu0
        %v5230 = vadd.f32 %v5099, %v5229
        %5231 = vdwg.mxu0
        %5232 = vmatpush.bf16.msra.mxu0 %v5166
        %5233 = vmatpush.bf16.msra.mxu0 %v5164
        %5234 = vmatpush.bf16.msra.mxu0 %v5162
        %5235 = vmatpush.bf16.msra.mxu0 %v5160
        %5236 = vmatpush.bf16.msra.mxu0 %v5158
        %5237 = vmatpush.bf16.msra.mxu0 %v5156
        %5238 = vmatpush.bf16.msra.mxu0 %v5154
        %5239 = vmatpush.bf16.msra.mxu0 %v5152
        %5240 = vmatmul.bf16.gmra.mxu0 %v5073
        %v5241 = vpop.f32.mrf.mxu0
        %v5242 = vadd.f32 %v5100, %v5241
        %v5243 = vpop.f32.mrf.mxu0
        %v5244 = vadd.f32 %v5100, %v5243
        %5245 = vmatmul.bf16.gmra.mxu0 %v5074
        %v5246 = vpop.f32.mrf.mxu0
        %v5247 = vadd.f32 %v5100, %v5246
        %v5248 = vpop.f32.mrf.mxu0
        %v5249 = vadd.f32 %v5100, %v5248
        %5250 = vmatmul.bf16.gmra.mxu0 %v5075
        %v5251 = vpop.f32.mrf.mxu0
        %v5252 = vadd.f32 %v5100, %v5251
        %v5253 = vpop.f32.mrf.mxu0
        %v5254 = vadd.f32 %v5100, %v5253
        %5255 = vmatmul.bf16.gmra.mxu0 %v5076
        %v5256 = vpop.f32.mrf.mxu0
        %v5257 = vadd.f32 %v5100, %v5256
        %v5258 = vpop.f32.mrf.mxu0
        %v5259 = vadd.f32 %v5100, %v5258
        %5260 = vmatmul.bf16.gmra.mxu0 %v5077
        %v5261 = vpop.f32.mrf.mxu0
        %v5262 = vadd.f32 %v5100, %v5261
        %v5263 = vpop.f32.mrf.mxu0
        %v5264 = vadd.f32 %v5100, %v5263
        %5265 = vmatmul.bf16.gmra.mxu0 %v5078
        %v5266 = vpop.f32.mrf.mxu0
        %v5267 = vadd.f32 %v5100, %v5266
        %v5268 = vpop.f32.mrf.mxu0
        %v5269 = vadd.f32 %v5100, %v5268
        %5270 = vmatmul.bf16.gmra.mxu0 %v5079
        %v5271 = vpop.f32.mrf.mxu0
        %v5272 = vadd.f32 %v5100, %v5271
        %v5273 = vpop.f32.mrf.mxu0
        %v5274 = vadd.f32 %v5100, %v5273
        %5275 = vmatmul.bf16.gmra.mxu0 %v5080
        %v5276 = vpop.f32.mrf.mxu0
        %v5277 = vadd.f32 %v5100, %v5276
        %v5278 = vpop.f32.mrf.mxu0
        %v5279 = vadd.f32 %v5100, %v5278
        %5280 = vdwg.mxu0
        %v5281 = vmax.f32 %v5193, 0.0
        %v5282 = vmax.f32 %v5242, 0.0
        %v5283 = vmax.f32 %v5195, 0.0
        %v5284 = vmax.f32 %v5244, 0.0
        %v5285 = vmax.f32 %v5198, 0.0
        %v5286 = vmax.f32 %v5247, 0.0
        %v5287 = vmax.f32 %v5200, 0.0
        %v5288 = vmax.f32 %v5249, 0.0
        %v5289 = vmax.f32 %v5203, 0.0
        %v5290 = vmax.f32 %v5252, 0.0
        %v5291 = vmax.f32 %v5205, 0.0
        %v5292 = vmax.f32 %v5254, 0.0
        %v5293 = vmax.f32 %v5208, 0.0
        %v5294 = vmax.f32 %v5257, 0.0
        %v5295 = vmax.f32 %v5210, 0.0
        %v5296 = vmax.f32 %v5259, 0.0
        %v5297 = vmax.f32 %v5213, 0.0
        %v5298 = vmax.f32 %v5262, 0.0
        %v5299 = vmax.f32 %v5215, 0.0
        %v5300 = vmax.f32 %v5264, 0.0
        %v5301 = vmax.f32 %v5218, 0.0
        %v5302 = vmax.f32 %v5267, 0.0
        %v5303 = vmax.f32 %v5220, 0.0
        %v5304 = vmax.f32 %v5269, 0.0
        %v5305 = vmax.f32 %v5223, 0.0
        %v5306 = vmax.f32 %v5272, 0.0
        %v5307 = vmax.f32 %v5225, 0.0
        %v5308 = vmax.f32 %v5274, 0.0
        %v5309 = vmax.f32 %v5228, 0.0
        %v5310 = vmax.f32 %v5277, 0.0
        %v5311 = vmax.f32 %v5230, 0.0
        %v5312 = vmax.f32 %v5279, 0.0
        %v5313 = vpack.c.bf16 %v5283, %v5281
        %v5314 = vpack.c.bf16 %v5284, %v5282
        %v5315 = vpack.c.bf16 %v5287, %v5285
        %v5316 = vpack.c.bf16 %v5288, %v5286
        %v5317 = vpack.c.bf16 %v5291, %v5289
        %v5318 = vpack.c.bf16 %v5292, %v5290
        %v5319 = vpack.c.bf16 %v5295, %v5293
        %v5320 = vpack.c.bf16 %v5296, %v5294
        %v5321 = vpack.c.bf16 %v5299, %v5297
        %v5322 = vpack.c.bf16 %v5300, %v5298
        %v5323 = vpack.c.bf16 %v5303, %v5301
        %v5324 = vpack.c.bf16 %v5304, %v5302
        %v5325 = vpack.c.bf16 %v5307, %v5305
        %v5326 = vpack.c.bf16 %v5308, %v5306
        %v5327 = vpack.c.bf16 %v5311, %v5309
        %v5328 = vpack.c.bf16 %v5312, %v5310
        %v5329 = vld [vmem:[%s11] sm:$0xf]
        %v5330 = vld [vmem:[%s11 + $0x4] sm:$0xf]
        %v5331 = vld [vmem:[%s11 + $0x8] sm:$0xf]
        %v5332 = vld [vmem:[%s11 + $0xc] sm:$0xf]
        %v5333 = vld [vmem:[%s11 + $0x10] sm:$0xf]
        %v5334 = vld [vmem:[%s11 + $0x14] sm:$0xf]
        %v5335 = vld [vmem:[%s11 + $0x18] sm:$0xf]
        %v5336 = vld [vmem:[%s11 + $0x1c] sm:$0xf]
        %v5337 = vld [vmem:[%s11 + $0x20] sm:$0xf]
        %v5338 = vld [vmem:[%s11 + $0x24] sm:$0xf]
        %v5339 = vld [vmem:[%s11 + $0x28] sm:$0xf]
        %v5340 = vld [vmem:[%s11 + $0x2c] sm:$0xf]
        %v5341 = vld [vmem:[%s11 + $0x30] sm:$0xf]
        %v5342 = vld [vmem:[%s11 + $0x34] sm:$0xf]
        %v5343 = vld [vmem:[%s11 + $0x38] sm:$0xf]
        %v5344 = vld [vmem:[%s11 + $0x3c] sm:$0xf]
        %v5345 = vld [vmem:[%s11 + $0x40] sm:$0xf]
        %v5346 = vld [vmem:[%s11 + $0x44] sm:$0xf]
        %v5347 = vld [vmem:[%s11 + $0x48] sm:$0xf]
        %v5348 = vld [vmem:[%s11 + $0x4c] sm:$0xf]
        %v5349 = vld [vmem:[%s11 + $0x50] sm:$0xf]
        %v5350 = vld [vmem:[%s11 + $0x54] sm:$0xf]
        %v5351 = vld [vmem:[%s11 + $0x58] sm:$0xf]
        %v5352 = vld [vmem:[%s11 + $0x5c] sm:$0xf]
        %v5353 = vld [vmem:[%s11 + $0x60] sm:$0xf]
        %v5354 = vld [vmem:[%s11 + $0x64] sm:$0xf]
        %v5355 = vld [vmem:[%s11 + $0x68] sm:$0xf]
        %v5356 = vld [vmem:[%s11 + $0x6c] sm:$0xf]
        %v5357 = vld [vmem:[%s11 + $0x70] sm:$0xf]
        %v5358 = vld [vmem:[%s11 + $0x74] sm:$0xf]
        %v5359 = vld [vmem:[%s11 + $0x78] sm:$0xf]
        %v5360 = vld [vmem:[%s11 + $0x7c] sm:$0xf]
        %v5361 = vld [vmem:[%s12] sm:$0x1]
        %v5363 = vperm.slane %v5361, 0
        %v5397 = vunpack.c.l.b16 %v5329
        %v5398 = vunpack.c.l.b16 %v5330
        %v5399 = vunpack.c.l.b16 %v5331
        %v5400 = vunpack.c.l.b16 %v5332
        %v5401 = vunpack.c.l.b16 %v5333
        %v5402 = vunpack.c.l.b16 %v5334
        %v5403 = vunpack.c.l.b16 %v5335
        %v5404 = vunpack.c.l.b16 %v5336
        %v5405 = vunpack.c.l.b16 %v5337
        %v5406 = vunpack.c.l.b16 %v5338
        %v5407 = vunpack.c.l.b16 %v5339
        %v5408 = vunpack.c.l.b16 %v5340
        %v5409 = vunpack.c.l.b16 %v5341
        %v5410 = vunpack.c.l.b16 %v5342
        %v5411 = vunpack.c.l.b16 %v5343
        %v5412 = vunpack.c.l.b16 %v5344
        %v5413 = vunpack.c.l.b16 %v5345
        %v5414 = vunpack.c.l.b16 %v5346
        %v5415 = vunpack.c.l.b16 %v5347
        %v5416 = vunpack.c.l.b16 %v5348
        %v5417 = vunpack.c.l.b16 %v5349
        %v5418 = vunpack.c.l.b16 %v5350
        %v5419 = vunpack.c.l.b16 %v5351
        %v5420 = vunpack.c.l.b16 %v5352
        %v5421 = vunpack.c.l.b16 %v5353
        %v5422 = vunpack.c.l.b16 %v5354
        %v5423 = vunpack.c.l.b16 %v5355
        %v5424 = vunpack.c.l.b16 %v5356
        %v5425 = vunpack.c.l.b16 %v5357
        %v5426 = vunpack.c.l.b16 %v5358
        %v5427 = vunpack.c.l.b16 %v5359
        %v5428 = vunpack.c.l.b16 %v5360
        %v5429 = vpack.c.b16 %v5398, %v5397
        %v5430 = vpack.c.b16 %v5400, %v5399
        %v5431 = vpack.c.b16 %v5402, %v5401
        %v5432 = vpack.c.b16 %v5404, %v5403
        %v5433 = vpack.c.b16 %v5406, %v5405
        %v5434 = vpack.c.b16 %v5408, %v5407
        %v5435 = vpack.c.b16 %v5410, %v5409
        %v5436 = vpack.c.b16 %v5412, %v5411
        %v5437 = vpack.c.b16 %v5414, %v5413
        %v5438 = vpack.c.b16 %v5416, %v5415
        %v5439 = vpack.c.b16 %v5418, %v5417
        %v5440 = vpack.c.b16 %v5420, %v5419
        %v5441 = vpack.c.b16 %v5422, %v5421
        %v5442 = vpack.c.b16 %v5424, %v5423
        %v5443 = vpack.c.b16 %v5426, %v5425
        %v5444 = vpack.c.b16 %v5428, %v5427
        %5461 = vmatpush.bf16.msra.mxu0 %v5436
        %5462 = vmatpush.bf16.msra.mxu0 %v5435
        %5463 = vmatpush.bf16.msra.mxu0 %v5434
        %5464 = vmatpush.bf16.msra.mxu0 %v5433
        %5465 = vmatpush.bf16.msra.mxu0 %v5432
        %5466 = vmatpush.bf16.msra.mxu0 %v5431
        %5467 = vmatpush.bf16.msra.mxu0 %v5430
        %5468 = vmatpush.bf16.msra.mxu0 %v5429
        %5469 = vmatmul.bf16.gmra.mxu0 %v5313
        %v5470 = vpop.f32.mrf.mxu0
        %v5471 = vadd.f32 %v5363, %v5470
        %v5472 = vpop.f32.mrf.mxu0
        %v5473 = vadd.f32 %v5363, %v5472
        %5474 = vmatmul.bf16.gmra.mxu0 %v5315
        %v5475 = vpop.f32.mrf.mxu0
        %v5476 = vadd.f32 %v5363, %v5475
        %v5477 = vpop.f32.mrf.mxu0
        %v5478 = vadd.f32 %v5363, %v5477
        %5479 = vmatmul.bf16.gmra.mxu0 %v5317
        %v5480 = vpop.f32.mrf.mxu0
        %v5481 = vadd.f32 %v5363, %v5480
        %v5482 = vpop.f32.mrf.mxu0
        %v5483 = vadd.f32 %v5363, %v5482
        %5484 = vmatmul.bf16.gmra.mxu0 %v5319
        %v5485 = vpop.f32.mrf.mxu0
        %v5486 = vadd.f32 %v5363, %v5485
        %v5487 = vpop.f32.mrf.mxu0
        %v5488 = vadd.f32 %v5363, %v5487
        %5489 = vmatmul.bf16.gmra.mxu0 %v5321
        %v5490 = vpop.f32.mrf.mxu0
        %v5491 = vadd.f32 %v5363, %v5490
        %v5492 = vpop.f32.mrf.mxu0
        %v5493 = vadd.f32 %v5363, %v5492
        %5494 = vmatmul.bf16.gmra.mxu0 %v5323
        %v5495 = vpop.f32.mrf.mxu0
        %v5496 = vadd.f32 %v5363, %v5495
        %v5497 = vpop.f32.mrf.mxu0
        %v5498 = vadd.f32 %v5363, %v5497
        %5499 = vmatmul.bf16.gmra.mxu0 %v5325
        %v5500 = vpop.f32.mrf.mxu0
        %v5501 = vadd.f32 %v5363, %v5500
        %v5502 = vpop.f32.mrf.mxu0
        %v5503 = vadd.f32 %v5363, %v5502
        %5504 = vmatmul.bf16.gmra.mxu0 %v5327
        %v5505 = vpop.f32.mrf.mxu0
        %v5506 = vadd.f32 %v5363, %v5505
        %v5507 = vpop.f32.mrf.mxu0
        %v5508 = vadd.f32 %v5363, %v5507
        %5509 = vdwg.mxu0
        %5510 = vmatpush.bf16.msra.mxu0 %v5444
        %5511 = vmatpush.bf16.msra.mxu0 %v5443
        %5512 = vmatpush.bf16.msra.mxu0 %v5442
        %5513 = vmatpush.bf16.msra.mxu0 %v5441
        %5514 = vmatpush.bf16.msra.mxu0 %v5440
        %5515 = vmatpush.bf16.msra.mxu0 %v5439
        %5516 = vmatpush.bf16.msra.mxu0 %v5438
        %5517 = vmatpush.bf16.msra.mxu0 %v5437
        %5518 = vmatmul.bf16.gmra.mxu0 %v5314
        %v5519 = vpop.f32.mrf.mxu0
        %v5520 = vadd.f32 %v5471, %v5519
        %v5521 = vpop.f32.mrf.mxu0
        %v5522 = vadd.f32 %v5473, %v5521
        %5523 = vmatmul.bf16.gmra.mxu0 %v5316
        %v5524 = vpop.f32.mrf.mxu0
        %v5525 = vadd.f32 %v5476, %v5524
        %v5526 = vpop.f32.mrf.mxu0
        %v5527 = vadd.f32 %v5478, %v5526
        %5528 = vmatmul.bf16.gmra.mxu0 %v5318
        %v5529 = vpop.f32.mrf.mxu0
        %v5530 = vadd.f32 %v5481, %v5529
        %v5531 = vpop.f32.mrf.mxu0
        %v5532 = vadd.f32 %v5483, %v5531
        %5533 = vmatmul.bf16.gmra.mxu0 %v5320
        %v5534 = vpop.f32.mrf.mxu0
        %v5535 = vadd.f32 %v5486, %v5534
        %v5536 = vpop.f32.mrf.mxu0
        %v5537 = vadd.f32 %v5488, %v5536
        %5538 = vmatmul.bf16.gmra.mxu0 %v5322
        %v5539 = vpop.f32.mrf.mxu0
        %v5540 = vadd.f32 %v5491, %v5539
        %v5541 = vpop.f32.mrf.mxu0
        %v5542 = vadd.f32 %v5493, %v5541
        %5543 = vmatmul.bf16.gmra.mxu0 %v5324
        %v5544 = vpop.f32.mrf.mxu0
        %v5545 = vadd.f32 %v5496, %v5544
        %v5546 = vpop.f32.mrf.mxu0
        %v5547 = vadd.f32 %v5498, %v5546
        %5548 = vmatmul.bf16.gmra.mxu0 %v5326
        %v5549 = vpop.f32.mrf.mxu0
        %v5550 = vadd.f32 %v5501, %v5549
        %v5551 = vpop.f32.mrf.mxu0
        %v5552 = vadd.f32 %v5503, %v5551
        %5553 = vmatmul.bf16.gmra.mxu0 %v5328
        %v5554 = vpop.f32.mrf.mxu0
        %v5555 = vadd.f32 %v5506, %v5554
        %v5556 = vpop.f32.mrf.mxu0
        %v5557 = vadd.f32 %v5508, %v5556
        %5558 = vdwg.mxu0
        %v5559 = vadd.f32 %v5057, %v5520
        %v5560 = vadd.f32 %v5058, %v5522
        %v5561 = vadd.f32 %v5059, %v5525
        %v5562 = vadd.f32 %v5060, %v5527
        %v5563 = vadd.f32 %v5061, %v5530
        %v5564 = vadd.f32 %v5062, %v5532
        %v5565 = vadd.f32 %v5063, %v5535
        %v5566 = vadd.f32 %v5064, %v5537
        %v5567 = vadd.f32 %v5065, %v5540
        %v5568 = vadd.f32 %v5066, %v5542
        %v5569 = vadd.f32 %v5067, %v5545
        %v5570 = vadd.f32 %v5068, %v5547
        %v5571 = vadd.f32 %v5069, %v5550
        %v5572 = vadd.f32 %v5070, %v5552
        %v5573 = vadd.f32 %v5071, %v5555
        %v5574 = vadd.f32 %v5072, %v5557
        %v5575 = vld [vmem:[%s13] sm:$0x1]
        %v5576 = vld [vmem:[%s14] sm:$0x1]
        %5577 = vadd.xlane.f32.xlu0 %v5559
        %v5578 = vpop.xlane.xlu0 %5577
        %5579 = vadd.xlane.f32.xlu0 %v5560
        %v5580 = vpop.xlane.xlu0 %5579
        %5581 = vadd.xlane.f32.xlu0 %v5561
        %v5582 = vpop.xlane.xlu0 %5581
        %5583 = vadd.xlane.f32.xlu0 %v5562
        %v5584 = vpop.xlane.xlu0 %5583
        %5585 = vadd.xlane.f32.xlu0 %v5563
        %v5586 = vpop.xlane.xlu0 %5585
        %5587 = vadd.xlane.f32.xlu0 %v5564
        %v5588 = vpop.xlane.xlu0 %5587
        %5589 = vadd.xlane.f32.xlu0 %v5565
        %v5590 = vpop.xlane.xlu0 %5589
        %5591 = vadd.xlane.f32.xlu0 %v5566
        %v5592 = vpop.xlane.xlu0 %5591
        %5593 = vadd.xlane.f32.xlu0 %v5567
        %v5594 = vpop.xlane.xlu0 %5593
        %5595 = vadd.xlane.f32.xlu0 %v5568
        %v5596 = vpop.xlane.xlu0 %5595
        %5597 = vadd.xlane.f32.xlu0 %v5569
        %v5598 = vpop.xlane.xlu0 %5597
        %5599 = vadd.xlane.f32.xlu0 %v5570
        %v5600 = vpop.xlane.xlu0 %5599
        %5601 = vadd.xlane.f32.xlu0 %v5571
        %v5602 = vpop.xlane.xlu0 %5601
        %5603 = vadd.xlane.f32.xlu0 %v5572
        %v5604 = vpop.xlane.xlu0 %5603
        %5605 = vadd.xlane.f32.xlu0 %v5573
        %v5606 = vpop.xlane.xlu0 %5605
        %5607 = vadd.xlane.f32.xlu0 %v5574
        %v5608 = vpop.xlane.xlu0 %5607
        %v5609 = vmul.f32 %v5578, %v4746
        %v5610 = vmul.f32 %v5580, %v4746
        %v5611 = vmul.f32 %v5582, %v4746
        %v5612 = vmul.f32 %v5584, %v4746
        %v5613 = vmul.f32 %v5586, %v4746
        %v5614 = vmul.f32 %v5588, %v4746
        %v5615 = vmul.f32 %v5590, %v4746
        %v5616 = vmul.f32 %v5592, %v4746
        %v5617 = vmul.f32 %v5594, %v4746
        %v5618 = vmul.f32 %v5596, %v4746
        %v5619 = vmul.f32 %v5598, %v4746
        %v5620 = vmul.f32 %v5600, %v4746
        %v5621 = vmul.f32 %v5602, %v4746
        %v5622 = vmul.f32 %v5604, %v4746
        %v5623 = vmul.f32 %v5606, %v4746
        %v5624 = vmul.f32 %v5608, %v4746
        %v5625 = vsub.f32 %v5559, %v5609
        %v5626 = vsub.f32 %v5560, %v5610
        %v5627 = vsub.f32 %v5561, %v5611
        %v5628 = vsub.f32 %v5562, %v5612
        %v5629 = vsub.f32 %v5563, %v5613
        %v5630 = vsub.f32 %v5564, %v5614
        %v5631 = vsub.f32 %v5565, %v5615
        %v5632 = vsub.f32 %v5566, %v5616
        %v5633 = vsub.f32 %v5567, %v5617
        %v5634 = vsub.f32 %v5568, %v5618
        %v5635 = vsub.f32 %v5569, %v5619
        %v5636 = vsub.f32 %v5570, %v5620
        %v5637 = vsub.f32 %v5571, %v5621
        %v5638 = vsub.f32 %v5572, %v5622
        %v5639 = vsub.f32 %v5573, %v5623
        %v5640 = vsub.f32 %v5574, %v5624
        %v5641 = vmul.f32 %v5625, %v5625
        %v5642 = vmul.f32 %v5626, %v5626
        %v5643 = vmul.f32 %v5627, %v5627
        %v5644 = vmul.f32 %v5628, %v5628
        %v5645 = vmul.f32 %v5629, %v5629
        %v5646 = vmul.f32 %v5630, %v5630
        %v5647 = vmul.f32 %v5631, %v5631
        %v5648 = vmul.f32 %v5632, %v5632
        %v5649 = vmul.f32 %v5633, %v5633
        %v5650 = vmul.f32 %v5634, %v5634
        %v5651 = vmul.f32 %v5635, %v5635
        %v5652 = vmul.f32 %v5636, %v5636
        %v5653 = vmul.f32 %v5637, %v5637
        %v5654 = vmul.f32 %v5638, %v5638
        %v5655 = vmul.f32 %v5639, %v5639
        %v5656 = vmul.f32 %v5640, %v5640
        %5657 = vadd.xlane.f32.xlu0 %v5641
        %v5658 = vpop.xlane.xlu0 %5657
        %5659 = vadd.xlane.f32.xlu0 %v5642
        %v5660 = vpop.xlane.xlu0 %5659
        %5661 = vadd.xlane.f32.xlu0 %v5643
        %v5662 = vpop.xlane.xlu0 %5661
        %5663 = vadd.xlane.f32.xlu0 %v5644
        %v5664 = vpop.xlane.xlu0 %5663
        %5665 = vadd.xlane.f32.xlu0 %v5645
        %v5666 = vpop.xlane.xlu0 %5665
        %5667 = vadd.xlane.f32.xlu0 %v5646
        %v5668 = vpop.xlane.xlu0 %5667
        %5669 = vadd.xlane.f32.xlu0 %v5647
        %v5670 = vpop.xlane.xlu0 %5669
        %5671 = vadd.xlane.f32.xlu0 %v5648
        %v5672 = vpop.xlane.xlu0 %5671
        %5673 = vadd.xlane.f32.xlu0 %v5649
        %v5674 = vpop.xlane.xlu0 %5673
        %5675 = vadd.xlane.f32.xlu0 %v5650
        %v5676 = vpop.xlane.xlu0 %5675
        %5677 = vadd.xlane.f32.xlu0 %v5651
        %v5678 = vpop.xlane.xlu0 %5677
        %5679 = vadd.xlane.f32.xlu0 %v5652
        %v5680 = vpop.xlane.xlu0 %5679
        %5681 = vadd.xlane.f32.xlu0 %v5653
        %v5682 = vpop.xlane.xlu0 %5681
        %5683 = vadd.xlane.f32.xlu0 %v5654
        %v5684 = vpop.xlane.xlu0 %5683
        %5685 = vadd.xlane.f32.xlu0 %v5655
        %v5686 = vpop.xlane.xlu0 %5685
        %5687 = vadd.xlane.f32.xlu0 %v5656
        %v5688 = vpop.xlane.xlu0 %5687
        %v5689 = vmul.f32 %v5658, %v4746
        %v5690 = vmul.f32 %v5660, %v4746
        %v5691 = vmul.f32 %v5662, %v4746
        %v5692 = vmul.f32 %v5664, %v4746
        %v5693 = vmul.f32 %v5666, %v4746
        %v5694 = vmul.f32 %v5668, %v4746
        %v5695 = vmul.f32 %v5670, %v4746
        %v5696 = vmul.f32 %v5672, %v4746
        %v5697 = vmul.f32 %v5674, %v4746
        %v5698 = vmul.f32 %v5676, %v4746
        %v5699 = vmul.f32 %v5678, %v4746
        %v5700 = vmul.f32 %v5680, %v4746
        %v5701 = vmul.f32 %v5682, %v4746
        %v5702 = vmul.f32 %v5684, %v4746
        %v5703 = vmul.f32 %v5686, %v4746
        %v5704 = vmul.f32 %v5688, %v4746
        %v5705 = vadd.f32 %v5689, 1e-05
        %v5706 = vadd.f32 %v5690, 1e-05
        %v5707 = vadd.f32 %v5691, 1e-05
        %v5708 = vadd.f32 %v5692, 1e-05
        %v5709 = vadd.f32 %v5693, 1e-05
        %v5710 = vadd.f32 %v5694, 1e-05
        %v5711 = vadd.f32 %v5695, 1e-05
        %v5712 = vadd.f32 %v5696, 1e-05
        %v5713 = vadd.f32 %v5697, 1e-05
        %v5714 = vadd.f32 %v5698, 1e-05
        %v5715 = vadd.f32 %v5699, 1e-05
        %v5716 = vadd.f32 %v5700, 1e-05
        %v5717 = vadd.f32 %v5701, 1e-05
        %v5718 = vadd.f32 %v5702, 1e-05
        %v5719 = vadd.f32 %v5703, 1e-05
        %v5720 = vadd.f32 %v5704, 1e-05
        %v5721 = vrsqrt.pop %v5705
        %v5722 = vmul.f32 %v5721, %v5705
        %v5723 = vmul.f32 %v5722, %v5721
        %v5724 = vmul.f32 0.5, %v5723
        %v5725 = vsub.f32 1.5, %v5724
        %v5726 = vmul.f32 %v5721, %v5725
        %vm5727 = vweird.f32 %v5705
        %vm5728 = vweird.f32 %v5721
        %vm5729 = vmor %vm5727, %vm5728
        %v5730 = vsel %vm5729, %v5721, %v5726
        %v5731 = vrsqrt.pop %v5706
        %v5732 = vmul.f32 %v5731, %v5706
        %v5733 = vmul.f32 %v5732, %v5731
        %v5734 = vmul.f32 0.5, %v5733
        %v5735 = vsub.f32 1.5, %v5734
        %v5736 = vmul.f32 %v5731, %v5735
        %vm5737 = vweird.f32 %v5706
        %vm5738 = vweird.f32 %v5731
        %vm5739 = vmor %vm5737, %vm5738
        %v5740 = vsel %vm5739, %v5731, %v5736
        %v5741 = vrsqrt.pop %v5707
        %v5742 = vmul.f32 %v5741, %v5707
        %v5743 = vmul.f32 %v5742, %v5741
        %v5744 = vmul.f32 0.5, %v5743
        %v5745 = vsub.f32 1.5, %v5744
        %v5746 = vmul.f32 %v5741, %v5745
        %vm5747 = vweird.f32 %v5707
        %vm5748 = vweird.f32 %v5741
        %vm5749 = vmor %vm5747, %vm5748
        %v5750 = vsel %vm5749, %v5741, %v5746
        %v5751 = vrsqrt.pop %v5708
        %v5752 = vmul.f32 %v5751, %v5708
        %v5753 = vmul.f32 %v5752, %v5751
        %v5754 = vmul.f32 0.5, %v5753
        %v5755 = vsub.f32 1.5, %v5754
        %v5756 = vmul.f32 %v5751, %v5755
        %vm5757 = vweird.f32 %v5708
        %vm5758 = vweird.f32 %v5751
        %vm5759 = vmor %vm5757, %vm5758
        %v5760 = vsel %vm5759, %v5751, %v5756
        %v5761 = vrsqrt.pop %v5709
        %v5762 = vmul.f32 %v5761, %v5709
        %v5763 = vmul.f32 %v5762, %v5761
        %v5764 = vmul.f32 0.5, %v5763
        %v5765 = vsub.f32 1.5, %v5764
        %v5766 = vmul.f32 %v5761, %v5765
        %vm5767 = vweird.f32 %v5709
        %vm5768 = vweird.f32 %v5761
        %vm5769 = vmor %vm5767, %vm5768
        %v5770 = vsel %vm5769, %v5761, %v5766
        %v5771 = vrsqrt.pop %v5710
        %v5772 = vmul.f32 %v5771, %v5710
        %v5773 = vmul.f32 %v5772, %v5771
        %v5774 = vmul.f32 0.5, %v5773
        %v5775 = vsub.f32 1.5, %v5774
        %v5776 = vmul.f32 %v5771, %v5775
        %vm5777 = vweird.f32 %v5710
        %vm5778 = vweird.f32 %v5771
        %vm5779 = vmor %vm5777, %vm5778
        %v5780 = vsel %vm5779, %v5771, %v5776
        %v5781 = vrsqrt.pop %v5711
        %v5782 = vmul.f32 %v5781, %v5711
        %v5783 = vmul.f32 %v5782, %v5781
        %v5784 = vmul.f32 0.5, %v5783
        %v5785 = vsub.f32 1.5, %v5784
        %v5786 = vmul.f32 %v5781, %v5785
        %vm5787 = vweird.f32 %v5711
        %vm5788 = vweird.f32 %v5781
        %vm5789 = vmor %vm5787, %vm5788
        %v5790 = vsel %vm5789, %v5781, %v5786
        %v5791 = vrsqrt.pop %v5712
        %v5792 = vmul.f32 %v5791, %v5712
        %v5793 = vmul.f32 %v5792, %v5791
        %v5794 = vmul.f32 0.5, %v5793
        %v5795 = vsub.f32 1.5, %v5794
        %v5796 = vmul.f32 %v5791, %v5795
        %vm5797 = vweird.f32 %v5712
        %vm5798 = vweird.f32 %v5791
        %vm5799 = vmor %vm5797, %vm5798
        %v5800 = vsel %vm5799, %v5791, %v5796
        %v5801 = vrsqrt.pop %v5713
        %v5802 = vmul.f32 %v5801, %v5713
        %v5803 = vmul.f32 %v5802, %v5801
        %v5804 = vmul.f32 0.5, %v5803
        %v5805 = vsub.f32 1.5, %v5804
        %v5806 = vmul.f32 %v5801, %v5805
        %vm5807 = vweird.f32 %v5713
        %vm5808 = vweird.f32 %v5801
        %vm5809 = vmor %vm5807, %vm5808
        %v5810 = vsel %vm5809, %v5801, %v5806
        %v5811 = vrsqrt.pop %v5714
        %v5812 = vmul.f32 %v5811, %v5714
        %v5813 = vmul.f32 %v5812, %v5811
        %v5814 = vmul.f32 0.5, %v5813
        %v5815 = vsub.f32 1.5, %v5814
        %v5816 = vmul.f32 %v5811, %v5815
        %vm5817 = vweird.f32 %v5714
        %vm5818 = vweird.f32 %v5811
        %vm5819 = vmor %vm5817, %vm5818
        %v5820 = vsel %vm5819, %v5811, %v5816
        %v5821 = vrsqrt.pop %v5715
        %v5822 = vmul.f32 %v5821, %v5715
        %v5823 = vmul.f32 %v5822, %v5821
        %v5824 = vmul.f32 0.5, %v5823
        %v5825 = vsub.f32 1.5, %v5824
        %v5826 = vmul.f32 %v5821, %v5825
        %vm5827 = vweird.f32 %v5715
        %vm5828 = vweird.f32 %v5821
        %vm5829 = vmor %vm5827, %vm5828
        %v5830 = vsel %vm5829, %v5821, %v5826
        %v5831 = vrsqrt.pop %v5716
        %v5832 = vmul.f32 %v5831, %v5716
        %v5833 = vmul.f32 %v5832, %v5831
        %v5834 = vmul.f32 0.5, %v5833
        %v5835 = vsub.f32 1.5, %v5834
        %v5836 = vmul.f32 %v5831, %v5835
        %vm5837 = vweird.f32 %v5716
        %vm5838 = vweird.f32 %v5831
        %vm5839 = vmor %vm5837, %vm5838
        %v5840 = vsel %vm5839, %v5831, %v5836
        %v5841 = vrsqrt.pop %v5717
        %v5842 = vmul.f32 %v5841, %v5717
        %v5843 = vmul.f32 %v5842, %v5841
        %v5844 = vmul.f32 0.5, %v5843
        %v5845 = vsub.f32 1.5, %v5844
        %v5846 = vmul.f32 %v5841, %v5845
        %vm5847 = vweird.f32 %v5717
        %vm5848 = vweird.f32 %v5841
        %vm5849 = vmor %vm5847, %vm5848
        %v5850 = vsel %vm5849, %v5841, %v5846
        %v5851 = vrsqrt.pop %v5718
        %v5852 = vmul.f32 %v5851, %v5718
        %v5853 = vmul.f32 %v5852, %v5851
        %v5854 = vmul.f32 0.5, %v5853
        %v5855 = vsub.f32 1.5, %v5854
        %v5856 = vmul.f32 %v5851, %v5855
        %vm5857 = vweird.f32 %v5718
        %vm5858 = vweird.f32 %v5851
        %vm5859 = vmor %vm5857, %vm5858
        %v5860 = vsel %vm5859, %v5851, %v5856
        %v5861 = vrsqrt.pop %v5719
        %v5862 = vmul.f32 %v5861, %v5719
        %v5863 = vmul.f32 %v5862, %v5861
        %v5864 = vmul.f32 0.5, %v5863
        %v5865 = vsub.f32 1.5, %v5864
        %v5866 = vmul.f32 %v5861, %v5865
        %vm5867 = vweird.f32 %v5719
        %vm5868 = vweird.f32 %v5861
        %vm5869 = vmor %vm5867, %vm5868
        %v5870 = vsel %vm5869, %v5861, %v5866
        %v5871 = vrsqrt.pop %v5720
        %v5872 = vmul.f32 %v5871, %v5720
        %v5873 = vmul.f32 %v5872, %v5871
        %v5874 = vmul.f32 0.5, %v5873
        %v5875 = vsub.f32 1.5, %v5874
        %v5876 = vmul.f32 %v5871, %v5875
        %vm5877 = vweird.f32 %v5720
        %vm5878 = vweird.f32 %v5871
        %vm5879 = vmor %vm5877, %vm5878
        %v5880 = vsel %vm5879, %v5871, %v5876
        %v5881 = vmul.f32 %v5625, %v5730
        %v5882 = vmul.f32 %v5626, %v5740
        %v5883 = vmul.f32 %v5627, %v5750
        %v5884 = vmul.f32 %v5628, %v5760
        %v5885 = vmul.f32 %v5629, %v5770
        %v5886 = vmul.f32 %v5630, %v5780
        %v5887 = vmul.f32 %v5631, %v5790
        %v5888 = vmul.f32 %v5632, %v5800
        %v5889 = vmul.f32 %v5633, %v5810
        %v5890 = vmul.f32 %v5634, %v5820
        %v5891 = vmul.f32 %v5635, %v5830
        %v5892 = vmul.f32 %v5636, %v5840
        %v5893 = vmul.f32 %v5637, %v5850
        %v5894 = vmul.f32 %v5638, %v5860
        %v5895 = vmul.f32 %v5639, %v5870
        %v5896 = vmul.f32 %v5640, %v5880
        %v5898 = vperm.slane %v5575, 0
        %v5900 = vmul.f32 %v5881, %v5898
        %v5901 = vmul.f32 %v5882, %v5898
        %v5902 = vmul.f32 %v5883, %v5898
        %v5903 = vmul.f32 %v5884, %v5898
        %v5904 = vmul.f32 %v5885, %v5898
        %v5905 = vmul.f32 %v5886, %v5898
        %v5906 = vmul.f32 %v5887, %v5898
        %v5907 = vmul.f32 %v5888, %v5898
        %v5908 = vmul.f32 %v5889, %v5898
        %v5909 = vmul.f32 %v5890, %v5898
        %v5910 = vmul.f32 %v5891, %v5898
        %v5911 = vmul.f32 %v5892, %v5898
        %v5912 = vmul.f32 %v5893, %v5898
        %v5913 = vmul.f32 %v5894, %v5898
        %v5914 = vmul.f32 %v5895, %v5898
        %v5915 = vmul.f32 %v5896, %v5898
        %v5917 = vperm.slane %v5576, 0
        %v5919 = vadd.f32 %v5900, %v5917
        %v5920 = vadd.f32 %v5901, %v5917
        %v5921 = vadd.f32 %v5902, %v5917
        %v5922 = vadd.f32 %v5903, %v5917
        %v5923 = vadd.f32 %v5904, %v5917
        %v5924 = vadd.f32 %v5905, %v5917
        %v5925 = vadd.f32 %v5906, %v5917
        %v5926 = vadd.f32 %v5907, %v5917
        %v5927 = vadd.f32 %v5908, %v5917
        %v5928 = vadd.f32 %v5909, %v5917
        %v5929 = vadd.f32 %v5910, %v5917
        %v5930 = vadd.f32 %v5911, %v5917
        %v5931 = vadd.f32 %v5912, %v5917
        %v5932 = vadd.f32 %v5913, %v5917
        %v5933 = vadd.f32 %v5914, %v5917
        %v5934 = vadd.f32 %v5915, %v5917
        %5935 = vst [vmem:[%s575] sm:$0xff] %v5919
        %5936 = vst [vmem:[%s575 + $0x8] sm:$0xff] %v5920
        %5937 = vst [vmem:[%s575 + $0x10] sm:$0xff] %v5921
        %5938 = vst [vmem:[%s575 + $0x18] sm:$0xff] %v5922
        %5939 = vst [vmem:[%s575 + $0x20] sm:$0xff] %v5923
        %5940 = vst [vmem:[%s575 + $0x28] sm:$0xff] %v5924
        %5941 = vst [vmem:[%s575 + $0x30] sm:$0xff] %v5925
        %5942 = vst [vmem:[%s575 + $0x38] sm:$0xff] %v5926
        %5943 = vst [vmem:[%s575 + $0x40] sm:$0xff] %v5927
        %5944 = vst [vmem:[%s575 + $0x48] sm:$0xff] %v5928
        %5945 = vst [vmem:[%s575 + $0x50] sm:$0xff] %v5929
        %5946 = vst [vmem:[%s575 + $0x58] sm:$0xff] %v5930
        %5947 = vst [vmem:[%s575 + $0x60] sm:$0xff] %v5931
        %5948 = vst [vmem:[%s575 + $0x68] sm:$0xff] %v5932
        %5949 = vst [vmem:[%s575 + $0x70] sm:$0xff] %v5933
        %5950 = vst [vmem:[%s575 + $0x78] sm:$0xff] %v5934
        %s5951 = sand.u32 %s388, 1
        %s5952 = scalar_lea.sflag [#allocation3], %s5951
        %s5953 = sand.u32 %s388, 1
        %s5954 = smul.addr %s5953, 128
        %s5955 = scalar_lea.vmem [#allocation2], %s5954
        %s5956 = sand.u32 %s416, 1
        %s5957 = scalar_lea.sflag [#allocation5], %s5956
        %s5958 = sand.u32 %s416, 1
        %s5959 = smul.addr %s5958, 256
        %s5960 = scalar_lea.vmem [#allocation4], %s5959
        // Predicated region
        $region81: #{tpu_custom_call.1} parent=79 // pred_check
          %p5961 = pneg %p398
        $region82: #{tpu_custom_call.1} parent=79 // pred_check_branch
          %5963 = sbr.rel (%p5961) target = $region84
        $region83: #{tpu_custom_call.1} parent=79 // pred_region
          %s5964 = smul.u32 16, %s39
          %5966 = vsyncadd %s5952, 0
          %s5967 = smul.addr %s38, 32
          %s5968 = sadd.s32 %s5964, %s5967
          %s5969 = smul.addr %s5968, 8
          %s5970 = scalar_lea.hbm %s15, %s5969
          %s5971 = sshll.u32 %s5955, 4
          %s5972 = int_to_ptr.vmem [resolvable:$true] %s5971
          %s5973 = sshll.u32 %s5970, 4
          %s5974 = int_to_ptr.hbm [resolvable:$true] %s5973
          %5979 = dma.vmem_to_hbm [thread:$0]  %s5972, 2048, %s5974, %s5952, 128, 128, 8
        $region84: #{tpu_custom_call.1} parent=79 // pred_fallthru
          _
        // Predicated region
        $region85: #{tpu_custom_call.1} parent=79 // pred_check
          %p5980 = pneg %p426
        $region86: #{tpu_custom_call.1} parent=79 // pred_check_branch
          %5982 = sbr.rel (%p5980) target = $region88
        $region87: #{tpu_custom_call.1} parent=79 // pred_region
          %s5983 = smul.u32 16, %s39
          %5985 = vsyncadd %s5957, 0
          %s5986 = smul.addr %s5983, 2
          %s5987 = smul.addr %s38, 64
          %s5988 = sadd.s32 %s5986, %s5987
          %s5989 = smul.addr %s5988, 8
          %s5990 = scalar_lea.hbm %s16, %s5989
          %s5991 = sshll.u32 %s5960, 4
          %s5992 = int_to_ptr.vmem [resolvable:$true] %s5991
          %s5993 = sshll.u32 %s5990, 4
          %s5994 = int_to_ptr.hbm [resolvable:$true] %s5993
          %5999 = dma.vmem_to_hbm [thread:$0]  %s5992, 4096, %s5994, %s5957, 256, 256, 16
        $region88: #{tpu_custom_call.1} parent=79 // pred_fallthru
          _
      $region80: #{tpu_custom_call.1} parent=5 // pred_fallthru
        _
      %p6000 = scmp.le.s32.totalorder 2, %s29
      // Predicated region
      $region89: #{tpu_custom_call.1} parent=5 // pred_check
        %p6001 = pneg %p6000
      $region90: #{tpu_custom_call.1} parent=5 // pred_check_branch
        %6003 = sbr.rel (%p6001) target = $region92
      $region91: #{tpu_custom_call.1} parent=5 // pred_region
        %s6004 = ssub.s32 %s29, 2
        // Predicated region
        $region93: #{tpu_custom_call.1} parent=91 // pred_check
          %p6005 = pneg %p404
        $region94: #{tpu_custom_call.1} parent=91 // pred_check_branch
          %6007 = sbr.rel (%p6005) target = $region96
        $region95: #{tpu_custom_call.1} parent=91 // pred_region
          %s6008 = sand.u32 %s389, 1
          %s6009 = scalar_lea.sflag [#allocation3], %s6008
          %s6010 = sand.u32 %s389, 1
          %s6011 = smul.addr %s6010, 128
          %s6012 = scalar_lea.vmem [#allocation2], %s6011
          %6014 = dma.done %s6009, 2048
        $region96: #{tpu_custom_call.1} parent=91 // pred_fallthru
          _
        // Predicated region
        $region97: #{tpu_custom_call.1} parent=91 // pred_check
          %p6015 = pneg %p432
        $region98: #{tpu_custom_call.1} parent=91 // pred_check_branch
          %6017 = sbr.rel (%p6015) target = $region100
        $region99: #{tpu_custom_call.1} parent=91 // pred_region
          %s6018 = sand.u32 %s417, 1
          %s6019 = scalar_lea.sflag [#allocation5], %s6018
          %s6020 = sand.u32 %s417, 1
          %s6021 = smul.addr %s6020, 256
          %s6022 = scalar_lea.vmem [#allocation4], %s6021
          %6024 = dma.done %s6019, 4096
        $region100: #{tpu_custom_call.1} parent=91 // pred_fallthru
          _
      $region92: #{tpu_custom_call.1} parent=5 // pred_fallthru
        _
    $region6: #{tpu_custom_call.1} parent=1 // loop_footer
      %s33 = sadd.s32 1, %s29
    $region7: #{tpu_custom_call.1} parent=1 // loop_footer_branch
      %28 = sbr.rel target = $region3
    $region8: #{tpu_custom_call.1} parent=1 // loop_exit
      _
    %6025 = vsyncpa [#allocation3], 1
    %s6026 = scalar_lea.sflag [#allocation3], 1
    %6027 = vsyncpa %s6026, 1
    %6028 = vsyncpa [#allocation5], 1
    %s6029 = scalar_lea.sflag [#allocation5], 1
    %6030 = vsyncpa %s6029, 1

</llo_original>
